<compile_context>
chip_gen: v7x
topology: tpu7x:2x2x1
jax: 0.10.0
libtpu: 0.0.40
codegen_flags: <defaults>
</compile_context>

<pallas_src>
import numpy as np

import jax
import jax.numpy as jnp
from jax import lax
from jax.experimental import pallas as pl
from jax.experimental.pallas import tpu as pltpu


NEG_SLOPE = 0.2
IMG = 32
CONV_SHAPES = [(6, 3, 4, 4), (16, 6, 4, 4), (32, 16, 4, 4), (64, 32, 4, 4)]
FC_SHAPES = [(120, 64 * 2 * 2), (10, 120)]
OUT_PAD = 128  # lane-dense final output; real logits live in columns [:10]


# ---------------------------------------------------------------------------
# Static index helpers (pure python / numpy, trace-time only)
# ---------------------------------------------------------------------------
def _reflect(p, size):
    """Source index of padded position p for ReflectionPad2d(1)."""
    if p == 0:
        return 1
    if p == size + 1:
        return size - 2
    return p - 1


def _src_rows(H):
    """Per-dy tuple of reflected source-row indices (pad+stride folded)."""
    return [tuple(_reflect(2 * i + dy, H) for i in range(H // 2)) for dy in range(4)]


def _col_fold(W):
    """T[w, j, dx] = 1 iff padded column 2j+dx reflects to source column w."""
    Wo = W // 2
    T = np.zeros((W, Wo, 4), np.float32)
    for j in range(Wo):
        for dx in range(4):
            T[_reflect(2 * j + dx, W), j, dx] += 1.0
    return T


# ---------------------------------------------------------------------------
# Weight preprocessing (XLA, weight-only; no activation traffic)
# ---------------------------------------------------------------------------
def _prepare_kernel_weights(params):
    (w1c, b1c), (w2c, b2c), (w3c, b3c), (w4c, b4c) = params["conv"]
    (wf1, bf1), (wf2, bf2) = params["fc"]
    hp = lax.Precision.HIGHEST

    # Layer 1: input lanes are channel-major [c*32 + w]; Cout padded 6 -> 8
    # so the output lane width is 16*8 = 128.
    T1 = jnp.asarray(_col_fold(32))                                   # (32, 16, 4)
    m1 = jnp.einsum("wjd,ocyd->ycwjo", T1, w1c, precision=hp)         # (4, 3, 32, 16, 6)
    m1 = jnp.pad(m1, ((0, 0), (0, 0), (0, 0), (0, 0), (0, 2)))        # Cout 6 -> 8 (zeros)
    m1 = m1.reshape(4, 3 * 32, 16 * 8)                                # (4, 96, 128)
    b1row = jnp.tile(jnp.pad(b1c, (0, 2)), 16)[None, :]               # (1, 128)

    # Layers 2-4: lanes are interleaved [w*Cin + ci] in, [j*Cout + o] out.
    def mid(T, w, cin_pad=0):
        m = jnp.einsum("wjd,ocyd->ywcjo", T, w, precision=hp)         # (4, W, Cin, Wo, Cout)
        if cin_pad:
            m = jnp.pad(m, ((0, 0), (0, 0), (0, cin_pad), (0, 0), (0, 0)))
        dy, W_, Ci, Wo, Co = m.shape
        return m.reshape(dy, W_ * Ci, Wo * Co)

    m2 = mid(jnp.asarray(_col_fold(16)), w2c, cin_pad=2)              # (4, 128, 128)
    b2row = jnp.tile(b2c, 8)[None, :]                                 # (1, 128)
    m3 = mid(jnp.asarray(_col_fold(8)), w3c)                          # (4, 128, 128)
    b3row = jnp.tile(b3c, 4)[None, :]
    m4 = mid(jnp.asarray(_col_fold(4)), w4c)                          # (4, 128, 128)
    b4row = jnp.tile(b4c, 2)[None, :]

    # FC1: fold torch's (C,H,W) flatten order; pad 120 -> 128 output lanes.
    w1e = (wf1.reshape(120, 64, 2, 2)                                 # (o, c, h, w)
              .transpose(2, 3, 1, 0)                                  # (h, w, c, o)
              .reshape(2, 128, 120))
    w1e = jnp.pad(w1e, ((0, 0), (0, 0), (0, 8)))                      # (2, 128, 128)
    f1row = jnp.pad(bf1, (0, 8))[None, :]                             # (1, 128)
    # FC2: pad 10 -> 128 output lanes.
    w2e = jnp.zeros((128, 128), jnp.float32).at[:120, :10].set(wf2.T)
    f2row = jnp.zeros((1, 128), jnp.float32).at[0, :10].set(bf2)

    return [m1, b1row, m2, b2row, m3, b3row, m4, b4row, w1e, f1row, w2e, f2row]


# ---------------------------------------------------------------------------
# The single fused Pallas kernel (TILE_B images per grid step)
# ---------------------------------------------------------------------------
def _net_kernel(x_ref,
                m1_ref, b1_ref, m2_ref, b2_ref, m3_ref, b3_ref, m4_ref, b4_ref,
                w1_ref, f1_ref, w2_ref, f2_ref,
                o_ref):
    B = x_ref.shape[1]                        # TILE_B (sublane dim of every dot's M)

    def conv_block(get_row, H, m_ref, b_ref):
        """Reflection-pad(1) + conv(k=4, s=2) + LeakyReLU(0.2).

        get_row(r) -> (B, Cin_lane) slab of source row r (batch on sublanes).
        Returns a 2D (Ho*B, Cout_lane) activation (row-major over (i, b)).
        """
        src = _src_rows(H)
        acc = None
        for dy in range(4):                                   # 4 MXU dots per layer
            rows = jnp.concatenate([get_row(r) for r in src[dy]], axis=0)
            d = jnp.dot(rows, m_ref[dy], preferred_element_type=jnp.float32)
            acc = d if acc is None else acc + d
        z = acc + b_ref[...]
        return jnp.maximum(z, NEG_SLOPE * z)                  # leaky ReLU

    # Layer 1 reads source rows straight from the (32, B, 96) input block.
    a = conv_block(lambda r: x_ref[r], 32, m1_ref, b1_ref)                       # (16B, 128)
    a = conv_block(lambda r, a=a: a[r * B:(r + 1) * B, :], 16, m2_ref, b2_ref)   # (8B, 128)
    a = conv_block(lambda r, a=a: a[r * B:(r + 1) * B, :], 8, m3_ref, b3_ref)    # (4B, 128)
    a = conv_block(lambda r, a=a: a[r * B:(r + 1) * B, :], 4, m4_ref, b4_ref)    # (2B, 128)

    # FC head (torch flatten order folded into w1_ref; outputs padded to 128 lanes)
    h = (jnp.dot(a[0:B, :], w1_ref[0], preferred_element_type=jnp.float32)
         + jnp.dot(a[B:2 * B, :], w1_ref[1], preferred_element_type=jnp.float32)
         + f1_ref[...])
    h = jnp.maximum(h, NEG_SLOPE * h)
    out = jnp.dot(h, w2_ref[...], preferred_element_type=jnp.float32) + f2_ref[...]
    o_ref[...] = out.astype(o_ref.dtype)                      # (TILE_B, 128) unmasked store


def net_deep_conv_pallas(x_nchw, params, *, tile_b=128):
    """x_nchw: (N, 3, 32, 32) f32 -> (N, 10) f32 logits."""
    assert tile_b % 8 == 0, "tile_b must be a multiple of 8 (sublane tile)"
    N = x_nchw.shape[0]
    n_blocks = (N + tile_b - 1) // tile_b
    Np = n_blocks * tile_b
    x = x_nchw if Np == N else jnp.pad(x_nchw, ((0, Np - N), (0, 0), (0, 0), (0, 0)))

    # One fused relayout to the kernel layout (H, N, C*W): rows become the
    # leading (freely indexable) dim, batch lands on sublanes, lanes are 96.
    # TODO(synk): if the producer can supply (H, N, C*W) directly, this last
    # HBM round trip on the input disappears.
    x_hnc = jnp.transpose(x, (2, 0, 1, 3)).reshape(IMG, Np, 3 * IMG)

    weight_ins = _prepare_kernel_weights(params)

    def full_spec(arr):
        nd = arr.ndim
        return pl.BlockSpec(arr.shape, lambda n, _nd=nd: (0,) * _nd)

    in_specs = [pl.BlockSpec((IMG, tile_b, 3 * IMG), lambda n: (0, n, 0))]
    in_specs += [full_spec(a) for a in weight_ins]

    out = pl.pallas_call(
        _net_kernel,
        out_shape=jax.ShapeDtypeStruct((Np, OUT_PAD), jnp.float32),
        grid=(n_blocks,),
        in_specs=in_specs,
        out_specs=pl.BlockSpec((tile_b, OUT_PAD), lambda n: (n, 0)),
        compiler_params=pltpu.CompilerParams(
            dimension_semantics=("parallel",)),
    )(x_hnc, *weight_ins)
    return out[:N, :10]


# ---------------------------------------------------------------------------
# Parameter construction (deterministic, synthetic) + pure-JAX reference
# ---------------------------------------------------------------------------
def init_params(key):
    params = {"conv": [], "fc": []}
    keys = jax.random.split(key, len(CONV_SHAPES) * 2 + 2 * len(FC_SHAPES))
    ki = 0
    for shp in CONV_SHAPES:
        fan_in = shp[1] * shp[2] * shp[3]
        bound = 1.0 / np.sqrt(fan_in)
        w = jax.random.uniform(keys[ki], shp, jnp.float32, -bound, bound); ki += 1
        b = jax.random.uniform(keys[ki], (shp[0],), jnp.float32, -bound, bound); ki += 1
        params["conv"].append((w, b))
    for (fout, fin) in FC_SHAPES:
        bound = 1.0 / np.sqrt(fin)
        w = jax.random.uniform(keys[ki], (fout, fin), jnp.float32, -bound, bound); ki += 1
        b = jax.random.uniform(keys[ki], (fout,), jnp.float32, -bound, bound); ki += 1
        params["fc"].append((w, b))
    return params


def net_deep_conv_ref(x_nchw, params):
    """Pure-JAX reference (lax.conv) used only for the correctness check."""
    h = x_nchw
    for (w, b) in params["conv"]:
        h = jnp.pad(h, ((0, 0), (0, 0), (1, 1), (1, 1)), mode="reflect")
        h = lax.conv_general_dilated(
            h, w, window_strides=(2, 2), padding="VALID",
            dimension_numbers=("NCHW", "OIHW", "NCHW"),
            precision=lax.Precision.HIGHEST,
        ) + b[None, :, None, None]
        h = jnp.where(h >= 0, h, NEG_SLOPE * h)
    feats = h.reshape(h.shape[0], -1)
    (w1, b1), (w2, b2) = params["fc"]
    f = jnp.dot(feats, w1.T, precision=lax.Precision.HIGHEST) + b1
    f = jnp.where(f >= 0, f, NEG_SLOPE * f)
    return jnp.dot(f, w2.T, precision=lax.Precision.HIGHEST) + b2


if __name__ == "__main__":
    key = jax.random.PRNGKey(0)
    kp, kx = jax.random.split(key)
    params = init_params(kp)
    # Small demo batch; tile_b=8 gives 2 grid steps (even -> both v7x cores busy).
    x = jax.random.normal(kx, (16, 3, 32, 32), jnp.float32)

    fwd = jax.jit(lambda xx, pp: net_deep_conv_pallas(xx, pp, tile_b=8))
    out = jax.block_until_ready(fwd(x, params))
    ref = jax.block_until_ready(net_deep_conv_ref(x, params))

    assert out.shape == (16, 10), out.shape
    max_err = float(jnp.max(jnp.abs(out - ref)))
    assert jnp.allclose(out, ref, atol=2e-3, rtol=2e-3), f"mismatch: max abs err={max_err}"
    print("KERNEL_OK")
</pallas_src>

<mosaic_0001>
module attributes {stable_mosaic.version = 11 : i64} {
  func.func @_net_kernel(%arg0: i32, %arg1: memref<32x8x96xf32, #tpu.memory_space<vmem>>, %arg2: memref<4x96x128xf32, #tpu.memory_space<vmem>>, %arg3: memref<1x128xf32, #tpu.memory_space<vmem>>, %arg4: memref<4x128x128xf32, #tpu.memory_space<vmem>>, %arg5: memref<1x128xf32, #tpu.memory_space<vmem>>, %arg6: memref<4x128x128xf32, #tpu.memory_space<vmem>>, %arg7: memref<1x128xf32, #tpu.memory_space<vmem>>, %arg8: memref<4x128x128xf32, #tpu.memory_space<vmem>>, %arg9: memref<1x128xf32, #tpu.memory_space<vmem>>, %arg10: memref<2x128x128xf32, #tpu.memory_space<vmem>>, %arg11: memref<1x128xf32, #tpu.memory_space<vmem>>, %arg12: memref<128x128xf32, #tpu.memory_space<vmem>>, %arg13: memref<1x128xf32, #tpu.memory_space<vmem>>, %arg14: memref<8x128xf32, #tpu.memory_space<vmem>>) attributes {dimension_semantics = [#tpu.dimension_semantics<parallel>], iteration_bounds = array<i64: 2>, scalar_prefetch = 0 : i64, scratch_operands = 0 : i64, tpu.core_type = #tpu.core_type<tc>, window_params = [{transform_indices = @transform_0, window_bounds = array<i64: 32, 8, 96>}, {pipeline_mode = #tpu.pipeline_mode<synchronous>, transform_indices = @transform_1, window_bounds = array<i64: 4, 96, 128>}, {pipeline_mode = #tpu.pipeline_mode<synchronous>, transform_indices = @transform_2, window_bounds = array<i64: 1, 128>}, {pipeline_mode = #tpu.pipeline_mode<synchronous>, transform_indices = @transform_3, window_bounds = array<i64: 4, 128, 128>}, {pipeline_mode = #tpu.pipeline_mode<synchronous>, transform_indices = @transform_4, window_bounds = array<i64: 1, 128>}, {pipeline_mode = #tpu.pipeline_mode<synchronous>, transform_indices = @transform_5, window_bounds = array<i64: 4, 128, 128>}, {pipeline_mode = #tpu.pipeline_mode<synchronous>, transform_indices = @transform_6, window_bounds = array<i64: 1, 128>}, {pipeline_mode = #tpu.pipeline_mode<synchronous>, transform_indices = @transform_7, window_bounds = array<i64: 4, 128, 128>}, {pipeline_mode = #tpu.pipeline_mode<synchronous>, transform_indices = @transform_8, window_bounds = array<i64: 1, 128>}, {pipeline_mode = #tpu.pipeline_mode<synchronous>, transform_indices = @transform_9, window_bounds = array<i64: 2, 128, 128>}, {pipeline_mode = #tpu.pipeline_mode<synchronous>, transform_indices = @transform_10, window_bounds = array<i64: 1, 128>}, {pipeline_mode = #tpu.pipeline_mode<synchronous>, transform_indices = @transform_11, window_bounds = array<i64: 128, 128>}, {pipeline_mode = #tpu.pipeline_mode<synchronous>, transform_indices = @transform_12, window_bounds = array<i64: 1, 128>}, {transform_indices = @transform_13, window_bounds = array<i64: 8, 128>}]} {
    %c1 = arith.constant 1 : index
    %c0 = arith.constant 0 : index
    %c0_0 = arith.constant 0 : index
    %0 = vector.load %arg1[%c1, %c0, %c0_0] : memref<32x8x96xf32, #tpu.memory_space<vmem>>, vector<1x8x96xf32>
    %1 = vector.shape_cast %0 : vector<1x8x96xf32> to vector<8x96xf32>
    %c1_1 = arith.constant 1 : index
    %c0_2 = arith.constant 0 : index
    %c0_3 = arith.constant 0 : index
    %2 = vector.load %arg1[%c1_1, %c0_2, %c0_3] : memref<32x8x96xf32, #tpu.memory_space<vmem>>, vector<1x8x96xf32>
    %3 = vector.shape_cast %2 : vector<1x8x96xf32> to vector<8x96xf32>
    %c3 = arith.constant 3 : index
    %c0_4 = arith.constant 0 : index
    %c0_5 = arith.constant 0 : index
    %4 = vector.load %arg1[%c3, %c0_4, %c0_5] : memref<32x8x96xf32, #tpu.memory_space<vmem>>, vector<1x8x96xf32>
    %5 = vector.shape_cast %4 : vector<1x8x96xf32> to vector<8x96xf32>
    %c5 = arith.constant 5 : index
    %c0_6 = arith.constant 0 : index
    %c0_7 = arith.constant 0 : index
    %6 = vector.load %arg1[%c5, %c0_6, %c0_7] : memref<32x8x96xf32, #tpu.memory_space<vmem>>, vector<1x8x96xf32>
    %7 = vector.shape_cast %6 : vector<1x8x96xf32> to vector<8x96xf32>
    %c7 = arith.constant 7 : index
    %c0_8 = arith.constant 0 : index
    %c0_9 = arith.constant 0 : index
    %8 = vector.load %arg1[%c7, %c0_8, %c0_9] : memref<32x8x96xf32, #tpu.memory_space<vmem>>, vector<1x8x96xf32>
    %9 = vector.shape_cast %8 : vector<1x8x96xf32> to vector<8x96xf32>
    %c9 = arith.constant 9 : index
    %c0_10 = arith.constant 0 : index
    %c0_11 = arith.constant 0 : index
    %10 = vector.load %arg1[%c9, %c0_10, %c0_11] : memref<32x8x96xf32, #tpu.memory_space<vmem>>, vector<1x8x96xf32>
    %11 = vector.shape_cast %10 : vector<1x8x96xf32> to vector<8x96xf32>
    %c11 = arith.constant 11 : index
    %c0_12 = arith.constant 0 : index
    %c0_13 = arith.constant 0 : index
    %12 = vector.load %arg1[%c11, %c0_12, %c0_13] : memref<32x8x96xf32, #tpu.memory_space<vmem>>, vector<1x8x96xf32>
    %13 = vector.shape_cast %12 : vector<1x8x96xf32> to vector<8x96xf32>
    %c13 = arith.constant 13 : index
    %c0_14 = arith.constant 0 : index
    %c0_15 = arith.constant 0 : index
    %14 = vector.load %arg1[%c13, %c0_14, %c0_15] : memref<32x8x96xf32, #tpu.memory_space<vmem>>, vector<1x8x96xf32>
    %15 = vector.shape_cast %14 : vector<1x8x96xf32> to vector<8x96xf32>
    %c15 = arith.constant 15 : index
    %c0_16 = arith.constant 0 : index
    %c0_17 = arith.constant 0 : index
    %16 = vector.load %arg1[%c15, %c0_16, %c0_17] : memref<32x8x96xf32, #tpu.memory_space<vmem>>, vector<1x8x96xf32>
    %17 = vector.shape_cast %16 : vector<1x8x96xf32> to vector<8x96xf32>
    %c17 = arith.constant 17 : index
    %c0_18 = arith.constant 0 : index
    %c0_19 = arith.constant 0 : index
    %18 = vector.load %arg1[%c17, %c0_18, %c0_19] : memref<32x8x96xf32, #tpu.memory_space<vmem>>, vector<1x8x96xf32>
    %19 = vector.shape_cast %18 : vector<1x8x96xf32> to vector<8x96xf32>
    %c19 = arith.constant 19 : index
    %c0_20 = arith.constant 0 : index
    %c0_21 = arith.constant 0 : index
    %20 = vector.load %arg1[%c19, %c0_20, %c0_21] : memref<32x8x96xf32, #tpu.memory_space<vmem>>, vector<1x8x96xf32>
    %21 = vector.shape_cast %20 : vector<1x8x96xf32> to vector<8x96xf32>
    %c21 = arith.constant 21 : index
    %c0_22 = arith.constant 0 : index
    %c0_23 = arith.constant 0 : index
    %22 = vector.load %arg1[%c21, %c0_22, %c0_23] : memref<32x8x96xf32, #tpu.memory_space<vmem>>, vector<1x8x96xf32>
    %23 = vector.shape_cast %22 : vector<1x8x96xf32> to vector<8x96xf32>
    %c23 = arith.constant 23 : index
    %c0_24 = arith.constant 0 : index
    %c0_25 = arith.constant 0 : index
    %24 = vector.load %arg1[%c23, %c0_24, %c0_25] : memref<32x8x96xf32, #tpu.memory_space<vmem>>, vector<1x8x96xf32>
    %25 = vector.shape_cast %24 : vector<1x8x96xf32> to vector<8x96xf32>
    %c25 = arith.constant 25 : index
    %c0_26 = arith.constant 0 : index
    %c0_27 = arith.constant 0 : index
    %26 = vector.load %arg1[%c25, %c0_26, %c0_27] : memref<32x8x96xf32, #tpu.memory_space<vmem>>, vector<1x8x96xf32>
    %27 = vector.shape_cast %26 : vector<1x8x96xf32> to vector<8x96xf32>
    %c27 = arith.constant 27 : index
    %c0_28 = arith.constant 0 : index
    %c0_29 = arith.constant 0 : index
    %28 = vector.load %arg1[%c27, %c0_28, %c0_29] : memref<32x8x96xf32, #tpu.memory_space<vmem>>, vector<1x8x96xf32>
    %29 = vector.shape_cast %28 : vector<1x8x96xf32> to vector<8x96xf32>
    %c29 = arith.constant 29 : index
    %c0_30 = arith.constant 0 : index
    %c0_31 = arith.constant 0 : index
    %30 = vector.load %arg1[%c29, %c0_30, %c0_31] : memref<32x8x96xf32, #tpu.memory_space<vmem>>, vector<1x8x96xf32>
    %31 = vector.shape_cast %30 : vector<1x8x96xf32> to vector<8x96xf32>
    %32 = tpu.concatenate %1, %3, %5, %7, %9, %11, %13, %15, %17, %19, %21, %23, %25, %27, %29, %31 in 0 : vector<8x96xf32>, vector<8x96xf32>, vector<8x96xf32>, vector<8x96xf32>, vector<8x96xf32>, vector<8x96xf32>, vector<8x96xf32>, vector<8x96xf32>, vector<8x96xf32>, vector<8x96xf32>, vector<8x96xf32>, vector<8x96xf32>, vector<8x96xf32>, vector<8x96xf32>, vector<8x96xf32>, vector<8x96xf32> -> vector<128x96xf32>
    %c0_32 = arith.constant 0 : index
    %c0_33 = arith.constant 0 : index
    %c0_34 = arith.constant 0 : index
    %33 = vector.load %arg2[%c0_32, %c0_33, %c0_34] : memref<4x96x128xf32, #tpu.memory_space<vmem>>, vector<1x96x128xf32>
    %34 = vector.shape_cast %33 : vector<1x96x128xf32> to vector<96x128xf32>
    %cst = arith.constant dense<0.000000e+00> : vector<128x128xf32>
    %35 = tpu.matmul %32, %34, %cst {dimension_numbers = #tpu.dot_dimension_numbers<[1], [0], [0], [1], [0, 0, 1, 1], [], []>} : vector<128x96xf32>, vector<96x128xf32>, vector<128x128xf32> -> vector<128x128xf32>
    %c0_35 = arith.constant 0 : index
    %c0_36 = arith.constant 0 : index
    %c0_37 = arith.constant 0 : index
    %36 = vector.load %arg1[%c0_35, %c0_36, %c0_37] : memref<32x8x96xf32, #tpu.memory_space<vmem>>, vector<1x8x96xf32>
    %37 = vector.shape_cast %36 : vector<1x8x96xf32> to vector<8x96xf32>
    %c2 = arith.constant 2 : index
    %c0_38 = arith.constant 0 : index
    %c0_39 = arith.constant 0 : index
    %38 = vector.load %arg1[%c2, %c0_38, %c0_39] : memref<32x8x96xf32, #tpu.memory_space<vmem>>, vector<1x8x96xf32>
    %39 = vector.shape_cast %38 : vector<1x8x96xf32> to vector<8x96xf32>
    %c4 = arith.constant 4 : index
    %c0_40 = arith.constant 0 : index
    %c0_41 = arith.constant 0 : index
    %40 = vector.load %arg1[%c4, %c0_40, %c0_41] : memref<32x8x96xf32, #tpu.memory_space<vmem>>, vector<1x8x96xf32>
    %41 = vector.shape_cast %40 : vector<1x8x96xf32> to vector<8x96xf32>
    %c6 = arith.constant 6 : index
    %c0_42 = arith.constant 0 : index
    %c0_43 = arith.constant 0 : index
    %42 = vector.load %arg1[%c6, %c0_42, %c0_43] : memref<32x8x96xf32, #tpu.memory_space<vmem>>, vector<1x8x96xf32>
    %43 = vector.shape_cast %42 : vector<1x8x96xf32> to vector<8x96xf32>
    %c8 = arith.constant 8 : index
    %c0_44 = arith.constant 0 : index
    %c0_45 = arith.constant 0 : index
    %44 = vector.load %arg1[%c8, %c0_44, %c0_45] : memref<32x8x96xf32, #tpu.memory_space<vmem>>, vector<1x8x96xf32>
    %45 = vector.shape_cast %44 : vector<1x8x96xf32> to vector<8x96xf32>
    %c10 = arith.constant 10 : index
    %c0_46 = arith.constant 0 : index
    %c0_47 = arith.constant 0 : index
    %46 = vector.load %arg1[%c10, %c0_46, %c0_47] : memref<32x8x96xf32, #tpu.memory_space<vmem>>, vector<1x8x96xf32>
    %47 = vector.shape_cast %46 : vector<1x8x96xf32> to vector<8x96xf32>
    %c12 = arith.constant 12 : index
    %c0_48 = arith.constant 0 : index
    %c0_49 = arith.constant 0 : index
    %48 = vector.load %arg1[%c12, %c0_48, %c0_49] : memref<32x8x96xf32, #tpu.memory_space<vmem>>, vector<1x8x96xf32>
    %49 = vector.shape_cast %48 : vector<1x8x96xf32> to vector<8x96xf32>
    %c14 = arith.constant 14 : index
    %c0_50 = arith.constant 0 : index
    %c0_51 = arith.constant 0 : index
    %50 = vector.load %arg1[%c14, %c0_50, %c0_51] : memref<32x8x96xf32, #tpu.memory_space<vmem>>, vector<1x8x96xf32>
    %51 = vector.shape_cast %50 : vector<1x8x96xf32> to vector<8x96xf32>
    %c16 = arith.constant 16 : index
    %c0_52 = arith.constant 0 : index
    %c0_53 = arith.constant 0 : index
    %52 = vector.load %arg1[%c16, %c0_52, %c0_53] : memref<32x8x96xf32, #tpu.memory_space<vmem>>, vector<1x8x96xf32>
    %53 = vector.shape_cast %52 : vector<1x8x96xf32> to vector<8x96xf32>
    %c18 = arith.constant 18 : index
    %c0_54 = arith.constant 0 : index
    %c0_55 = arith.constant 0 : index
    %54 = vector.load %arg1[%c18, %c0_54, %c0_55] : memref<32x8x96xf32, #tpu.memory_space<vmem>>, vector<1x8x96xf32>
    %55 = vector.shape_cast %54 : vector<1x8x96xf32> to vector<8x96xf32>
    %c20 = arith.constant 20 : index
    %c0_56 = arith.constant 0 : index
    %c0_57 = arith.constant 0 : index
    %56 = vector.load %arg1[%c20, %c0_56, %c0_57] : memref<32x8x96xf32, #tpu.memory_space<vmem>>, vector<1x8x96xf32>
    %57 = vector.shape_cast %56 : vector<1x8x96xf32> to vector<8x96xf32>
    %c22 = arith.constant 22 : index
    %c0_58 = arith.constant 0 : index
    %c0_59 = arith.constant 0 : index
    %58 = vector.load %arg1[%c22, %c0_58, %c0_59] : memref<32x8x96xf32, #tpu.memory_space<vmem>>, vector<1x8x96xf32>
    %59 = vector.shape_cast %58 : vector<1x8x96xf32> to vector<8x96xf32>
    %c24 = arith.constant 24 : index
    %c0_60 = arith.constant 0 : index
    %c0_61 = arith.constant 0 : index
    %60 = vector.load %arg1[%c24, %c0_60, %c0_61] : memref<32x8x96xf32, #tpu.memory_space<vmem>>, vector<1x8x96xf32>
    %61 = vector.shape_cast %60 : vector<1x8x96xf32> to vector<8x96xf32>
    %c26 = arith.constant 26 : index
    %c0_62 = arith.constant 0 : index
    %c0_63 = arith.constant 0 : index
    %62 = vector.load %arg1[%c26, %c0_62, %c0_63] : memref<32x8x96xf32, #tpu.memory_space<vmem>>, vector<1x8x96xf32>
    %63 = vector.shape_cast %62 : vector<1x8x96xf32> to vector<8x96xf32>
    %c28 = arith.constant 28 : index
    %c0_64 = arith.constant 0 : index
    %c0_65 = arith.constant 0 : index
    %64 = vector.load %arg1[%c28, %c0_64, %c0_65] : memref<32x8x96xf32, #tpu.memory_space<vmem>>, vector<1x8x96xf32>
    %65 = vector.shape_cast %64 : vector<1x8x96xf32> to vector<8x96xf32>
    %c30 = arith.constant 30 : index
    %c0_66 = arith.constant 0 : index
    %c0_67 = arith.constant 0 : index
    %66 = vector.load %arg1[%c30, %c0_66, %c0_67] : memref<32x8x96xf32, #tpu.memory_space<vmem>>, vector<1x8x96xf32>
    %67 = vector.shape_cast %66 : vector<1x8x96xf32> to vector<8x96xf32>
    %68 = tpu.concatenate %37, %39, %41, %43, %45, %47, %49, %51, %53, %55, %57, %59, %61, %63, %65, %67 in 0 : vector<8x96xf32>, vector<8x96xf32>, vector<8x96xf32>, vector<8x96xf32>, vector<8x96xf32>, vector<8x96xf32>, vector<8x96xf32>, vector<8x96xf32>, vector<8x96xf32>, vector<8x96xf32>, vector<8x96xf32>, vector<8x96xf32>, vector<8x96xf32>, vector<8x96xf32>, vector<8x96xf32>, vector<8x96xf32> -> vector<128x96xf32>
    %c1_68 = arith.constant 1 : index
    %c0_69 = arith.constant 0 : index
    %c0_70 = arith.constant 0 : index
    %69 = vector.load %arg2[%c1_68, %c0_69, %c0_70] : memref<4x96x128xf32, #tpu.memory_space<vmem>>, vector<1x96x128xf32>
    %70 = vector.shape_cast %69 : vector<1x96x128xf32> to vector<96x128xf32>
    %cst_71 = arith.constant dense<0.000000e+00> : vector<128x128xf32>
    %71 = tpu.matmul %68, %70, %cst_71 {dimension_numbers = #tpu.dot_dimension_numbers<[1], [0], [0], [1], [0, 0, 1, 1], [], []>} : vector<128x96xf32>, vector<96x128xf32>, vector<128x128xf32> -> vector<128x128xf32>
    %72 = arith.addf %35, %71 : vector<128x128xf32>
    %c1_72 = arith.constant 1 : index
    %c0_73 = arith.constant 0 : index
    %c0_74 = arith.constant 0 : index
    %73 = vector.load %arg1[%c1_72, %c0_73, %c0_74] : memref<32x8x96xf32, #tpu.memory_space<vmem>>, vector<1x8x96xf32>
    %74 = vector.shape_cast %73 : vector<1x8x96xf32> to vector<8x96xf32>
    %c3_75 = arith.constant 3 : index
    %c0_76 = arith.constant 0 : index
    %c0_77 = arith.constant 0 : index
    %75 = vector.load %arg1[%c3_75, %c0_76, %c0_77] : memref<32x8x96xf32, #tpu.memory_space<vmem>>, vector<1x8x96xf32>
    %76 = vector.shape_cast %75 : vector<1x8x96xf32> to vector<8x96xf32>
    %c5_78 = arith.constant 5 : index
    %c0_79 = arith.constant 0 : index
    %c0_80 = arith.constant 0 : index
    %77 = vector.load %arg1[%c5_78, %c0_79, %c0_80] : memref<32x8x96xf32, #tpu.memory_space<vmem>>, vector<1x8x96xf32>
    %78 = vector.shape_cast %77 : vector<1x8x96xf32> to vector<8x96xf32>
    %c7_81 = arith.constant 7 : index
    %c0_82 = arith.constant 0 : index
    %c0_83 = arith.constant 0 : index
    %79 = vector.load %arg1[%c7_81, %c0_82, %c0_83] : memref<32x8x96xf32, #tpu.memory_space<vmem>>, vector<1x8x96xf32>
    %80 = vector.shape_cast %79 : vector<1x8x96xf32> to vector<8x96xf32>
    %c9_84 = arith.constant 9 : index
    %c0_85 = arith.constant 0 : index
    %c0_86 = arith.constant 0 : index
    %81 = vector.load %arg1[%c9_84, %c0_85, %c0_86] : memref<32x8x96xf32, #tpu.memory_space<vmem>>, vector<1x8x96xf32>
    %82 = vector.shape_cast %81 : vector<1x8x96xf32> to vector<8x96xf32>
    %c11_87 = arith.constant 11 : index
    %c0_88 = arith.constant 0 : index
    %c0_89 = arith.constant 0 : index
    %83 = vector.load %arg1[%c11_87, %c0_88, %c0_89] : memref<32x8x96xf32, #tpu.memory_space<vmem>>, vector<1x8x96xf32>
    %84 = vector.shape_cast %83 : vector<1x8x96xf32> to vector<8x96xf32>
    %c13_90 = arith.constant 13 : index
    %c0_91 = arith.constant 0 : index
    %c0_92 = arith.constant 0 : index
    %85 = vector.load %arg1[%c13_90, %c0_91, %c0_92] : memref<32x8x96xf32, #tpu.memory_space<vmem>>, vector<1x8x96xf32>
    %86 = vector.shape_cast %85 : vector<1x8x96xf32> to vector<8x96xf32>
    %c15_93 = arith.constant 15 : index
    %c0_94 = arith.constant 0 : index
    %c0_95 = arith.constant 0 : index
    %87 = vector.load %arg1[%c15_93, %c0_94, %c0_95] : memref<32x8x96xf32, #tpu.memory_space<vmem>>, vector<1x8x96xf32>
    %88 = vector.shape_cast %87 : vector<1x8x96xf32> to vector<8x96xf32>
    %c17_96 = arith.constant 17 : index
    %c0_97 = arith.constant 0 : index
    %c0_98 = arith.constant 0 : index
    %89 = vector.load %arg1[%c17_96, %c0_97, %c0_98] : memref<32x8x96xf32, #tpu.memory_space<vmem>>, vector<1x8x96xf32>
    %90 = vector.shape_cast %89 : vector<1x8x96xf32> to vector<8x96xf32>
    %c19_99 = arith.constant 19 : index
    %c0_100 = arith.constant 0 : index
    %c0_101 = arith.constant 0 : index
    %91 = vector.load %arg1[%c19_99, %c0_100, %c0_101] : memref<32x8x96xf32, #tpu.memory_space<vmem>>, vector<1x8x96xf32>
    %92 = vector.shape_cast %91 : vector<1x8x96xf32> to vector<8x96xf32>
    %c21_102 = arith.constant 21 : index
    %c0_103 = arith.constant 0 : index
    %c0_104 = arith.constant 0 : index
    %93 = vector.load %arg1[%c21_102, %c0_103, %c0_104] : memref<32x8x96xf32, #tpu.memory_space<vmem>>, vector<1x8x96xf32>
    %94 = vector.shape_cast %93 : vector<1x8x96xf32> to vector<8x96xf32>
    %c23_105 = arith.constant 23 : index
    %c0_106 = arith.constant 0 : index
    %c0_107 = arith.constant 0 : index
    %95 = vector.load %arg1[%c23_105, %c0_106, %c0_107] : memref<32x8x96xf32, #tpu.memory_space<vmem>>, vector<1x8x96xf32>
    %96 = vector.shape_cast %95 : vector<1x8x96xf32> to vector<8x96xf32>
    %c25_108 = arith.constant 25 : index
    %c0_109 = arith.constant 0 : index
    %c0_110 = arith.constant 0 : index
    %97 = vector.load %arg1[%c25_108, %c0_109, %c0_110] : memref<32x8x96xf32, #tpu.memory_space<vmem>>, vector<1x8x96xf32>
    %98 = vector.shape_cast %97 : vector<1x8x96xf32> to vector<8x96xf32>
    %c27_111 = arith.constant 27 : index
    %c0_112 = arith.constant 0 : index
    %c0_113 = arith.constant 0 : index
    %99 = vector.load %arg1[%c27_111, %c0_112, %c0_113] : memref<32x8x96xf32, #tpu.memory_space<vmem>>, vector<1x8x96xf32>
    %100 = vector.shape_cast %99 : vector<1x8x96xf32> to vector<8x96xf32>
    %c29_114 = arith.constant 29 : index
    %c0_115 = arith.constant 0 : index
    %c0_116 = arith.constant 0 : index
    %101 = vector.load %arg1[%c29_114, %c0_115, %c0_116] : memref<32x8x96xf32, #tpu.memory_space<vmem>>, vector<1x8x96xf32>
    %102 = vector.shape_cast %101 : vector<1x8x96xf32> to vector<8x96xf32>
    %c31 = arith.constant 31 : index
    %c0_117 = arith.constant 0 : index
    %c0_118 = arith.constant 0 : index
    %103 = vector.load %arg1[%c31, %c0_117, %c0_118] : memref<32x8x96xf32, #tpu.memory_space<vmem>>, vector<1x8x96xf32>
    %104 = vector.shape_cast %103 : vector<1x8x96xf32> to vector<8x96xf32>
    %105 = tpu.concatenate %74, %76, %78, %80, %82, %84, %86, %88, %90, %92, %94, %96, %98, %100, %102, %104 in 0 : vector<8x96xf32>, vector<8x96xf32>, vector<8x96xf32>, vector<8x96xf32>, vector<8x96xf32>, vector<8x96xf32>, vector<8x96xf32>, vector<8x96xf32>, vector<8x96xf32>, vector<8x96xf32>, vector<8x96xf32>, vector<8x96xf32>, vector<8x96xf32>, vector<8x96xf32>, vector<8x96xf32>, vector<8x96xf32> -> vector<128x96xf32>
    %c2_119 = arith.constant 2 : index
    %c0_120 = arith.constant 0 : index
    %c0_121 = arith.constant 0 : index
    %106 = vector.load %arg2[%c2_119, %c0_120, %c0_121] : memref<4x96x128xf32, #tpu.memory_space<vmem>>, vector<1x96x128xf32>
    %107 = vector.shape_cast %106 : vector<1x96x128xf32> to vector<96x128xf32>
    %cst_122 = arith.constant dense<0.000000e+00> : vector<128x128xf32>
    %108 = tpu.matmul %105, %107, %cst_122 {dimension_numbers = #tpu.dot_dimension_numbers<[1], [0], [0], [1], [0, 0, 1, 1], [], []>} : vector<128x96xf32>, vector<96x128xf32>, vector<128x128xf32> -> vector<128x128xf32>
    %109 = arith.addf %72, %108 : vector<128x128xf32>
    %c2_123 = arith.constant 2 : index
    %c0_124 = arith.constant 0 : index
    %c0_125 = arith.constant 0 : index
    %110 = vector.load %arg1[%c2_123, %c0_124, %c0_125] : memref<32x8x96xf32, #tpu.memory_space<vmem>>, vector<1x8x96xf32>
    %111 = vector.shape_cast %110 : vector<1x8x96xf32> to vector<8x96xf32>
    %c4_126 = arith.constant 4 : index
    %c0_127 = arith.constant 0 : index
    %c0_128 = arith.constant 0 : index
    %112 = vector.load %arg1[%c4_126, %c0_127, %c0_128] : memref<32x8x96xf32, #tpu.memory_space<vmem>>, vector<1x8x96xf32>
    %113 = vector.shape_cast %112 : vector<1x8x96xf32> to vector<8x96xf32>
    %c6_129 = arith.constant 6 : index
    %c0_130 = arith.constant 0 : index
    %c0_131 = arith.constant 0 : index
    %114 = vector.load %arg1[%c6_129, %c0_130, %c0_131] : memref<32x8x96xf32, #tpu.memory_space<vmem>>, vector<1x8x96xf32>
    %115 = vector.shape_cast %114 : vector<1x8x96xf32> to vector<8x96xf32>
    %c8_132 = arith.constant 8 : index
    %c0_133 = arith.constant 0 : index
    %c0_134 = arith.constant 0 : index
    %116 = vector.load %arg1[%c8_132, %c0_133, %c0_134] : memref<32x8x96xf32, #tpu.memory_space<vmem>>, vector<1x8x96xf32>
    %117 = vector.shape_cast %116 : vector<1x8x96xf32> to vector<8x96xf32>
    %c10_135 = arith.constant 10 : index
    %c0_136 = arith.constant 0 : index
    %c0_137 = arith.constant 0 : index
    %118 = vector.load %arg1[%c10_135, %c0_136, %c0_137] : memref<32x8x96xf32, #tpu.memory_space<vmem>>, vector<1x8x96xf32>
    %119 = vector.shape_cast %118 : vector<1x8x96xf32> to vector<8x96xf32>
    %c12_138 = arith.constant 12 : index
    %c0_139 = arith.constant 0 : index
    %c0_140 = arith.constant 0 : index
    %120 = vector.load %arg1[%c12_138, %c0_139, %c0_140] : memref<32x8x96xf32, #tpu.memory_space<vmem>>, vector<1x8x96xf32>
    %121 = vector.shape_cast %120 : vector<1x8x96xf32> to vector<8x96xf32>
    %c14_141 = arith.constant 14 : index
    %c0_142 = arith.constant 0 : index
    %c0_143 = arith.constant 0 : index
    %122 = vector.load %arg1[%c14_141, %c0_142, %c0_143] : memref<32x8x96xf32, #tpu.memory_space<vmem>>, vector<1x8x96xf32>
    %123 = vector.shape_cast %122 : vector<1x8x96xf32> to vector<8x96xf32>
    %c16_144 = arith.constant 16 : index
    %c0_145 = arith.constant 0 : index
    %c0_146 = arith.constant 0 : index
    %124 = vector.load %arg1[%c16_144, %c0_145, %c0_146] : memref<32x8x96xf32, #tpu.memory_space<vmem>>, vector<1x8x96xf32>
    %125 = vector.shape_cast %124 : vector<1x8x96xf32> to vector<8x96xf32>
    %c18_147 = arith.constant 18 : index
    %c0_148 = arith.constant 0 : index
    %c0_149 = arith.constant 0 : index
    %126 = vector.load %arg1[%c18_147, %c0_148, %c0_149] : memref<32x8x96xf32, #tpu.memory_space<vmem>>, vector<1x8x96xf32>
    %127 = vector.shape_cast %126 : vector<1x8x96xf32> to vector<8x96xf32>
    %c20_150 = arith.constant 20 : index
    %c0_151 = arith.constant 0 : index
    %c0_152 = arith.constant 0 : index
    %128 = vector.load %arg1[%c20_150, %c0_151, %c0_152] : memref<32x8x96xf32, #tpu.memory_space<vmem>>, vector<1x8x96xf32>
    %129 = vector.shape_cast %128 : vector<1x8x96xf32> to vector<8x96xf32>
    %c22_153 = arith.constant 22 : index
    %c0_154 = arith.constant 0 : index
    %c0_155 = arith.constant 0 : index
    %130 = vector.load %arg1[%c22_153, %c0_154, %c0_155] : memref<32x8x96xf32, #tpu.memory_space<vmem>>, vector<1x8x96xf32>
    %131 = vector.shape_cast %130 : vector<1x8x96xf32> to vector<8x96xf32>
    %c24_156 = arith.constant 24 : index
    %c0_157 = arith.constant 0 : index
    %c0_158 = arith.constant 0 : index
    %132 = vector.load %arg1[%c24_156, %c0_157, %c0_158] : memref<32x8x96xf32, #tpu.memory_space<vmem>>, vector<1x8x96xf32>
    %133 = vector.shape_cast %132 : vector<1x8x96xf32> to vector<8x96xf32>
    %c26_159 = arith.constant 26 : index
    %c0_160 = arith.constant 0 : index
    %c0_161 = arith.constant 0 : index
    %134 = vector.load %arg1[%c26_159, %c0_160, %c0_161] : memref<32x8x96xf32, #tpu.memory_space<vmem>>, vector<1x8x96xf32>
    %135 = vector.shape_cast %134 : vector<1x8x96xf32> to vector<8x96xf32>
    %c28_162 = arith.constant 28 : index
    %c0_163 = arith.constant 0 : index
    %c0_164 = arith.constant 0 : index
    %136 = vector.load %arg1[%c28_162, %c0_163, %c0_164] : memref<32x8x96xf32, #tpu.memory_space<vmem>>, vector<1x8x96xf32>
    %137 = vector.shape_cast %136 : vector<1x8x96xf32> to vector<8x96xf32>
    %c30_165 = arith.constant 30 : index
    %c0_166 = arith.constant 0 : index
    %c0_167 = arith.constant 0 : index
    %138 = vector.load %arg1[%c30_165, %c0_166, %c0_167] : memref<32x8x96xf32, #tpu.memory_space<vmem>>, vector<1x8x96xf32>
    %139 = vector.shape_cast %138 : vector<1x8x96xf32> to vector<8x96xf32>
    %c30_168 = arith.constant 30 : index
    %c0_169 = arith.constant 0 : index
    %c0_170 = arith.constant 0 : index
    %140 = vector.load %arg1[%c30_168, %c0_169, %c0_170] : memref<32x8x96xf32, #tpu.memory_space<vmem>>, vector<1x8x96xf32>
    %141 = vector.shape_cast %140 : vector<1x8x96xf32> to vector<8x96xf32>
    %142 = tpu.concatenate %111, %113, %115, %117, %119, %121, %123, %125, %127, %129, %131, %133, %135, %137, %139, %141 in 0 : vector<8x96xf32>, vector<8x96xf32>, vector<8x96xf32>, vector<8x96xf32>, vector<8x96xf32>, vector<8x96xf32>, vector<8x96xf32>, vector<8x96xf32>, vector<8x96xf32>, vector<8x96xf32>, vector<8x96xf32>, vector<8x96xf32>, vector<8x96xf32>, vector<8x96xf32>, vector<8x96xf32>, vector<8x96xf32> -> vector<128x96xf32>
    %c3_171 = arith.constant 3 : index
    %c0_172 = arith.constant 0 : index
    %c0_173 = arith.constant 0 : index
    %143 = vector.load %arg2[%c3_171, %c0_172, %c0_173] : memref<4x96x128xf32, #tpu.memory_space<vmem>>, vector<1x96x128xf32>
    %144 = vector.shape_cast %143 : vector<1x96x128xf32> to vector<96x128xf32>
    %cst_174 = arith.constant dense<0.000000e+00> : vector<128x128xf32>
    %145 = tpu.matmul %142, %144, %cst_174 {dimension_numbers = #tpu.dot_dimension_numbers<[1], [0], [0], [1], [0, 0, 1, 1], [], []>} : vector<128x96xf32>, vector<96x128xf32>, vector<128x128xf32> -> vector<128x128xf32>
    %146 = arith.addf %109, %145 : vector<128x128xf32>
    %c0_175 = arith.constant 0 : index
    %c0_176 = arith.constant 0 : index
    %147 = vector.load %arg3[%c0_175, %c0_176] : memref<1x128xf32, #tpu.memory_space<vmem>>, vector<1x128xf32>
    %148 = vector.broadcast %147 : vector<1x128xf32> to vector<128x128xf32>
    %149 = arith.addf %146, %148 : vector<128x128xf32>
    %cst_177 = arith.constant 2.000000e-01 : f32
    %150 = vector.broadcast %cst_177 : f32 to vector<128x128xf32>
    %151 = arith.mulf %150, %149 : vector<128x128xf32>
    %152 = arith.maximumf %149, %151 : vector<128x128xf32>
    %153 = vector.extract_strided_slice %152 {offsets = [8, 0], sizes = [8, 128], strides = [1, 1]} : vector<128x128xf32> to vector<8x128xf32>
    %154 = vector.extract_strided_slice %152 {offsets = [8, 0], sizes = [8, 128], strides = [1, 1]} : vector<128x128xf32> to vector<8x128xf32>
    %155 = vector.extract_strided_slice %152 {offsets = [24, 0], sizes = [8, 128], strides = [1, 1]} : vector<128x128xf32> to vector<8x128xf32>
    %156 = vector.extract_strided_slice %152 {offsets = [40, 0], sizes = [8, 128], strides = [1, 1]} : vector<128x128xf32> to vector<8x128xf32>
    %157 = vector.extract_strided_slice %152 {offsets = [56, 0], sizes = [8, 128], strides = [1, 1]} : vector<128x128xf32> to vector<8x128xf32>
    %158 = vector.extract_strided_slice %152 {offsets = [72, 0], sizes = [8, 128], strides = [1, 1]} : vector<128x128xf32> to vector<8x128xf32>
    %159 = vector.extract_strided_slice %152 {offsets = [88, 0], sizes = [8, 128], strides = [1, 1]} : vector<128x128xf32> to vector<8x128xf32>
    %160 = vector.extract_strided_slice %152 {offsets = [104, 0], sizes = [8, 128], strides = [1, 1]} : vector<128x128xf32> to vector<8x128xf32>
    %161 = tpu.concatenate %153, %154, %155, %156, %157, %158, %159, %160 in 0 : vector<8x128xf32>, vector<8x128xf32>, vector<8x128xf32>, vector<8x128xf32>, vector<8x128xf32>, vector<8x128xf32>, vector<8x128xf32>, vector<8x128xf32> -> vector<64x128xf32>
    %c0_178 = arith.constant 0 : index
    %c0_179 = arith.constant 0 : index
    %c0_180 = arith.constant 0 : index
    %162 = vector.load %arg4[%c0_178, %c0_179, %c0_180] : memref<4x128x128xf32, #tpu.memory_space<vmem>>, vector<1x128x128xf32>
    %163 = vector.shape_cast %162 : vector<1x128x128xf32> to vector<128x128xf32>
    %cst_181 = arith.constant dense<0.000000e+00> : vector<64x128xf32>
    %164 = tpu.matmul %161, %163, %cst_181 {dimension_numbers = #tpu.dot_dimension_numbers<[1], [0], [0], [1], [0, 0, 1, 1], [], []>} : vector<64x128xf32>, vector<128x128xf32>, vector<64x128xf32> -> vector<64x128xf32>
    %165 = vector.extract_strided_slice %152 {offsets = [0, 0], sizes = [8, 128], strides = [1, 1]} : vector<128x128xf32> to vector<8x128xf32>
    %166 = vector.extract_strided_slice %152 {offsets = [16, 0], sizes = [8, 128], strides = [1, 1]} : vector<128x128xf32> to vector<8x128xf32>
    %167 = vector.extract_strided_slice %152 {offsets = [32, 0], sizes = [8, 128], strides = [1, 1]} : vector<128x128xf32> to vector<8x128xf32>
    %168 = vector.extract_strided_slice %152 {offsets = [48, 0], sizes = [8, 128], strides = [1, 1]} : vector<128x128xf32> to vector<8x128xf32>
    %169 = vector.extract_strided_slice %152 {offsets = [64, 0], sizes = [8, 128], strides = [1, 1]} : vector<128x128xf32> to vector<8x128xf32>
    %170 = vector.extract_strided_slice %152 {offsets = [80, 0], sizes = [8, 128], strides = [1, 1]} : vector<128x128xf32> to vector<8x128xf32>
    %171 = vector.extract_strided_slice %152 {offsets = [96, 0], sizes = [8, 128], strides = [1, 1]} : vector<128x128xf32> to vector<8x128xf32>
    %172 = vector.extract_strided_slice %152 {offsets = [112, 0], sizes = [8, 128], strides = [1, 1]} : vector<128x128xf32> to vector<8x128xf32>
    %173 = tpu.concatenate %165, %166, %167, %168, %169, %170, %171, %172 in 0 : vector<8x128xf32>, vector<8x128xf32>, vector<8x128xf32>, vector<8x128xf32>, vector<8x128xf32>, vector<8x128xf32>, vector<8x128xf32>, vector<8x128xf32> -> vector<64x128xf32>
    %c1_182 = arith.constant 1 : index
    %c0_183 = arith.constant 0 : index
    %c0_184 = arith.constant 0 : index
    %174 = vector.load %arg4[%c1_182, %c0_183, %c0_184] : memref<4x128x128xf32, #tpu.memory_space<vmem>>, vector<1x128x128xf32>
    %175 = vector.shape_cast %174 : vector<1x128x128xf32> to vector<128x128xf32>
    %cst_185 = arith.constant dense<0.000000e+00> : vector<64x128xf32>
    %176 = tpu.matmul %173, %175, %cst_185 {dimension_numbers = #tpu.dot_dimension_numbers<[1], [0], [0], [1], [0, 0, 1, 1], [], []>} : vector<64x128xf32>, vector<128x128xf32>, vector<64x128xf32> -> vector<64x128xf32>
    %177 = arith.addf %164, %176 : vector<64x128xf32>
    %178 = vector.extract_strided_slice %152 {offsets = [8, 0], sizes = [8, 128], strides = [1, 1]} : vector<128x128xf32> to vector<8x128xf32>
    %179 = vector.extract_strided_slice %152 {offsets = [24, 0], sizes = [8, 128], strides = [1, 1]} : vector<128x128xf32> to vector<8x128xf32>
    %180 = vector.extract_strided_slice %152 {offsets = [40, 0], sizes = [8, 128], strides = [1, 1]} : vector<128x128xf32> to vector<8x128xf32>
    %181 = vector.extract_strided_slice %152 {offsets = [56, 0], sizes = [8, 128], strides = [1, 1]} : vector<128x128xf32> to vector<8x128xf32>
    %182 = vector.extract_strided_slice %152 {offsets = [72, 0], sizes = [8, 128], strides = [1, 1]} : vector<128x128xf32> to vector<8x128xf32>
    %183 = vector.extract_strided_slice %152 {offsets = [88, 0], sizes = [8, 128], strides = [1, 1]} : vector<128x128xf32> to vector<8x128xf32>
    %184 = vector.extract_strided_slice %152 {offsets = [104, 0], sizes = [8, 128], strides = [1, 1]} : vector<128x128xf32> to vector<8x128xf32>
    %185 = vector.extract_strided_slice %152 {offsets = [120, 0], sizes = [8, 128], strides = [1, 1]} : vector<128x128xf32> to vector<8x128xf32>
    %186 = tpu.concatenate %178, %179, %180, %181, %182, %183, %184, %185 in 0 : vector<8x128xf32>, vector<8x128xf32>, vector<8x128xf32>, vector<8x128xf32>, vector<8x128xf32>, vector<8x128xf32>, vector<8x128xf32>, vector<8x128xf32> -> vector<64x128xf32>
    %c2_186 = arith.constant 2 : index
    %c0_187 = arith.constant 0 : index
    %c0_188 = arith.constant 0 : index
    %187 = vector.load %arg4[%c2_186, %c0_187, %c0_188] : memref<4x128x128xf32, #tpu.memory_space<vmem>>, vector<1x128x128xf32>
    %188 = vector.shape_cast %187 : vector<1x128x128xf32> to vector<128x128xf32>
    %cst_189 = arith.constant dense<0.000000e+00> : vector<64x128xf32>
    %189 = tpu.matmul %186, %188, %cst_189 {dimension_numbers = #tpu.dot_dimension_numbers<[1], [0], [0], [1], [0, 0, 1, 1], [], []>} : vector<64x128xf32>, vector<128x128xf32>, vector<64x128xf32> -> vector<64x128xf32>
    %190 = arith.addf %177, %189 : vector<64x128xf32>
    %191 = vector.extract_strided_slice %152 {offsets = [16, 0], sizes = [8, 128], strides = [1, 1]} : vector<128x128xf32> to vector<8x128xf32>
    %192 = vector.extract_strided_slice %152 {offsets = [32, 0], sizes = [8, 128], strides = [1, 1]} : vector<128x128xf32> to vector<8x128xf32>
    %193 = vector.extract_strided_slice %152 {offsets = [48, 0], sizes = [8, 128], strides = [1, 1]} : vector<128x128xf32> to vector<8x128xf32>
    %194 = vector.extract_strided_slice %152 {offsets = [64, 0], sizes = [8, 128], strides = [1, 1]} : vector<128x128xf32> to vector<8x128xf32>
    %195 = vector.extract_strided_slice %152 {offsets = [80, 0], sizes = [8, 128], strides = [1, 1]} : vector<128x128xf32> to vector<8x128xf32>
    %196 = vector.extract_strided_slice %152 {offsets = [96, 0], sizes = [8, 128], strides = [1, 1]} : vector<128x128xf32> to vector<8x128xf32>
    %197 = vector.extract_strided_slice %152 {offsets = [112, 0], sizes = [8, 128], strides = [1, 1]} : vector<128x128xf32> to vector<8x128xf32>
    %198 = vector.extract_strided_slice %152 {offsets = [112, 0], sizes = [8, 128], strides = [1, 1]} : vector<128x128xf32> to vector<8x128xf32>
    %199 = tpu.concatenate %191, %192, %193, %194, %195, %196, %197, %198 in 0 : vector<8x128xf32>, vector<8x128xf32>, vector<8x128xf32>, vector<8x128xf32>, vector<8x128xf32>, vector<8x128xf32>, vector<8x128xf32>, vector<8x128xf32> -> vector<64x128xf32>
    %c3_190 = arith.constant 3 : index
    %c0_191 = arith.constant 0 : index
    %c0_192 = arith.constant 0 : index
    %200 = vector.load %arg4[%c3_190, %c0_191, %c0_192] : memref<4x128x128xf32, #tpu.memory_space<vmem>>, vector<1x128x128xf32>
    %201 = vector.shape_cast %200 : vector<1x128x128xf32> to vector<128x128xf32>
    %cst_193 = arith.constant dense<0.000000e+00> : vector<64x128xf32>
    %202 = tpu.matmul %199, %201, %cst_193 {dimension_numbers = #tpu.dot_dimension_numbers<[1], [0], [0], [1], [0, 0, 1, 1], [], []>} : vector<64x128xf32>, vector<128x128xf32>, vector<64x128xf32> -> vector<64x128xf32>
    %203 = arith.addf %190, %202 : vector<64x128xf32>
    %c0_194 = arith.constant 0 : index
    %c0_195 = arith.constant 0 : index
    %204 = vector.load %arg5[%c0_194, %c0_195] : memref<1x128xf32, #tpu.memory_space<vmem>>, vector<1x128xf32>
    %205 = vector.broadcast %204 : vector<1x128xf32> to vector<64x128xf32>
    %206 = arith.addf %203, %205 : vector<64x128xf32>
    %cst_196 = arith.constant 2.000000e-01 : f32
    %207 = vector.broadcast %cst_196 : f32 to vector<64x128xf32>
    %208 = arith.mulf %207, %206 : vector<64x128xf32>
    %209 = arith.maximumf %206, %208 : vector<64x128xf32>
    %210 = vector.extract_strided_slice %209 {offsets = [8, 0], sizes = [8, 128], strides = [1, 1]} : vector<64x128xf32> to vector<8x128xf32>
    %211 = vector.extract_strided_slice %209 {offsets = [8, 0], sizes = [8, 128], strides = [1, 1]} : vector<64x128xf32> to vector<8x128xf32>
    %212 = vector.extract_strided_slice %209 {offsets = [24, 0], sizes = [8, 128], strides = [1, 1]} : vector<64x128xf32> to vector<8x128xf32>
    %213 = vector.extract_strided_slice %209 {offsets = [40, 0], sizes = [8, 128], strides = [1, 1]} : vector<64x128xf32> to vector<8x128xf32>
    %214 = tpu.concatenate %210, %211, %212, %213 in 0 : vector<8x128xf32>, vector<8x128xf32>, vector<8x128xf32>, vector<8x128xf32> -> vector<32x128xf32>
    %c0_197 = arith.constant 0 : index
    %c0_198 = arith.constant 0 : index
    %c0_199 = arith.constant 0 : index
    %215 = vector.load %arg6[%c0_197, %c0_198, %c0_199] : memref<4x128x128xf32, #tpu.memory_space<vmem>>, vector<1x128x128xf32>
    %216 = vector.shape_cast %215 : vector<1x128x128xf32> to vector<128x128xf32>
    %cst_200 = arith.constant dense<0.000000e+00> : vector<32x128xf32>
    %217 = tpu.matmul %214, %216, %cst_200 {dimension_numbers = #tpu.dot_dimension_numbers<[1], [0], [0], [1], [0, 0, 1, 1], [], []>} : vector<32x128xf32>, vector<128x128xf32>, vector<32x128xf32> -> vector<32x128xf32>
    %218 = vector.extract_strided_slice %209 {offsets = [0, 0], sizes = [8, 128], strides = [1, 1]} : vector<64x128xf32> to vector<8x128xf32>
    %219 = vector.extract_strided_slice %209 {offsets = [16, 0], sizes = [8, 128], strides = [1, 1]} : vector<64x128xf32> to vector<8x128xf32>
    %220 = vector.extract_strided_slice %209 {offsets = [32, 0], sizes = [8, 128], strides = [1, 1]} : vector<64x128xf32> to vector<8x128xf32>
    %221 = vector.extract_strided_slice %209 {offsets = [48, 0], sizes = [8, 128], strides = [1, 1]} : vector<64x128xf32> to vector<8x128xf32>
    %222 = tpu.concatenate %218, %219, %220, %221 in 0 : vector<8x128xf32>, vector<8x128xf32>, vector<8x128xf32>, vector<8x128xf32> -> vector<32x128xf32>
    %c1_201 = arith.constant 1 : index
    %c0_202 = arith.constant 0 : index
    %c0_203 = arith.constant 0 : index
    %223 = vector.load %arg6[%c1_201, %c0_202, %c0_203] : memref<4x128x128xf32, #tpu.memory_space<vmem>>, vector<1x128x128xf32>
    %224 = vector.shape_cast %223 : vector<1x128x128xf32> to vector<128x128xf32>
    %cst_204 = arith.constant dense<0.000000e+00> : vector<32x128xf32>
    %225 = tpu.matmul %222, %224, %cst_204 {dimension_numbers = #tpu.dot_dimension_numbers<[1], [0], [0], [1], [0, 0, 1, 1], [], []>} : vector<32x128xf32>, vector<128x128xf32>, vector<32x128xf32> -> vector<32x128xf32>
    %226 = arith.addf %217, %225 : vector<32x128xf32>
    %227 = vector.extract_strided_slice %209 {offsets = [8, 0], sizes = [8, 128], strides = [1, 1]} : vector<64x128xf32> to vector<8x128xf32>
    %228 = vector.extract_strided_slice %209 {offsets = [24, 0], sizes = [8, 128], strides = [1, 1]} : vector<64x128xf32> to vector<8x128xf32>
    %229 = vector.extract_strided_slice %209 {offsets = [40, 0], sizes = [8, 128], strides = [1, 1]} : vector<64x128xf32> to vector<8x128xf32>
    %230 = vector.extract_strided_slice %209 {offsets = [56, 0], sizes = [8, 128], strides = [1, 1]} : vector<64x128xf32> to vector<8x128xf32>
    %231 = tpu.concatenate %227, %228, %229, %230 in 0 : vector<8x128xf32>, vector<8x128xf32>, vector<8x128xf32>, vector<8x128xf32> -> vector<32x128xf32>
    %c2_205 = arith.constant 2 : index
    %c0_206 = arith.constant 0 : index
    %c0_207 = arith.constant 0 : index
    %232 = vector.load %arg6[%c2_205, %c0_206, %c0_207] : memref<4x128x128xf32, #tpu.memory_space<vmem>>, vector<1x128x128xf32>
    %233 = vector.shape_cast %232 : vector<1x128x128xf32> to vector<128x128xf32>
    %cst_208 = arith.constant dense<0.000000e+00> : vector<32x128xf32>
    %234 = tpu.matmul %231, %233, %cst_208 {dimension_numbers = #tpu.dot_dimension_numbers<[1], [0], [0], [1], [0, 0, 1, 1], [], []>} : vector<32x128xf32>, vector<128x128xf32>, vector<32x128xf32> -> vector<32x128xf32>
    %235 = arith.addf %226, %234 : vector<32x128xf32>
    %236 = vector.extract_strided_slice %209 {offsets = [16, 0], sizes = [8, 128], strides = [1, 1]} : vector<64x128xf32> to vector<8x128xf32>
    %237 = vector.extract_strided_slice %209 {offsets = [32, 0], sizes = [8, 128], strides = [1, 1]} : vector<64x128xf32> to vector<8x128xf32>
    %238 = vector.extract_strided_slice %209 {offsets = [48, 0], sizes = [8, 128], strides = [1, 1]} : vector<64x128xf32> to vector<8x128xf32>
    %239 = vector.extract_strided_slice %209 {offsets = [48, 0], sizes = [8, 128], strides = [1, 1]} : vector<64x128xf32> to vector<8x128xf32>
    %240 = tpu.concatenate %236, %237, %238, %239 in 0 : vector<8x128xf32>, vector<8x128xf32>, vector<8x128xf32>, vector<8x128xf32> -> vector<32x128xf32>
    %c3_209 = arith.constant 3 : index
    %c0_210 = arith.constant 0 : index
    %c0_211 = arith.constant 0 : index
    %241 = vector.load %arg6[%c3_209, %c0_210, %c0_211] : memref<4x128x128xf32, #tpu.memory_space<vmem>>, vector<1x128x128xf32>
    %242 = vector.shape_cast %241 : vector<1x128x128xf32> to vector<128x128xf32>
    %cst_212 = arith.constant dense<0.000000e+00> : vector<32x128xf32>
    %243 = tpu.matmul %240, %242, %cst_212 {dimension_numbers = #tpu.dot_dimension_numbers<[1], [0], [0], [1], [0, 0, 1, 1], [], []>} : vector<32x128xf32>, vector<128x128xf32>, vector<32x128xf32> -> vector<32x128xf32>
    %244 = arith.addf %235, %243 : vector<32x128xf32>
    %c0_213 = arith.constant 0 : index
    %c0_214 = arith.constant 0 : index
    %245 = vector.load %arg7[%c0_213, %c0_214] : memref<1x128xf32, #tpu.memory_space<vmem>>, vector<1x128xf32>
    %246 = vector.broadcast %245 : vector<1x128xf32> to vector<32x128xf32>
    %247 = arith.addf %244, %246 : vector<32x128xf32>
    %cst_215 = arith.constant 2.000000e-01 : f32
    %248 = vector.broadcast %cst_215 : f32 to vector<32x128xf32>
    %249 = arith.mulf %248, %247 : vector<32x128xf32>
    %250 = arith.maximumf %247, %249 : vector<32x128xf32>
    %251 = vector.extract_strided_slice %250 {offsets = [8, 0], sizes = [8, 128], strides = [1, 1]} : vector<32x128xf32> to vector<8x128xf32>
    %252 = vector.extract_strided_slice %250 {offsets = [8, 0], sizes = [8, 128], strides = [1, 1]} : vector<32x128xf32> to vector<8x128xf32>
    %253 = tpu.concatenate %251, %252 in 0 : vector<8x128xf32>, vector<8x128xf32> -> vector<16x128xf32>
    %c0_216 = arith.constant 0 : index
    %c0_217 = arith.constant 0 : index
    %c0_218 = arith.constant 0 : index
    %254 = vector.load %arg8[%c0_216, %c0_217, %c0_218] : memref<4x128x128xf32, #tpu.memory_space<vmem>>, vector<1x128x128xf32>
    %255 = vector.shape_cast %254 : vector<1x128x128xf32> to vector<128x128xf32>
    %cst_219 = arith.constant dense<0.000000e+00> : vector<16x128xf32>
    %256 = tpu.matmul %253, %255, %cst_219 {dimension_numbers = #tpu.dot_dimension_numbers<[1], [0], [0], [1], [0, 0, 1, 1], [], []>} : vector<16x128xf32>, vector<128x128xf32>, vector<16x128xf32> -> vector<16x128xf32>
    %257 = vector.extract_strided_slice %250 {offsets = [0, 0], sizes = [8, 128], strides = [1, 1]} : vector<32x128xf32> to vector<8x128xf32>
    %258 = vector.extract_strided_slice %250 {offsets = [16, 0], sizes = [8, 128], strides = [1, 1]} : vector<32x128xf32> to vector<8x128xf32>
    %259 = tpu.concatenate %257, %258 in 0 : vector<8x128xf32>, vector<8x128xf32> -> vector<16x128xf32>
    %c1_220 = arith.constant 1 : index
    %c0_221 = arith.constant 0 : index
    %c0_222 = arith.constant 0 : index
    %260 = vector.load %arg8[%c1_220, %c0_221, %c0_222] : memref<4x128x128xf32, #tpu.memory_space<vmem>>, vector<1x128x128xf32>
    %261 = vector.shape_cast %260 : vector<1x128x128xf32> to vector<128x128xf32>
    %cst_223 = arith.constant dense<0.000000e+00> : vector<16x128xf32>
    %262 = tpu.matmul %259, %261, %cst_223 {dimension_numbers = #tpu.dot_dimension_numbers<[1], [0], [0], [1], [0, 0, 1, 1], [], []>} : vector<16x128xf32>, vector<128x128xf32>, vector<16x128xf32> -> vector<16x128xf32>
    %263 = arith.addf %256, %262 : vector<16x128xf32>
    %264 = vector.extract_strided_slice %250 {offsets = [8, 0], sizes = [8, 128], strides = [1, 1]} : vector<32x128xf32> to vector<8x128xf32>
    %265 = vector.extract_strided_slice %250 {offsets = [24, 0], sizes = [8, 128], strides = [1, 1]} : vector<32x128xf32> to vector<8x128xf32>
    %266 = tpu.concatenate %264, %265 in 0 : vector<8x128xf32>, vector<8x128xf32> -> vector<16x128xf32>
    %c2_224 = arith.constant 2 : index
    %c0_225 = arith.constant 0 : index
    %c0_226 = arith.constant 0 : index
    %267 = vector.load %arg8[%c2_224, %c0_225, %c0_226] : memref<4x128x128xf32, #tpu.memory_space<vmem>>, vector<1x128x128xf32>
    %268 = vector.shape_cast %267 : vector<1x128x128xf32> to vector<128x128xf32>
    %cst_227 = arith.constant dense<0.000000e+00> : vector<16x128xf32>
    %269 = tpu.matmul %266, %268, %cst_227 {dimension_numbers = #tpu.dot_dimension_numbers<[1], [0], [0], [1], [0, 0, 1, 1], [], []>} : vector<16x128xf32>, vector<128x128xf32>, vector<16x128xf32> -> vector<16x128xf32>
    %270 = arith.addf %263, %269 : vector<16x128xf32>
    %271 = vector.extract_strided_slice %250 {offsets = [16, 0], sizes = [8, 128], strides = [1, 1]} : vector<32x128xf32> to vector<8x128xf32>
    %272 = vector.extract_strided_slice %250 {offsets = [16, 0], sizes = [8, 128], strides = [1, 1]} : vector<32x128xf32> to vector<8x128xf32>
    %273 = tpu.concatenate %271, %272 in 0 : vector<8x128xf32>, vector<8x128xf32> -> vector<16x128xf32>
    %c3_228 = arith.constant 3 : index
    %c0_229 = arith.constant 0 : index
    %c0_230 = arith.constant 0 : index
    %274 = vector.load %arg8[%c3_228, %c0_229, %c0_230] : memref<4x128x128xf32, #tpu.memory_space<vmem>>, vector<1x128x128xf32>
    %275 = vector.shape_cast %274 : vector<1x128x128xf32> to vector<128x128xf32>
    %cst_231 = arith.constant dense<0.000000e+00> : vector<16x128xf32>
    %276 = tpu.matmul %273, %275, %cst_231 {dimension_numbers = #tpu.dot_dimension_numbers<[1], [0], [0], [1], [0, 0, 1, 1], [], []>} : vector<16x128xf32>, vector<128x128xf32>, vector<16x128xf32> -> vector<16x128xf32>
    %277 = arith.addf %270, %276 : vector<16x128xf32>
    %c0_232 = arith.constant 0 : index
    %c0_233 = arith.constant 0 : index
    %278 = vector.load %arg9[%c0_232, %c0_233] : memref<1x128xf32, #tpu.memory_space<vmem>>, vector<1x128xf32>
    %279 = vector.broadcast %278 : vector<1x128xf32> to vector<16x128xf32>
    %280 = arith.addf %277, %279 : vector<16x128xf32>
    %cst_234 = arith.constant 2.000000e-01 : f32
    %281 = vector.broadcast %cst_234 : f32 to vector<16x128xf32>
    %282 = arith.mulf %281, %280 : vector<16x128xf32>
    %283 = arith.maximumf %280, %282 : vector<16x128xf32>
    %284 = vector.extract_strided_slice %283 {offsets = [0, 0], sizes = [8, 128], strides = [1, 1]} : vector<16x128xf32> to vector<8x128xf32>
    %c0_235 = arith.constant 0 : index
    %c0_236 = arith.constant 0 : index
    %c0_237 = arith.constant 0 : index
    %285 = vector.load %arg10[%c0_235, %c0_236, %c0_237] : memref<2x128x128xf32, #tpu.memory_space<vmem>>, vector<1x128x128xf32>
    %286 = vector.shape_cast %285 : vector<1x128x128xf32> to vector<128x128xf32>
    %cst_238 = arith.constant dense<0.000000e+00> : vector<8x128xf32>
    %287 = tpu.matmul %284, %286, %cst_238 {dimension_numbers = #tpu.dot_dimension_numbers<[1], [0], [0], [1], [0, 0, 1, 1], [], []>} : vector<8x128xf32>, vector<128x128xf32>, vector<8x128xf32> -> vector<8x128xf32>
    %288 = vector.extract_strided_slice %283 {offsets = [8, 0], sizes = [8, 128], strides = [1, 1]} : vector<16x128xf32> to vector<8x128xf32>
    %c1_239 = arith.constant 1 : index
    %c0_240 = arith.constant 0 : index
    %c0_241 = arith.constant 0 : index
    %289 = vector.load %arg10[%c1_239, %c0_240, %c0_241] : memref<2x128x128xf32, #tpu.memory_space<vmem>>, vector<1x128x128xf32>
    %290 = vector.shape_cast %289 : vector<1x128x128xf32> to vector<128x128xf32>
    %cst_242 = arith.constant dense<0.000000e+00> : vector<8x128xf32>
    %291 = tpu.matmul %288, %290, %cst_242 {dimension_numbers = #tpu.dot_dimension_numbers<[1], [0], [0], [1], [0, 0, 1, 1], [], []>} : vector<8x128xf32>, vector<128x128xf32>, vector<8x128xf32> -> vector<8x128xf32>
    %292 = arith.addf %287, %291 : vector<8x128xf32>
    %c0_243 = arith.constant 0 : index
    %c0_244 = arith.constant 0 : index
    %293 = vector.load %arg11[%c0_243, %c0_244] : memref<1x128xf32, #tpu.memory_space<vmem>>, vector<1x128xf32>
    %294 = vector.broadcast %293 : vector<1x128xf32> to vector<8x128xf32>
    %295 = arith.addf %292, %294 : vector<8x128xf32>
    %cst_245 = arith.constant 2.000000e-01 : f32
    %296 = vector.broadcast %cst_245 : f32 to vector<8x128xf32>
    %297 = arith.mulf %296, %295 : vector<8x128xf32>
    %298 = arith.maximumf %295, %297 : vector<8x128xf32>
    %c0_246 = arith.constant 0 : index
    %c0_247 = arith.constant 0 : index
    %299 = vector.load %arg12[%c0_246, %c0_247] : memref<128x128xf32, #tpu.memory_space<vmem>>, vector<128x128xf32>
    %cst_248 = arith.constant dense<0.000000e+00> : vector<8x128xf32>
    %300 = tpu.matmul %298, %299, %cst_248 {dimension_numbers = #tpu.dot_dimension_numbers<[1], [0], [0], [1], [0, 0, 1, 1], [], []>} : vector<8x128xf32>, vector<128x128xf32>, vector<8x128xf32> -> vector<8x128xf32>
    %c0_249 = arith.constant 0 : index
    %c0_250 = arith.constant 0 : index
    %301 = vector.load %arg13[%c0_249, %c0_250] : memref<1x128xf32, #tpu.memory_space<vmem>>, vector<1x128xf32>
    %302 = vector.broadcast %301 : vector<1x128xf32> to vector<8x128xf32>
    %303 = arith.addf %300, %302 : vector<8x128xf32>
    %c0_251 = arith.constant 0 : index
    %c0_252 = arith.constant 0 : index
    %304 = vector.load %arg14[%c0_251, %c0_252] : memref<8x128xf32, #tpu.memory_space<vmem>>, vector<8x128xf32>
    tpu.vector_store %arg14[%c0_251, %c0_252], %303 {strides = array<i32>} : memref<8x128xf32, #tpu.memory_space<vmem>>, vector<8x128xf32>,
    return
  }
  func.func @transform_0(%arg0: i32) -> (i32, i32, i32) {
    %c0_i32 = arith.constant 0 : i32
    %c0_i32_0 = arith.constant 0 : i32
    %c0_i32_1 = arith.constant 0 : i32
    return %c0_i32, %arg0, %c0_i32_0 : i32, i32, i32
  }
  func.func @transform_1(%arg0: i32) -> (i32, i32, i32) {
    %c0_i32 = arith.constant 0 : i32
    %c0_i32_0 = arith.constant 0 : i32
    %c0_i32_1 = arith.constant 0 : i32
    %c0_i32_2 = arith.constant 0 : i32
    return %c0_i32, %c0_i32_0, %c0_i32_1 : i32, i32, i32
  }
  func.func @transform_2(%arg0: i32) -> (i32, i32) {
    %c0_i32 = arith.constant 0 : i32
    %c0_i32_0 = arith.constant 0 : i32
    %c0_i32_1 = arith.constant 0 : i32
    return %c0_i32, %c0_i32_0 : i32, i32
  }
  func.func @transform_3(%arg0: i32) -> (i32, i32, i32) {
    %c0_i32 = arith.constant 0 : i32
    %c0_i32_0 = arith.constant 0 : i32
    %c0_i32_1 = arith.constant 0 : i32
    %c0_i32_2 = arith.constant 0 : i32
    return %c0_i32, %c0_i32_0, %c0_i32_1 : i32, i32, i32
  }
  func.func @transform_4(%arg0: i32) -> (i32, i32) {
    %c0_i32 = arith.constant 0 : i32
    %c0_i32_0 = arith.constant 0 : i32
    %c0_i32_1 = arith.constant 0 : i32
    return %c0_i32, %c0_i32_0 : i32, i32
  }
  func.func @transform_5(%arg0: i32) -> (i32, i32, i32) {
    %c0_i32 = arith.constant 0 : i32
    %c0_i32_0 = arith.constant 0 : i32
    %c0_i32_1 = arith.constant 0 : i32
    %c0_i32_2 = arith.constant 0 : i32
    return %c0_i32, %c0_i32_0, %c0_i32_1 : i32, i32, i32
  }
  func.func @transform_6(%arg0: i32) -> (i32, i32) {
    %c0_i32 = arith.constant 0 : i32
    %c0_i32_0 = arith.constant 0 : i32
    %c0_i32_1 = arith.constant 0 : i32
    return %c0_i32, %c0_i32_0 : i32, i32
  }
  func.func @transform_7(%arg0: i32) -> (i32, i32, i32) {
    %c0_i32 = arith.constant 0 : i32
    %c0_i32_0 = arith.constant 0 : i32
    %c0_i32_1 = arith.constant 0 : i32
    %c0_i32_2 = arith.constant 0 : i32
    return %c0_i32, %c0_i32_0, %c0_i32_1 : i32, i32, i32
  }
  func.func @transform_8(%arg0: i32) -> (i32, i32) {
    %c0_i32 = arith.constant 0 : i32
    %c0_i32_0 = arith.constant 0 : i32
    %c0_i32_1 = arith.constant 0 : i32
    return %c0_i32, %c0_i32_0 : i32, i32
  }
  func.func @transform_9(%arg0: i32) -> (i32, i32, i32) {
    %c0_i32 = arith.constant 0 : i32
    %c0_i32_0 = arith.constant 0 : i32
    %c0_i32_1 = arith.constant 0 : i32
    %c0_i32_2 = arith.constant 0 : i32
    return %c0_i32, %c0_i32_0, %c0_i32_1 : i32, i32, i32
  }
  func.func @transform_10(%arg0: i32) -> (i32, i32) {
    %c0_i32 = arith.constant 0 : i32
    %c0_i32_0 = arith.constant 0 : i32
    %c0_i32_1 = arith.constant 0 : i32
    return %c0_i32, %c0_i32_0 : i32, i32
  }
  func.func @transform_11(%arg0: i32) -> (i32, i32) {
    %c0_i32 = arith.constant 0 : i32
    %c0_i32_0 = arith.constant 0 : i32
    %c0_i32_1 = arith.constant 0 : i32
    return %c0_i32, %c0_i32_0 : i32, i32
  }
  func.func @transform_12(%arg0: i32) -> (i32, i32) {
    %c0_i32 = arith.constant 0 : i32
    %c0_i32_0 = arith.constant 0 : i32
    %c0_i32_1 = arith.constant 0 : i32
    return %c0_i32, %c0_i32_0 : i32, i32
  }
  func.func @transform_13(%arg0: i32) -> (i32, i32) {
    %c0_i32 = arith.constant 0 : i32
    %c0_i32_0 = arith.constant 0 : i32
    return %arg0, %c0_i32 : i32, i32
  }
}

</mosaic_0001>

<llo_original>
// kernel: tile.23
$region0: #{tile.23}
  #allocation0 [shape = 's32[1]{0}', space=sflag, size = 0x4, scoped, tag = 'scoped memory for tile.23']
  %s0 = inlined_call_operand.vmem [shape: f32[8], index: 0, kind: input, shape index: {}]
  %s1 = inlined_call_operand.vmem [shape: f32[16,8], index: 1, kind: output, shape index: {}]
  // Predicated region
  $region2: #{tile.23} parent=0 // pred_check
    _
  $region3: #{tile.23} parent=0 // pred_check_branch
    %3 = sbr.rel (0) target = $region5
  $region4: #{tile.23} parent=0 // pred_region
    _
  $region5: #{tile.23} parent=0 // pred_fallthru
    _
  %v4 = vld [vmem:[%s0] ss:$0 sm:$0xff]
  %5 = vst [vmem:[%s1] sm:$0xff] %v4
  %s6 = scalar_lea.vmem %s1, 8
  %7 = vst [vmem:[%s6] sm:$0xff] %v4

// kernel: tile.24
$region0: #{tile.24}
  %s0 = inlined_call_operand.vmem [shape: f32[16,8], index: 0, kind: input, shape index: {}]
  %s1 = inlined_call_operand.vmem [shape: f32[1,128], index: 1, kind: output, shape index: {}]
  $region1: #{tile.24} parent=0
    #allocation0 [shape = 'u8[4096]{0}', space=vmem, size = 0x1000, scoped, tag = 'scoped mem for output reshape']
    %v2 = vld [vmem:[%s0] sm:$0x1]
    %vm3 = vcmask 64512
    %4 = vst.msk [vmem:[#allocation0] sm:$0x1] %vm3, %v2
    %s5 = scalar_lea.vmem %s0, 15
    %v6 = vld [vmem:[%s5] sm:$0x1]
    %7 = vrot.lane.b32.xlu0 %v6, 120
    %v8 = vpop.permute.xlu0 %7
    %vm9 = vcmask 1048512
    %10 = vst.msk [vmem:[#allocation0] sm:$0x1] %vm9, %v8
    %s11 = scalar_lea.vmem %s0, 14
    %v12 = vld [vmem:[%s11] sm:$0x1]
    %13 = vrot.lane.b32.xlu0 %v12, 112
    %v14 = vpop.permute.xlu0 %13
    %vm15 = vcmask 982912
    %16 = vst.msk [vmem:[#allocation0] sm:$0x1] %vm15, %v14
    %s17 = scalar_lea.vmem %s0, 13
    %v18 = vld [vmem:[%s17] sm:$0x1]
    %19 = vrot.lane.b32.xlu0 %v18, 104
    %v20 = vpop.permute.xlu0 %19
    %vm21 = vcmask 917312
    %22 = vst.msk [vmem:[#allocation0] sm:$0x1] %vm21, %v20
    %s23 = scalar_lea.vmem %s0, 12
    %v24 = vld [vmem:[%s23] sm:$0x1]
    %25 = vrot.lane.b32.xlu0 %v24, 96
    %v26 = vpop.permute.xlu0 %25
    %vm27 = vcmask 851712
    %28 = vst.msk [vmem:[#allocation0] sm:$0x1] %vm27, %v26
    %s29 = scalar_lea.vmem %s0, 11
    %v30 = vld [vmem:[%s29] sm:$0x1]
    %31 = vrot.lane.b32.xlu0 %v30, 88
    %v32 = vpop.permute.xlu0 %31
    %vm33 = vcmask 786112
    %34 = vst.msk [vmem:[#allocation0] sm:$0x1] %vm33, %v32
    %s35 = scalar_lea.vmem %s0, 10
    %v36 = vld [vmem:[%s35] sm:$0x1]
    %37 = vrot.lane.b32.xlu0 %v36, 80
    %v38 = vpop.permute.xlu0 %37
    %vm39 = vcmask 720512
    %40 = vst.msk [vmem:[#allocation0] sm:$0x1] %vm39, %v38
    %s41 = scalar_lea.vmem %s0, 9
    %v42 = vld [vmem:[%s41] sm:$0x1]
    %43 = vrot.lane.b32.xlu0 %v42, 72
    %v44 = vpop.permute.xlu0 %43
    %vm45 = vcmask 654912
    %46 = vst.msk [vmem:[#allocation0] sm:$0x1] %vm45, %v44
    %s47 = scalar_lea.vmem %s0, 8
    %v48 = vld [vmem:[%s47] sm:$0x1]
    %49 = vrot.lane.b32.xlu0 %v48, 64
    %v50 = vpop.permute.xlu0 %49
    %vm51 = vcmask 589312
    %52 = vst.msk [vmem:[#allocation0] sm:$0x1] %vm51, %v50
    %s53 = scalar_lea.vmem %s0, 7
    %v54 = vld [vmem:[%s53] sm:$0x1]
    %55 = vrot.lane.b32.xlu0 %v54, 56
    %v56 = vpop.permute.xlu0 %55
    %vm57 = vcmask 523712
    %58 = vst.msk [vmem:[#allocation0] sm:$0x1] %vm57, %v56
    %s59 = scalar_lea.vmem %s0, 6
    %v60 = vld [vmem:[%s59] sm:$0x1]
    %61 = vrot.lane.b32.xlu0 %v60, 48
    %v62 = vpop.permute.xlu0 %61
    %vm63 = vcmask 458112
    %64 = vst.msk [vmem:[#allocation0] sm:$0x1] %vm63, %v62
    %s65 = scalar_lea.vmem %s0, 5
    %v66 = vld [vmem:[%s65] sm:$0x1]
    %67 = vrot.lane.b32.xlu0 %v66, 40
    %v68 = vpop.permute.xlu0 %67
    %vm69 = vcmask 392512
    %70 = vst.msk [vmem:[#allocation0] sm:$0x1] %vm69, %v68
    %s71 = scalar_lea.vmem %s0, 4
    %v72 = vld [vmem:[%s71] sm:$0x1]
    %73 = vrot.lane.b32.xlu0 %v72, 32
    %v74 = vpop.permute.xlu0 %73
    %vm75 = vcmask 326912
    %76 = vst.msk [vmem:[#allocation0] sm:$0x1] %vm75, %v74
    %s77 = scalar_lea.vmem %s0, 3
    %v78 = vld [vmem:[%s77] sm:$0x1]
    %79 = vrot.lane.b32.xlu0 %v78, 24
    %v80 = vpop.permute.xlu0 %79
    %vm81 = vcmask 261312
    %82 = vst.msk [vmem:[#allocation0] sm:$0x1] %vm81, %v80
    %s83 = scalar_lea.vmem %s0, 2
    %v84 = vld [vmem:[%s83] sm:$0x1]
    %85 = vrot.lane.b32.xlu0 %v84, 16
    %v86 = vpop.permute.xlu0 %85
    %vm87 = vcmask 195712
    %88 = vst.msk [vmem:[#allocation0] sm:$0x1] %vm87, %v86
    %s89 = scalar_lea.vmem %s0, 1
    %v90 = vld [vmem:[%s89] sm:$0x1]
    %91 = vrot.lane.b32.xlu0 %v90, 8
    %v92 = vpop.permute.xlu0 %91
    %vm93 = vcmask 130112
    %94 = vst.msk [vmem:[#allocation0] sm:$0x1] %vm93, %v92
    %s96 = sshllo.u32 0, 1
    %v98 = vld [vmem:[#allocation0] sm:%s96]
    %s99 = sshllo.u32 0, 1
    %100 = vst [vmem:[%s1] sm:%s99] %v98

// kernel: tile.28
$region0: #{tile.28}
  #allocation0 [shape = 's32[1]{0}', space=sflag, size = 0x4, scoped, tag = 'scoped memory for tile.28']
  %s0 = inlined_call_operand.vmem [shape: f32[16], index: 0, kind: input, shape index: {}]
  %s1 = inlined_call_operand.vmem [shape: f32[8,16], index: 1, kind: output, shape index: {}]
  // Predicated region
  $region2: #{tile.28} parent=0 // pred_check
    _
  $region3: #{tile.28} parent=0 // pred_check_branch
    %3 = sbr.rel (0) target = $region5
  $region4: #{tile.28} parent=0 // pred_region
    _
  $region5: #{tile.28} parent=0 // pred_fallthru
    _
  %v4 = vld [vmem:[%s0] ss:$0 sm:$0xff]
  %5 = vst [vmem:[%s1] sm:$0xff] %v4

// kernel: tile.29
$region0: #{tile.29}
  %s0 = inlined_call_operand.vmem [shape: f32[8,16], index: 0, kind: input, shape index: {}]
  %s1 = inlined_call_operand.vmem [shape: f32[1,128], index: 1, kind: output, shape index: {}]
  $region1: #{tile.29} parent=0
    #allocation0 [shape = 'u8[4096]{0}', space=vmem, size = 0x1000, scoped, tag = 'scoped mem for output reshape']
    %v2 = vld [vmem:[%s0] sm:$0x1]
    %vm3 = vcmask 130048
    %4 = vst.msk [vmem:[#allocation0] sm:$0x1] %vm3, %v2
    %s5 = scalar_lea.vmem %s0, 7
    %v6 = vld [vmem:[%s5] sm:$0x1]
    %7 = vrot.lane.b32.xlu0 %v6, 112
    %v8 = vpop.permute.xlu0 %7
    %vm9 = vcmask 1048448
    %10 = vst.msk [vmem:[#allocation0] sm:$0x1] %vm9, %v8
    %s11 = scalar_lea.vmem %s0, 6
    %v12 = vld [vmem:[%s11] sm:$0x1]
    %13 = vrot.lane.b32.xlu0 %v12, 96
    %v14 = vpop.permute.xlu0 %13
    %vm15 = vcmask 917248
    %16 = vst.msk [vmem:[#allocation0] sm:$0x1] %vm15, %v14
    %s17 = scalar_lea.vmem %s0, 5
    %v18 = vld [vmem:[%s17] sm:$0x1]
    %19 = vrot.lane.b32.xlu0 %v18, 80
    %v20 = vpop.permute.xlu0 %19
    %vm21 = vcmask 786048
    %22 = vst.msk [vmem:[#allocation0] sm:$0x1] %vm21, %v20
    %s23 = scalar_lea.vmem %s0, 4
    %v24 = vld [vmem:[%s23] sm:$0x1]
    %25 = vrot.lane.b32.xlu0 %v24, 64
    %v26 = vpop.permute.xlu0 %25
    %vm27 = vcmask 654848
    %28 = vst.msk [vmem:[#allocation0] sm:$0x1] %vm27, %v26
    %s29 = scalar_lea.vmem %s0, 3
    %v30 = vld [vmem:[%s29] sm:$0x1]
    %31 = vrot.lane.b32.xlu0 %v30, 48
    %v32 = vpop.permute.xlu0 %31
    %vm33 = vcmask 523648
    %34 = vst.msk [vmem:[#allocation0] sm:$0x1] %vm33, %v32
    %s35 = scalar_lea.vmem %s0, 2
    %v36 = vld [vmem:[%s35] sm:$0x1]
    %37 = vrot.lane.b32.xlu0 %v36, 32
    %v38 = vpop.permute.xlu0 %37
    %vm39 = vcmask 392448
    %40 = vst.msk [vmem:[#allocation0] sm:$0x1] %vm39, %v38
    %s41 = scalar_lea.vmem %s0, 1
    %v42 = vld [vmem:[%s41] sm:$0x1]
    %43 = vrot.lane.b32.xlu0 %v42, 16
    %v44 = vpop.permute.xlu0 %43
    %vm45 = vcmask 261248
    %46 = vst.msk [vmem:[#allocation0] sm:$0x1] %vm45, %v44
    %s48 = sshllo.u32 0, 1
    %v50 = vld [vmem:[#allocation0] sm:%s48]
    %s51 = sshllo.u32 0, 1
    %52 = vst [vmem:[%s1] sm:%s51] %v50

// kernel: tile.33
$region0: #{tile.33}
  #allocation0 [shape = 's32[1]{0}', space=sflag, size = 0x4, scoped, tag = 'scoped memory for tile.33']
  %s0 = inlined_call_operand.vmem [shape: f32[32], index: 0, kind: input, shape index: {}]
  %s1 = inlined_call_operand.vmem [shape: f32[4,32], index: 1, kind: output, shape index: {}]
  // Predicated region
  $region2: #{tile.33} parent=0 // pred_check
    _
  $region3: #{tile.33} parent=0 // pred_check_branch
    %3 = sbr.rel (0) target = $region5
  $region4: #{tile.33} parent=0 // pred_region
    _
  $region5: #{tile.33} parent=0 // pred_fallthru
    _
  %v4 = vld [vmem:[%s0] ss:$0 sm:$0xff]
  %5 = vst [vmem:[%s1] sm:$0xf] %v4

// kernel: tile.34
$region0: #{tile.34}
  %s0 = inlined_call_operand.vmem [shape: f32[4,32], index: 0, kind: input, shape index: {}]
  %s1 = inlined_call_operand.vmem [shape: f32[1,128], index: 1, kind: output, shape index: {}]
  $region1: #{tile.34} parent=0
    #allocation0 [shape = 'u8[4096]{0}', space=vmem, size = 0x1000, scoped, tag = 'scoped mem for output reshape']
    #allocation1 [shape = 'u8[4096]{0}', space=vmem, size = 0x1000, scoped, tag = 'scoped mem for input reshape']
    %s3 = sshllo.u32 0, 4
    %v4 = vld [vmem:[%s0] sm:%s3]
    %5 = vst [vmem:[#allocation1] sm:%s3] %v4
    %v6 = vld [vmem:[#allocation1] sm:$0x1]
    %vm7 = vcmask 261120
    %8 = vst.msk [vmem:[#allocation0] sm:$0x1] %vm7, %v6
    %s9 = scalar_lea.vmem [#allocation1], 3
    %v10 = vld [vmem:[%s9] sm:$0x1]
    %11 = vrot.lane.b32.xlu0 %v10, 96
    %v12 = vpop.permute.xlu0 %11
    %vm13 = vcmask 1048320
    %14 = vst.msk [vmem:[#allocation0] sm:$0x1] %vm13, %v12
    %s15 = scalar_lea.vmem [#allocation1], 2
    %v16 = vld [vmem:[%s15] sm:$0x1]
    %17 = vrot.lane.b32.xlu0 %v16, 64
    %v18 = vpop.permute.xlu0 %17
    %vm19 = vcmask 785920
    %20 = vst.msk [vmem:[#allocation0] sm:$0x1] %vm19, %v18
    %s21 = scalar_lea.vmem [#allocation1], 1
    %v22 = vld [vmem:[%s21] sm:$0x1]
    %23 = vrot.lane.b32.xlu0 %v22, 32
    %v24 = vpop.permute.xlu0 %23
    %vm25 = vcmask 523520
    %26 = vst.msk [vmem:[#allocation0] sm:$0x1] %vm25, %v24
    %s28 = sshllo.u32 0, 1
    %v30 = vld [vmem:[#allocation0] sm:%s28]
    %s31 = sshllo.u32 0, 1
    %32 = vst [vmem:[%s1] sm:%s31] %v30

// kernel: tile.38
$region0: #{tile.38}
  #allocation0 [shape = 's32[1]{0}', space=sflag, size = 0x4, scoped, tag = 'scoped memory for tile.38']
  %s0 = inlined_call_operand.vmem [shape: f32[64], index: 0, kind: input, shape index: {}]
  %s1 = inlined_call_operand.vmem [shape: f32[2,64], index: 1, kind: output, shape index: {}]
  // Predicated region
  $region2: #{tile.38} parent=0 // pred_check
    _
  $region3: #{tile.38} parent=0 // pred_check_branch
    %3 = sbr.rel (0) target = $region5
  $region4: #{tile.38} parent=0 // pred_region
    _
  $region5: #{tile.38} parent=0 // pred_fallthru
    _
  %v4 = vld [vmem:[%s0] ss:$0 sm:$0xff]
  %5 = vst [vmem:[%s1] sm:$0x3] %v4

// kernel: tile.39
$region0: #{tile.39}
  %s0 = inlined_call_operand.vmem [shape: f32[2,64], index: 0, kind: input, shape index: {}]
  %s1 = inlined_call_operand.vmem [shape: f32[1,128], index: 1, kind: output, shape index: {}]
  $region1: #{tile.39} parent=0
    #allocation0 [shape = 'u8[4096]{0}', space=vmem, size = 0x1000, scoped, tag = 'scoped mem for output reshape']
    #allocation1 [shape = 'u8[4096]{0}', space=vmem, size = 0x1000, scoped, tag = 'scoped mem for input reshape']
    %s3 = sshllo.u32 0, 2
    %v4 = vld [vmem:[%s0] sm:%s3]
    %5 = vst [vmem:[#allocation1] sm:%s3] %v4
    %v6 = vld [vmem:[#allocation1] sm:$0x1]
    %vm7 = vcmask 523264
    %8 = vst.msk [vmem:[#allocation0] sm:$0x1] %vm7, %v6
    %s9 = scalar_lea.vmem [#allocation1], 1
    %v10 = vld [vmem:[%s9] sm:$0x1]
    %11 = vrot.lane.b32.xlu0 %v10, 64
    %v12 = vpop.permute.xlu0 %11
    %vm13 = vcmask 1048064
    %14 = vst.msk [vmem:[#allocation0] sm:$0x1] %vm13, %v12
    %s16 = sshllo.u32 0, 1
    %v18 = vld [vmem:[#allocation0] sm:%s16]
    %s19 = sshllo.u32 0, 1
    %20 = vst [vmem:[%s1] sm:%s19] %v18

// kernel: _lambda_.1
$region0: #{_lambda_.1}
  #allocation0 [shape = 'u32[]', space=smem, size = 0x4, offset = 0x4, fixed_abs, tag = 'smem constant byte address 0x4 - core index']
  #allocation1 [shape = 'u32[144,128]{1,0:T(1,128)}', space=vmem, size = 0x12000, scoped, tag = 'internal scratch']
  %s0 = inlined_call_operand.vmem [shape: f32[32,16,96], index: 0, kind: input, shape index: {}]
  %s1 = inlined_call_operand.vmem [shape: f32[4,96,128], index: 1, kind: input, shape index: {}]
  %s2 = inlined_call_operand.vmem [shape: f32[1,128], index: 2, kind: input, shape index: {}]
  %s3 = inlined_call_operand.vmem [shape: f32[4,128,128], index: 3, kind: input, shape index: {}]
  %s4 = inlined_call_operand.vmem [shape: f32[1,128], index: 4, kind: input, shape index: {}]
  %s5 = inlined_call_operand.vmem [shape: f32[4,128,128], index: 5, kind: input, shape index: {}]
  %s6 = inlined_call_operand.vmem [shape: f32[1,128], index: 6, kind: input, shape index: {}]
  %s7 = inlined_call_operand.vmem [shape: f32[4,128,128], index: 7, kind: input, shape index: {}]
  %s8 = inlined_call_operand.vmem [shape: f32[1,128], index: 8, kind: input, shape index: {}]
  %s9 = inlined_call_operand.vmem [shape: f32[2,128,128], index: 9, kind: input, shape index: {}]
  %s10 = inlined_call_operand.vmem [shape: f32[1,128], index: 10, kind: input, shape index: {}]
  %s11 = inlined_call_operand.vmem [shape: f32[128,128], index: 11, kind: input, shape index: {}]
  %s12 = inlined_call_operand.vmem [shape: f32[1,128], index: 12, kind: input, shape index: {}]
  %s13 = inlined_call_operand.hbm [shape: f32[16,128], index: 13, kind: output, shape index: {}]
  %s14 = sld [smem:[#allocation0]]
  $region123: #{_lambda_.1} parent=0
    _
  %s16 = ssub.s32 1, %s14
  %s17 = scalar_select 0, %s16, %s14
  $region1: #{_lambda_.1} parent=0
    #allocation2 [shape = 'u8[262144]{0}', space=vmem, size = 0x40000, scoped, tag = 'input window, operand 0']
    #allocation3 [shape = 'u8[8192]{0}', space=vmem, size = 0x2000, scoped, tag = 'output window, operand 0']
    #allocation4 [shape = 's32[2]{0}', space=sflag, size = 0x8, scoped, tag = 'scoped memory for _lambda_.1']
    %18 = vsyncpa [#allocation4], 0
    %s19 = scalar_lea.sflag [#allocation4], 1
    %20 = vsyncpa %s19, 0
    loop: start=0, step=1, limit=4
    $region2: #{_lambda_.1} parent=1 // loop_pre_header
      _
    $region3: #{_lambda_.1} parent=1 // loop_header
      %s22 = sphi 0, %s26
      %p23 = scmp.ge.s32.totalorder %s22, 4
      %s32 = sphi 0, %s34
      %s35 = sphi 0, %s32
      %s36 = sphi 0, %s35
      %s52 = sphi 0, %s36
      %s56 = sphi 0, %s56
      %s58 = sphi 0, %s56
      %s59 = sphi 0, %s58
      %s73 = sphi 0, %s59
      %s77 = sphi 0, %s77
      %s79 = sphi 0, %s77
      %s80 = sphi 0, %s79
      %s94 = sphi 0, %s80
      %s98 = sphi 0, %s98
      %s100 = sphi 0, %s98
      %s101 = sphi 0, %s100
      %s115 = sphi 0, %s101
      %s119 = sphi 0, %s119
      %s121 = sphi 0, %s119
      %s122 = sphi 0, %s121
      %s136 = sphi 0, %s122
      %s140 = sphi 0, %s140
      %s142 = sphi 0, %s140
      %s143 = sphi 0, %s142
      %s157 = sphi 0, %s143
      %s161 = sphi 0, %s161
      %s163 = sphi 0, %s161
      %s164 = sphi 0, %s163
      %s178 = sphi 0, %s164
      %s182 = sphi 0, %s182
      %s184 = sphi 0, %s182
      %s185 = sphi 0, %s184
      %s199 = sphi 0, %s185
      %s203 = sphi 0, %s203
      %s205 = sphi 0, %s203
      %s206 = sphi 0, %s205
      %s220 = sphi 0, %s206
      %s224 = sphi 0, %s224
      %s226 = sphi 0, %s224
      %s227 = sphi 0, %s226
      %s241 = sphi 0, %s227
      %s245 = sphi 0, %s245
      %s247 = sphi 0, %s245
      %s248 = sphi 0, %s247
      %s262 = sphi 0, %s248
      %s266 = sphi 0, %s266
      %s268 = sphi 0, %s266
      %s269 = sphi 0, %s268
      %s283 = sphi 0, %s269
      %s287 = sphi 0, %s287
      %s289 = sphi 0, %s287
      %s290 = sphi 0, %s289
      %s304 = sphi 0, %s290
      %s310 = sphi 0, %s312
      %s313 = sphi 0, %s310
      %s314 = sphi 0, %s313
      %s330 = sphi 0, %s314
    $region4: #{_lambda_.1} parent=1 // loop_header_branch
      %25 = sbr.rel (%p23) target = $region8
    $region5: #{_lambda_.1} parent=1 // loop_body
      %s27 = ssub.s32 %s22, 1
      %s28 = ssub.s32 %s22, 2
      %s29 = sadd.s32 %s22, 1
      %s30 = ssub.s32 %s22, %s29
      %p31 = scmp.eq.s32.totalorder %s30, 0
      %s33 = sadd.s32 %s32, 1
      %s34 = scalar_select %p31, %s32, %s33
      %p37 = pneg %p31
      %p38 = scmp.eq.s32.totalorder %s22, 1
      %p39 = por %p37, %p38
      %p40 = scmp.ne.s32.totalorder %s32, %s35
      %p41 = scmp.eq.s32.totalorder %s22, 0
      %p42 = por %p40, %p41
      %p43 = scmp.ne.s32.totalorder %s32, %s35
      %p44 = scmp.eq.s32.totalorder %s27, 1
      %p45 = por %p43, %p44
      %p46 = scmp.ne.s32.totalorder %s35, %s36
      %p47 = scmp.eq.s32.totalorder %s27, 0
      %p48 = por %p46, %p47
      %p49 = scmp.ne.s32.totalorder %s35, %s36
      %p50 = scmp.eq.s32.totalorder %s28, 1
      %p51 = por %p49, %p50
      %p53 = scmp.ne.s32.totalorder %s36, %s52
      %p54 = scmp.eq.s32.totalorder %s28, 0
      %p55 = por %p53, %p54
      %s57 = sadd.s32 %s56, 1
      %p60 = scmp.eq.s32.totalorder %s22, 1
      %p61 = scmp.ne.s32.totalorder %s56, %s58
      %p62 = scmp.eq.s32.totalorder %s22, 0
      %p63 = por %p61, %p62
      %p64 = scmp.ne.s32.totalorder %s56, %s58
      %p65 = scmp.eq.s32.totalorder %s27, 1
      %p66 = por %p64, %p65
      %p67 = scmp.ne.s32.totalorder %s58, %s59
      %p68 = scmp.eq.s32.totalorder %s27, 0
      %p69 = por %p67, %p68
      %p70 = scmp.ne.s32.totalorder %s58, %s59
      %p71 = scmp.eq.s32.totalorder %s28, 1
      %p72 = por %p70, %p71
      %p74 = scmp.ne.s32.totalorder %s59, %s73
      %p75 = scmp.eq.s32.totalorder %s28, 0
      %p76 = por %p74, %p75
      %s78 = sadd.s32 %s77, 1
      %p81 = scmp.eq.s32.totalorder %s22, 1
      %p82 = scmp.ne.s32.totalorder %s77, %s79
      %p83 = scmp.eq.s32.totalorder %s22, 0
      %p84 = por %p82, %p83
      %p85 = scmp.ne.s32.totalorder %s77, %s79
      %p86 = scmp.eq.s32.totalorder %s27, 1
      %p87 = por %p85, %p86
      %p88 = scmp.ne.s32.totalorder %s79, %s80
      %p89 = scmp.eq.s32.totalorder %s27, 0
      %p90 = por %p88, %p89
      %p91 = scmp.ne.s32.totalorder %s79, %s80
      %p92 = scmp.eq.s32.totalorder %s28, 1
      %p93 = por %p91, %p92
      %p95 = scmp.ne.s32.totalorder %s80, %s94
      %p96 = scmp.eq.s32.totalorder %s28, 0
      %p97 = por %p95, %p96
      %s99 = sadd.s32 %s98, 1
      %p102 = scmp.eq.s32.totalorder %s22, 1
      %p103 = scmp.ne.s32.totalorder %s98, %s100
      %p104 = scmp.eq.s32.totalorder %s22, 0
      %p105 = por %p103, %p104
      %p106 = scmp.ne.s32.totalorder %s98, %s100
      %p107 = scmp.eq.s32.totalorder %s27, 1
      %p108 = por %p106, %p107
      %p109 = scmp.ne.s32.totalorder %s100, %s101
      %p110 = scmp.eq.s32.totalorder %s27, 0
      %p111 = por %p109, %p110
      %p112 = scmp.ne.s32.totalorder %s100, %s101
      %p113 = scmp.eq.s32.totalorder %s28, 1
      %p114 = por %p112, %p113
      %p116 = scmp.ne.s32.totalorder %s101, %s115
      %p117 = scmp.eq.s32.totalorder %s28, 0
      %p118 = por %p116, %p117
      %s120 = sadd.s32 %s119, 1
      %p123 = scmp.eq.s32.totalorder %s22, 1
      %p124 = scmp.ne.s32.totalorder %s119, %s121
      %p125 = scmp.eq.s32.totalorder %s22, 0
      %p126 = por %p124, %p125
      %p127 = scmp.ne.s32.totalorder %s119, %s121
      %p128 = scmp.eq.s32.totalorder %s27, 1
      %p129 = por %p127, %p128
      %p130 = scmp.ne.s32.totalorder %s121, %s122
      %p131 = scmp.eq.s32.totalorder %s27, 0
      %p132 = por %p130, %p131
      %p133 = scmp.ne.s32.totalorder %s121, %s122
      %p134 = scmp.eq.s32.totalorder %s28, 1
      %p135 = por %p133, %p134
      %p137 = scmp.ne.s32.totalorder %s122, %s136
      %p138 = scmp.eq.s32.totalorder %s28, 0
      %p139 = por %p137, %p138
      %s141 = sadd.s32 %s140, 1
      %p144 = scmp.eq.s32.totalorder %s22, 1
      %p145 = scmp.ne.s32.totalorder %s140, %s142
      %p146 = scmp.eq.s32.totalorder %s22, 0
      %p147 = por %p145, %p146
      %p148 = scmp.ne.s32.totalorder %s140, %s142
      %p149 = scmp.eq.s32.totalorder %s27, 1
      %p150 = por %p148, %p149
      %p151 = scmp.ne.s32.totalorder %s142, %s143
      %p152 = scmp.eq.s32.totalorder %s27, 0
      %p153 = por %p151, %p152
      %p154 = scmp.ne.s32.totalorder %s142, %s143
      %p155 = scmp.eq.s32.totalorder %s28, 1
      %p156 = por %p154, %p155
      %p158 = scmp.ne.s32.totalorder %s143, %s157
      %p159 = scmp.eq.s32.totalorder %s28, 0
      %p160 = por %p158, %p159
      %s162 = sadd.s32 %s161, 1
      %p165 = scmp.eq.s32.totalorder %s22, 1
      %p166 = scmp.ne.s32.totalorder %s161, %s163
      %p167 = scmp.eq.s32.totalorder %s22, 0
      %p168 = por %p166, %p167
      %p169 = scmp.ne.s32.totalorder %s161, %s163
      %p170 = scmp.eq.s32.totalorder %s27, 1
      %p171 = por %p169, %p170
      %p172 = scmp.ne.s32.totalorder %s163, %s164
      %p173 = scmp.eq.s32.totalorder %s27, 0
      %p174 = por %p172, %p173
      %p175 = scmp.ne.s32.totalorder %s163, %s164
      %p176 = scmp.eq.s32.totalorder %s28, 1
      %p177 = por %p175, %p176
      %p179 = scmp.ne.s32.totalorder %s164, %s178
      %p180 = scmp.eq.s32.totalorder %s28, 0
      %p181 = por %p179, %p180
      %s183 = sadd.s32 %s182, 1
      %p186 = scmp.eq.s32.totalorder %s22, 1
      %p187 = scmp.ne.s32.totalorder %s182, %s184
      %p188 = scmp.eq.s32.totalorder %s22, 0
      %p189 = por %p187, %p188
      %p190 = scmp.ne.s32.totalorder %s182, %s184
      %p191 = scmp.eq.s32.totalorder %s27, 1
      %p192 = por %p190, %p191
      %p193 = scmp.ne.s32.totalorder %s184, %s185
      %p194 = scmp.eq.s32.totalorder %s27, 0
      %p195 = por %p193, %p194
      %p196 = scmp.ne.s32.totalorder %s184, %s185
      %p197 = scmp.eq.s32.totalorder %s28, 1
      %p198 = por %p196, %p197
      %p200 = scmp.ne.s32.totalorder %s185, %s199
      %p201 = scmp.eq.s32.totalorder %s28, 0
      %p202 = por %p200, %p201
      %s204 = sadd.s32 %s203, 1
      %p207 = scmp.eq.s32.totalorder %s22, 1
      %p208 = scmp.ne.s32.totalorder %s203, %s205
      %p209 = scmp.eq.s32.totalorder %s22, 0
      %p210 = por %p208, %p209
      %p211 = scmp.ne.s32.totalorder %s203, %s205
      %p212 = scmp.eq.s32.totalorder %s27, 1
      %p213 = por %p211, %p212
      %p214 = scmp.ne.s32.totalorder %s205, %s206
      %p215 = scmp.eq.s32.totalorder %s27, 0
      %p216 = por %p214, %p215
      %p217 = scmp.ne.s32.totalorder %s205, %s206
      %p218 = scmp.eq.s32.totalorder %s28, 1
      %p219 = por %p217, %p218
      %p221 = scmp.ne.s32.totalorder %s206, %s220
      %p222 = scmp.eq.s32.totalorder %s28, 0
      %p223 = por %p221, %p222
      %s225 = sadd.s32 %s224, 1
      %p228 = scmp.eq.s32.totalorder %s22, 1
      %p229 = scmp.ne.s32.totalorder %s224, %s226
      %p230 = scmp.eq.s32.totalorder %s22, 0
      %p231 = por %p229, %p230
      %p232 = scmp.ne.s32.totalorder %s224, %s226
      %p233 = scmp.eq.s32.totalorder %s27, 1
      %p234 = por %p232, %p233
      %p235 = scmp.ne.s32.totalorder %s226, %s227
      %p236 = scmp.eq.s32.totalorder %s27, 0
      %p237 = por %p235, %p236
      %p238 = scmp.ne.s32.totalorder %s226, %s227
      %p239 = scmp.eq.s32.totalorder %s28, 1
      %p240 = por %p238, %p239
      %p242 = scmp.ne.s32.totalorder %s227, %s241
      %p243 = scmp.eq.s32.totalorder %s28, 0
      %p244 = por %p242, %p243
      %s246 = sadd.s32 %s245, 1
      %p249 = scmp.eq.s32.totalorder %s22, 1
      %p250 = scmp.ne.s32.totalorder %s245, %s247
      %p251 = scmp.eq.s32.totalorder %s22, 0
      %p252 = por %p250, %p251
      %p253 = scmp.ne.s32.totalorder %s245, %s247
      %p254 = scmp.eq.s32.totalorder %s27, 1
      %p255 = por %p253, %p254
      %p256 = scmp.ne.s32.totalorder %s247, %s248
      %p257 = scmp.eq.s32.totalorder %s27, 0
      %p258 = por %p256, %p257
      %p259 = scmp.ne.s32.totalorder %s247, %s248
      %p260 = scmp.eq.s32.totalorder %s28, 1
      %p261 = por %p259, %p260
      %p263 = scmp.ne.s32.totalorder %s248, %s262
      %p264 = scmp.eq.s32.totalorder %s28, 0
      %p265 = por %p263, %p264
      %s267 = sadd.s32 %s266, 1
      %p270 = scmp.eq.s32.totalorder %s22, 1
      %p271 = scmp.ne.s32.totalorder %s266, %s268
      %p272 = scmp.eq.s32.totalorder %s22, 0
      %p273 = por %p271, %p272
      %p274 = scmp.ne.s32.totalorder %s266, %s268
      %p275 = scmp.eq.s32.totalorder %s27, 1
      %p276 = por %p274, %p275
      %p277 = scmp.ne.s32.totalorder %s268, %s269
      %p278 = scmp.eq.s32.totalorder %s27, 0
      %p279 = por %p277, %p278
      %p280 = scmp.ne.s32.totalorder %s268, %s269
      %p281 = scmp.eq.s32.totalorder %s28, 1
      %p282 = por %p280, %p281
      %p284 = scmp.ne.s32.totalorder %s269, %s283
      %p285 = scmp.eq.s32.totalorder %s28, 0
      %p286 = por %p284, %p285
      %s288 = sadd.s32 %s287, 1
      %p291 = scmp.eq.s32.totalorder %s22, 1
      %p292 = scmp.ne.s32.totalorder %s287, %s289
      %p293 = scmp.eq.s32.totalorder %s22, 0
      %p294 = por %p292, %p293
      %p295 = scmp.ne.s32.totalorder %s287, %s289
      %p296 = scmp.eq.s32.totalorder %s27, 1
      %p297 = por %p295, %p296
      %p298 = scmp.ne.s32.totalorder %s289, %s290
      %p299 = scmp.eq.s32.totalorder %s27, 0
      %p300 = por %p298, %p299
      %p301 = scmp.ne.s32.totalorder %s289, %s290
      %p302 = scmp.eq.s32.totalorder %s28, 1
      %p303 = por %p301, %p302
      %p305 = scmp.ne.s32.totalorder %s290, %s304
      %p306 = scmp.eq.s32.totalorder %s28, 0
      %p307 = por %p305, %p306
      %s308 = ssub.s32 %s22, %s29
      %p309 = scmp.eq.s32.totalorder %s308, 0
      %s311 = sadd.s32 %s310, 1
      %s312 = scalar_select %p309, %s310, %s311
      %p315 = pneg %p309
      %p316 = scmp.eq.s32.totalorder %s22, 1
      %p317 = por %p315, %p316
      %p318 = scmp.ne.s32.totalorder %s310, %s313
      %p319 = scmp.eq.s32.totalorder %s22, 0
      %p320 = por %p318, %p319
      %p321 = scmp.ne.s32.totalorder %s310, %s313
      %p322 = scmp.eq.s32.totalorder %s27, 1
      %p323 = por %p321, %p322
      %p324 = scmp.ne.s32.totalorder %s313, %s314
      %p325 = scmp.eq.s32.totalorder %s27, 0
      %p326 = por %p324, %p325
      %p327 = scmp.ne.s32.totalorder %s313, %s314
      %p328 = scmp.eq.s32.totalorder %s28, 1
      %p329 = por %p327, %p328
      %p331 = scmp.ne.s32.totalorder %s314, %s330
      %p332 = scmp.eq.s32.totalorder %s28, 0
      %p333 = por %p331, %p332
      %p334 = scmp.le.s32.totalorder 1, %s22
      %p335 = scmp.lt.s32.totalorder %s22, 3
      %p336 = pnand %p334, %p335
      %p337 = pneg %p336
      // Predicated region
      $region9: #{_lambda_.1} parent=5 // pred_check
        _
      $region10: #{_lambda_.1} parent=5 // pred_check_branch
        %339 = sbr.rel (%p336) target = $region12
      $region11: #{_lambda_.1} parent=5 // pred_region
        %s340 = ssub.s32 %s22, 1
        // Predicated region
        $region13: #{_lambda_.1} parent=11 // pred_check
          %p341 = pneg %p69
        $region14: #{_lambda_.1} parent=11 // pred_check_branch
          %343 = sbr.rel (%p341) target = $region16
        $region15: #{_lambda_.1} parent=11 // pred_region
          _
        $region16: #{_lambda_.1} parent=11 // pred_fallthru
          _
        // Predicated region
        $region17: #{_lambda_.1} parent=11 // pred_check
          %p344 = pneg %p90
        $region18: #{_lambda_.1} parent=11 // pred_check_branch
          %346 = sbr.rel (%p344) target = $region20
        $region19: #{_lambda_.1} parent=11 // pred_region
          _
        $region20: #{_lambda_.1} parent=11 // pred_fallthru
          _
        // Predicated region
        $region21: #{_lambda_.1} parent=11 // pred_check
          %p347 = pneg %p111
        $region22: #{_lambda_.1} parent=11 // pred_check_branch
          %349 = sbr.rel (%p347) target = $region24
        $region23: #{_lambda_.1} parent=11 // pred_region
          _
        $region24: #{_lambda_.1} parent=11 // pred_fallthru
          _
        // Predicated region
        $region25: #{_lambda_.1} parent=11 // pred_check
          %p350 = pneg %p132
        $region26: #{_lambda_.1} parent=11 // pred_check_branch
          %352 = sbr.rel (%p350) target = $region28
        $region27: #{_lambda_.1} parent=11 // pred_region
          _
        $region28: #{_lambda_.1} parent=11 // pred_fallthru
          _
        // Predicated region
        $region29: #{_lambda_.1} parent=11 // pred_check
          %p353 = pneg %p153
        $region30: #{_lambda_.1} parent=11 // pred_check_branch
          %355 = sbr.rel (%p353) target = $region32
        $region31: #{_lambda_.1} parent=11 // pred_region
          _
        $region32: #{_lambda_.1} parent=11 // pred_fallthru
          _
        // Predicated region
        $region33: #{_lambda_.1} parent=11 // pred_check
          %p356 = pneg %p174
        $region34: #{_lambda_.1} parent=11 // pred_check_branch
          %358 = sbr.rel (%p356) target = $region36
        $region35: #{_lambda_.1} parent=11 // pred_region
          _
        $region36: #{_lambda_.1} parent=11 // pred_fallthru
          _
        // Predicated region
        $region37: #{_lambda_.1} parent=11 // pred_check
          %p359 = pneg %p195
        $region38: #{_lambda_.1} parent=11 // pred_check_branch
          %361 = sbr.rel (%p359) target = $region40
        $region39: #{_lambda_.1} parent=11 // pred_region
          _
        $region40: #{_lambda_.1} parent=11 // pred_fallthru
          _
        // Predicated region
        $region41: #{_lambda_.1} parent=11 // pred_check
          %p362 = pneg %p216
        $region42: #{_lambda_.1} parent=11 // pred_check_branch
          %364 = sbr.rel (%p362) target = $region44
        $region43: #{_lambda_.1} parent=11 // pred_region
          _
        $region44: #{_lambda_.1} parent=11 // pred_fallthru
          _
        // Predicated region
        $region45: #{_lambda_.1} parent=11 // pred_check
          %p365 = pneg %p237
        $region46: #{_lambda_.1} parent=11 // pred_check_branch
          %367 = sbr.rel (%p365) target = $region48
        $region47: #{_lambda_.1} parent=11 // pred_region
          _
        $region48: #{_lambda_.1} parent=11 // pred_fallthru
          _
        // Predicated region
        $region49: #{_lambda_.1} parent=11 // pred_check
          %p368 = pneg %p258
        $region50: #{_lambda_.1} parent=11 // pred_check_branch
          %370 = sbr.rel (%p368) target = $region52
        $region51: #{_lambda_.1} parent=11 // pred_region
          _
        $region52: #{_lambda_.1} parent=11 // pred_fallthru
          _
        // Predicated region
        $region53: #{_lambda_.1} parent=11 // pred_check
          %p371 = pneg %p279
        $region54: #{_lambda_.1} parent=11 // pred_check_branch
          %373 = sbr.rel (%p371) target = $region56
        $region55: #{_lambda_.1} parent=11 // pred_region
          _
        $region56: #{_lambda_.1} parent=11 // pred_fallthru
          _
        // Predicated region
        $region57: #{_lambda_.1} parent=11 // pred_check
          %p374 = pneg %p300
        $region58: #{_lambda_.1} parent=11 // pred_check_branch
          %376 = sbr.rel (%p374) target = $region60
        $region59: #{_lambda_.1} parent=11 // pred_region
          _
        $region60: #{_lambda_.1} parent=11 // pred_fallthru
          _
      $region12: #{_lambda_.1} parent=5 // pred_fallthru
        _
      %p377 = scmp.lt.s32.totalorder %s22, 2
      // Predicated region
      $region61: #{_lambda_.1} parent=5 // pred_check
        %p378 = pneg %p377
      $region62: #{_lambda_.1} parent=5 // pred_check_branch
        %380 = sbr.rel (%p378) target = $region64
      $region63: #{_lambda_.1} parent=5 // pred_region
        // Predicated region
        $region65: #{_lambda_.1} parent=63 // pred_check
          %p381 = pneg %p42
        $region66: #{_lambda_.1} parent=63 // pred_check_branch
          %383 = sbr.rel (%p381) target = $region68
        $region67: #{_lambda_.1} parent=63 // pred_region
          %s384 = sand.u32 %s32, 1
          %s385 = sand.u32 %s32, 1
          %s386 = smul.addr %s385, 256
          %s387 = scalar_lea.vmem [#allocation2], %s386
          %s388 = smul.addr %s22, 8
          %s389 = scalar_lea.vmem %s0, %s388
          // Predicated region
          $region69: #{_lambda_.1} parent=67 // pred_check
            _
          $region70: #{_lambda_.1} parent=67 // pred_check_branch
            %391 = sbr.rel (0) target = $region72
          $region71: #{_lambda_.1} parent=67 // pred_region
            // Predicated region
            $region73: #{_lambda_.1} parent=71 // pred_check
              _
            $region74: #{_lambda_.1} parent=71 // pred_check_branch
              %393 = sbr.rel (0) target = $region76
            $region75: #{_lambda_.1} parent=71 // pred_region
              // Predicated region
              $region88: #{_lambda_.1} parent=75 // pred_check
                _
              $region89: #{_lambda_.1} parent=75 // pred_check_branch
                %470 = sbr.rel (0) target = $region91
              $region90: #{_lambda_.1} parent=75 // pred_region
                loop: start=0, step=1, limit=1
                $region92: #{_lambda_.1} parent=90 // loop_pre_header
                  _
                $region93: #{_lambda_.1} parent=90 // loop_header
                  %s472 = sphi 0, %s476
                  %p473 = scmp.ge.s32.totalorder %s472, 1
                  %s477 = sphi %s389, %s389
                  %s478 = sphi %s387, %s387
                $region94: #{_lambda_.1} parent=90 // loop_header_branch
                  %475 = sbr.rel (%p473) target = $region98
                $region95: #{_lambda_.1} parent=90 // loop_body
                  %v479 = vld [vmem:[%s477] sm:$0xff]
                  %480 = vst [vmem:[%s478] sm:$0xff] %v479
                  %v481 = vld [vmem:[%s477 + $0x10] sm:$0xff]
                  %482 = vst [vmem:[%s478 + $0x8] sm:$0xff] %v481
                  %v483 = vld [vmem:[%s477 + $0x20] sm:$0xff]
                  %484 = vst [vmem:[%s478 + $0x10] sm:$0xff] %v483
                  %v485 = vld [vmem:[%s477 + $0x30] sm:$0xff]
                  %486 = vst [vmem:[%s478 + $0x18] sm:$0xff] %v485
                  %v487 = vld [vmem:[%s477 + $0x40] sm:$0xff]
                  %488 = vst [vmem:[%s478 + $0x20] sm:$0xff] %v487
                  %v489 = vld [vmem:[%s477 + $0x50] sm:$0xff]
                  %490 = vst [vmem:[%s478 + $0x28] sm:$0xff] %v489
                  %v491 = vld [vmem:[%s477 + $0x60] sm:$0xff]
                  %492 = vst [vmem:[%s478 + $0x30] sm:$0xff] %v491
                  %v493 = vld [vmem:[%s477 + $0x70] sm:$0xff]
                  %494 = vst [vmem:[%s478 + $0x38] sm:$0xff] %v493
                  %v495 = vld [vmem:[%s477 + $0x80] sm:$0xff]
                  %496 = vst [vmem:[%s478 + $0x40] sm:$0xff] %v495
                  %v497 = vld [vmem:[%s477 + $0x90] sm:$0xff]
                  %498 = vst [vmem:[%s478 + $0x48] sm:$0xff] %v497
                  %v499 = vld [vmem:[%s477 + $0xa0] sm:$0xff]
                  %500 = vst [vmem:[%s478 + $0x50] sm:$0xff] %v499
                  %v501 = vld [vmem:[%s477 + $0xb0] sm:$0xff]
                  %502 = vst [vmem:[%s478 + $0x58] sm:$0xff] %v501
                  %v503 = vld [vmem:[%s477 + $0xc0] sm:$0xff]
                  %504 = vst [vmem:[%s478 + $0x60] sm:$0xff] %v503
                  %v505 = vld [vmem:[%s477 + $0xd0] sm:$0xff]
                  %506 = vst [vmem:[%s478 + $0x68] sm:$0xff] %v505
                  %v507 = vld [vmem:[%s477 + $0xe0] sm:$0xff]
                  %508 = vst [vmem:[%s478 + $0x70] sm:$0xff] %v507
                  %v509 = vld [vmem:[%s477 + $0xf0] sm:$0xff]
                  %510 = vst [vmem:[%s478 + $0x78] sm:$0xff] %v509
                  %v511 = vld [vmem:[%s477 + $0x100] sm:$0xff]
                  %512 = vst [vmem:[%s478 + $0x80] sm:$0xff] %v511
                  %v513 = vld [vmem:[%s477 + $0x110] sm:$0xff]
                  %514 = vst [vmem:[%s478 + $0x88] sm:$0xff] %v513
                  %v515 = vld [vmem:[%s477 + $0x120] sm:$0xff]
                  %516 = vst [vmem:[%s478 + $0x90] sm:$0xff] %v515
                  %v517 = vld [vmem:[%s477 + $0x130] sm:$0xff]
                  %518 = vst [vmem:[%s478 + $0x98] sm:$0xff] %v517
                  %v519 = vld [vmem:[%s477 + $0x140] sm:$0xff]
                  %520 = vst [vmem:[%s478 + $0xa0] sm:$0xff] %v519
                  %v521 = vld [vmem:[%s477 + $0x150] sm:$0xff]
                  %522 = vst [vmem:[%s478 + $0xa8] sm:$0xff] %v521
                  %v523 = vld [vmem:[%s477 + $0x160] sm:$0xff]
                  %524 = vst [vmem:[%s478 + $0xb0] sm:$0xff] %v523
                  %v525 = vld [vmem:[%s477 + $0x170] sm:$0xff]
                  %526 = vst [vmem:[%s478 + $0xb8] sm:$0xff] %v525
                  %v527 = vld [vmem:[%s477 + $0x180] sm:$0xff]
                  %528 = vst [vmem:[%s478 + $0xc0] sm:$0xff] %v527
                  %v529 = vld [vmem:[%s477 + $0x190] sm:$0xff]
                  %530 = vst [vmem:[%s478 + $0xc8] sm:$0xff] %v529
                  %v531 = vld [vmem:[%s477 + $0x1a0] sm:$0xff]
                  %532 = vst [vmem:[%s478 + $0xd0] sm:$0xff] %v531
                  %v533 = vld [vmem:[%s477 + $0x1b0] sm:$0xff]
                  %534 = vst [vmem:[%s478 + $0xd8] sm:$0xff] %v533
                  %v535 = vld [vmem:[%s477 + $0x1c0] sm:$0xff]
                  %536 = vst [vmem:[%s478 + $0xe0] sm:$0xff] %v535
                  %v537 = vld [vmem:[%s477 + $0x1d0] sm:$0xff]
                  %538 = vst [vmem:[%s478 + $0xe8] sm:$0xff] %v537
                  %v539 = vld [vmem:[%s477 + $0x1e0] sm:$0xff]
                  %540 = vst [vmem:[%s478 + $0xf0] sm:$0xff] %v539
                  %v541 = vld [vmem:[%s477 + $0x1f0] sm:$0xff]
                  %542 = vst [vmem:[%s478 + $0xf8] sm:$0xff] %v541
                $region96: #{_lambda_.1} parent=90 // loop_footer
                  %s476 = sadd.s32 1, %s472
                $region97: #{_lambda_.1} parent=90 // loop_footer_branch
                  %471 = sbr.rel target = $region93
                $region98: #{_lambda_.1} parent=90 // loop_exit
                  _
              $region91: #{_lambda_.1} parent=75 // pred_fallthru
                _
              // Predicated region
              $region99: #{_lambda_.1} parent=75 // pred_check
                _
              $region100: #{_lambda_.1} parent=75 // pred_check_branch
                %544 = sbr.rel target = $region102
              $region101: #{_lambda_.1} parent=75 // pred_region
                _
              $region102: #{_lambda_.1} parent=75 // pred_fallthru
                _
            $region76: #{_lambda_.1} parent=71 // pred_fallthru
              _
            // Predicated region
            $region77: #{_lambda_.1} parent=71 // pred_check
              _
            $region78: #{_lambda_.1} parent=71 // pred_check_branch
              %395 = sbr.rel target = $region80
            $region79: #{_lambda_.1} parent=71 // pred_region
              loop: start=0, step=1, limit=1
              $region81: #{_lambda_.1} parent=79 // loop_pre_header
                _
              $region82: #{_lambda_.1} parent=79 // loop_header
                %s398 = sphi 0, %s402
                %p399 = scmp.ge.s32.totalorder %s398, 1
                %s403 = sphi %s389, %s389
                %s404 = sphi %s387, %s387
              $region83: #{_lambda_.1} parent=79 // loop_header_branch
                %401 = sbr.rel (%p399) target = $region87
              $region84: #{_lambda_.1} parent=79 // loop_body
                %v405 = vld [vmem:[%s403] sm:$0xff]
                %406 = vst [vmem:[%s404] sm:$0xff] %v405
                %v407 = vld [vmem:[%s403 + $0x10] sm:$0xff]
                %408 = vst [vmem:[%s404 + $0x8] sm:$0xff] %v407
                %v409 = vld [vmem:[%s403 + $0x20] sm:$0xff]
                %410 = vst [vmem:[%s404 + $0x10] sm:$0xff] %v409
                %v411 = vld [vmem:[%s403 + $0x30] sm:$0xff]
                %412 = vst [vmem:[%s404 + $0x18] sm:$0xff] %v411
                %v413 = vld [vmem:[%s403 + $0x40] sm:$0xff]
                %414 = vst [vmem:[%s404 + $0x20] sm:$0xff] %v413
                %v415 = vld [vmem:[%s403 + $0x50] sm:$0xff]
                %416 = vst [vmem:[%s404 + $0x28] sm:$0xff] %v415
                %v417 = vld [vmem:[%s403 + $0x60] sm:$0xff]
                %418 = vst [vmem:[%s404 + $0x30] sm:$0xff] %v417
                %v419 = vld [vmem:[%s403 + $0x70] sm:$0xff]
                %420 = vst [vmem:[%s404 + $0x38] sm:$0xff] %v419
                %v421 = vld [vmem:[%s403 + $0x80] sm:$0xff]
                %422 = vst [vmem:[%s404 + $0x40] sm:$0xff] %v421
                %v423 = vld [vmem:[%s403 + $0x90] sm:$0xff]
                %424 = vst [vmem:[%s404 + $0x48] sm:$0xff] %v423
                %v425 = vld [vmem:[%s403 + $0xa0] sm:$0xff]
                %426 = vst [vmem:[%s404 + $0x50] sm:$0xff] %v425
                %v427 = vld [vmem:[%s403 + $0xb0] sm:$0xff]
                %428 = vst [vmem:[%s404 + $0x58] sm:$0xff] %v427
                %v429 = vld [vmem:[%s403 + $0xc0] sm:$0xff]
                %430 = vst [vmem:[%s404 + $0x60] sm:$0xff] %v429
                %v431 = vld [vmem:[%s403 + $0xd0] sm:$0xff]
                %432 = vst [vmem:[%s404 + $0x68] sm:$0xff] %v431
                %v433 = vld [vmem:[%s403 + $0xe0] sm:$0xff]
                %434 = vst [vmem:[%s404 + $0x70] sm:$0xff] %v433
                %v435 = vld [vmem:[%s403 + $0xf0] sm:$0xff]
                %436 = vst [vmem:[%s404 + $0x78] sm:$0xff] %v435
                %v437 = vld [vmem:[%s403 + $0x100] sm:$0xff]
                %438 = vst [vmem:[%s404 + $0x80] sm:$0xff] %v437
                %v439 = vld [vmem:[%s403 + $0x110] sm:$0xff]
                %440 = vst [vmem:[%s404 + $0x88] sm:$0xff] %v439
                %v441 = vld [vmem:[%s403 + $0x120] sm:$0xff]
                %442 = vst [vmem:[%s404 + $0x90] sm:$0xff] %v441
                %v443 = vld [vmem:[%s403 + $0x130] sm:$0xff]
                %444 = vst [vmem:[%s404 + $0x98] sm:$0xff] %v443
                %v445 = vld [vmem:[%s403 + $0x140] sm:$0xff]
                %446 = vst [vmem:[%s404 + $0xa0] sm:$0xff] %v445
                %v447 = vld [vmem:[%s403 + $0x150] sm:$0xff]
                %448 = vst [vmem:[%s404 + $0xa8] sm:$0xff] %v447
                %v449 = vld [vmem:[%s403 + $0x160] sm:$0xff]
                %450 = vst [vmem:[%s404 + $0xb0] sm:$0xff] %v449
                %v451 = vld [vmem:[%s403 + $0x170] sm:$0xff]
                %452 = vst [vmem:[%s404 + $0xb8] sm:$0xff] %v451
                %v453 = vld [vmem:[%s403 + $0x180] sm:$0xff]
                %454 = vst [vmem:[%s404 + $0xc0] sm:$0xff] %v453
                %v455 = vld [vmem:[%s403 + $0x190] sm:$0xff]
                %456 = vst [vmem:[%s404 + $0xc8] sm:$0xff] %v455
                %v457 = vld [vmem:[%s403 + $0x1a0] sm:$0xff]
                %458 = vst [vmem:[%s404 + $0xd0] sm:$0xff] %v457
                %v459 = vld [vmem:[%s403 + $0x1b0] sm:$0xff]
                %460 = vst [vmem:[%s404 + $0xd8] sm:$0xff] %v459
                %v461 = vld [vmem:[%s403 + $0x1c0] sm:$0xff]
                %462 = vst [vmem:[%s404 + $0xe0] sm:$0xff] %v461
                %v463 = vld [vmem:[%s403 + $0x1d0] sm:$0xff]
                %464 = vst [vmem:[%s404 + $0xe8] sm:$0xff] %v463
                %v465 = vld [vmem:[%s403 + $0x1e0] sm:$0xff]
                %466 = vst [vmem:[%s404 + $0xf0] sm:$0xff] %v465
                %v467 = vld [vmem:[%s403 + $0x1f0] sm:$0xff]
                %468 = vst [vmem:[%s404 + $0xf8] sm:$0xff] %v467
              $region85: #{_lambda_.1} parent=79 // loop_footer
                %s402 = sadd.s32 1, %s398
              $region86: #{_lambda_.1} parent=79 // loop_footer_branch
                %397 = sbr.rel target = $region82
              $region87: #{_lambda_.1} parent=79 // loop_exit
                _
            $region80: #{_lambda_.1} parent=71 // pred_fallthru
              _
          $region72: #{_lambda_.1} parent=67 // pred_fallthru
            _
          %545 = vnop
        $region68: #{_lambda_.1} parent=63 // pred_fallthru
          _
      $region64: #{_lambda_.1} parent=5 // pred_fallthru
        _
      %p546 = scmp.le.s32.totalorder 1, %s22
      %p547 = scmp.lt.s32.totalorder %s22, 3
      %p548 = pnand %p546, %p547
      %p549 = pneg %p548
      // Predicated region
      $region103: #{_lambda_.1} parent=5 // pred_check
        _
      $region104: #{_lambda_.1} parent=5 // pred_check_branch
        %551 = sbr.rel (%p548) target = $region106
      $region105: #{_lambda_.1} parent=5 // pred_region
        %s552 = ssub.s32 %s22, 1
        %s553 = sand.u32 %s35, 1
        %s554 = sand.u32 %s35, 1
        %s555 = smul.addr %s554, 256
        %s556 = scalar_lea.vmem [#allocation2], %s555
        // Predicated region
        $region107: #{_lambda_.1} parent=105 // pred_check
          %p557 = pneg %p48
        $region108: #{_lambda_.1} parent=105 // pred_check_branch
          %559 = sbr.rel (%p557) target = $region110
        $region109: #{_lambda_.1} parent=105 // pred_region
          _
        $region110: #{_lambda_.1} parent=105 // pred_fallthru
          _
        %s560 = sand.u32 %s35, 1
        %s561 = sand.u32 %s35, 1
        %s562 = smul.addr %s561, 256
        %s563 = scalar_lea.vmem [#allocation2], %s562
        %p564 = pneg %p48
        %p565 = pneg %p45
        %p566 = pneg %p69
        %p567 = pneg %p66
        %p568 = pneg %p90
        %p569 = pneg %p87
        %p570 = pneg %p111
        %p571 = pneg %p108
        %p572 = pneg %p132
        %p573 = pneg %p129
        %p574 = pneg %p153
        %p575 = pneg %p150
        %p576 = pneg %p174
        %p577 = pneg %p171
        %p578 = pneg %p195
        %p579 = pneg %p192
        %p580 = pneg %p216
        %p581 = pneg %p213
        %p582 = pneg %p237
        %p583 = pneg %p234
        %p584 = pneg %p258
        %p585 = pneg %p255
        %p586 = pneg %p279
        %p587 = pneg %p276
        %p588 = pneg %p300
        %p589 = pneg %p297
        %p590 = pneg %p326
        %p591 = pneg %p323
        %s592 = sand.u32 %s313, 1
        %s593 = scalar_lea.sflag [#allocation4], %s592
        %s594 = sand.u32 %s313, 1
        %s595 = smul.addr %s594, 8
        %s596 = scalar_lea.vmem [#allocation3], %s595
        %s597 = scalar_lea.vmem %s556, 8 [#allocation2]
        %v598 = vld [vmem:[%s597] sm:$0xff]
        %s599 = scalar_lea.vmem %s556, 24 [#allocation2]
        %v600 = vld [vmem:[%s599] sm:$0xff]
        %s601 = scalar_lea.vmem %s556, 40 [#allocation2]
        %v602 = vld [vmem:[%s601] sm:$0xff]
        %s603 = scalar_lea.vmem %s556, 56 [#allocation2]
        %v604 = vld [vmem:[%s603] sm:$0xff]
        %s605 = scalar_lea.vmem %s556, 72 [#allocation2]
        %v606 = vld [vmem:[%s605] sm:$0xff]
        %s607 = scalar_lea.vmem %s556, 88 [#allocation2]
        %v608 = vld [vmem:[%s607] sm:$0xff]
        %s609 = scalar_lea.vmem %s556, 104 [#allocation2]
        %v610 = vld [vmem:[%s609] sm:$0xff]
        %s611 = scalar_lea.vmem %s556, 120 [#allocation2]
        %v612 = vld [vmem:[%s611] sm:$0xff]
        %s613 = scalar_lea.vmem %s556, 136 [#allocation2]
        %v614 = vld [vmem:[%s613] sm:$0xff]
        %s615 = scalar_lea.vmem %s556, 152 [#allocation2]
        %v616 = vld [vmem:[%s615] sm:$0xff]
        %s617 = scalar_lea.vmem %s556, 168 [#allocation2]
        %v618 = vld [vmem:[%s617] sm:$0xff]
        %s619 = scalar_lea.vmem %s556, 184 [#allocation2]
        %v620 = vld [vmem:[%s619] sm:$0xff]
        %s621 = scalar_lea.vmem %s556, 200 [#allocation2]
        %v622 = vld [vmem:[%s621] sm:$0xff]
        %s623 = scalar_lea.vmem %s556, 216 [#allocation2]
        %v624 = vld [vmem:[%s623] sm:$0xff]
        %s625 = scalar_lea.vmem %s556, 232 [#allocation2]
        %v626 = vld [vmem:[%s625] sm:$0xff]
        %v627 = vld [vmem:[%s1] sm:$0xff]
        %v628 = vld [vmem:[%s1 + $0x8] sm:$0xff]
        %v629 = vld [vmem:[%s1 + $0x10] sm:$0xff]
        %v630 = vld [vmem:[%s1 + $0x18] sm:$0xff]
        %v631 = vld [vmem:[%s1 + $0x20] sm:$0xff]
        %v632 = vld [vmem:[%s1 + $0x28] sm:$0xff]
        %v633 = vld [vmem:[%s1 + $0x30] sm:$0xff]
        %v634 = vld [vmem:[%s1 + $0x38] sm:$0xff]
        %v635 = vld [vmem:[%s1 + $0x40] sm:$0xff]
        %v636 = vld [vmem:[%s1 + $0x48] sm:$0xff]
        %v637 = vld [vmem:[%s1 + $0x50] sm:$0xff]
        %v638 = vld [vmem:[%s1 + $0x58] sm:$0xff]
        %v639 = vld [vmem:[%s556] sm:$0xff]
        %s640 = scalar_lea.vmem %s556, 16 [#allocation2]
        %v641 = vld [vmem:[%s640] sm:$0xff]
        %s642 = scalar_lea.vmem %s556, 32 [#allocation2]
        %v643 = vld [vmem:[%s642] sm:$0xff]
        %s644 = scalar_lea.vmem %s556, 48 [#allocation2]
        %v645 = vld [vmem:[%s644] sm:$0xff]
        %s646 = scalar_lea.vmem %s556, 64 [#allocation2]
        %v647 = vld [vmem:[%s646] sm:$0xff]
        %s648 = scalar_lea.vmem %s556, 80 [#allocation2]
        %v649 = vld [vmem:[%s648] sm:$0xff]
        %s650 = scalar_lea.vmem %s556, 96 [#allocation2]
        %v651 = vld [vmem:[%s650] sm:$0xff]
        %s652 = scalar_lea.vmem %s556, 112 [#allocation2]
        %v653 = vld [vmem:[%s652] sm:$0xff]
        %s654 = scalar_lea.vmem %s556, 128 [#allocation2]
        %v655 = vld [vmem:[%s654] sm:$0xff]
        %s656 = scalar_lea.vmem %s556, 144 [#allocation2]
        %v657 = vld [vmem:[%s656] sm:$0xff]
        %s658 = scalar_lea.vmem %s556, 160 [#allocation2]
        %v659 = vld [vmem:[%s658] sm:$0xff]
        %s660 = scalar_lea.vmem %s556, 176 [#allocation2]
        %v661 = vld [vmem:[%s660] sm:$0xff]
        %s662 = scalar_lea.vmem %s556, 192 [#allocation2]
        %v663 = vld [vmem:[%s662] sm:$0xff]
        %s664 = scalar_lea.vmem %s556, 208 [#allocation2]
        %v665 = vld [vmem:[%s664] sm:$0xff]
        %s666 = scalar_lea.vmem %s556, 224 [#allocation2]
        %v667 = vld [vmem:[%s666] sm:$0xff]
        %s668 = scalar_lea.vmem %s556, 240 [#allocation2]
        %v669 = vld [vmem:[%s668] sm:$0xff]
        %s670 = scalar_lea.vmem %s1, 96
        %v671 = vld [vmem:[%s670] sm:$0xff]
        %v672 = vld [vmem:[%s670 + $0x8] sm:$0xff]
        %v673 = vld [vmem:[%s670 + $0x10] sm:$0xff]
        %v674 = vld [vmem:[%s670 + $0x18] sm:$0xff]
        %v675 = vld [vmem:[%s670 + $0x20] sm:$0xff]
        %v676 = vld [vmem:[%s670 + $0x28] sm:$0xff]
        %v677 = vld [vmem:[%s670 + $0x30] sm:$0xff]
        %v678 = vld [vmem:[%s670 + $0x38] sm:$0xff]
        %v679 = vld [vmem:[%s670 + $0x40] sm:$0xff]
        %v680 = vld [vmem:[%s670 + $0x48] sm:$0xff]
        %v681 = vld [vmem:[%s670 + $0x50] sm:$0xff]
        %v682 = vld [vmem:[%s670 + $0x58] sm:$0xff]
        %vm683 = vcmask 785408
        %v685 = vsel %vm683, %v639, 0
        %v688 = vsel %vm683, %v641, 0
        %v691 = vsel %vm683, %v643, 0
        %v694 = vsel %vm683, %v645, 0
        %v697 = vsel %vm683, %v647, 0
        %v700 = vsel %vm683, %v649, 0
        %v703 = vsel %vm683, %v651, 0
        %v706 = vsel %vm683, %v653, 0
        %v709 = vsel %vm683, %v655, 0
        %v712 = vsel %vm683, %v657, 0
        %v715 = vsel %vm683, %v659, 0
        %v718 = vsel %vm683, %v661, 0
        %v721 = vsel %vm683, %v663, 0
        %v724 = vsel %vm683, %v665, 0
        %v727 = vsel %vm683, %v667, 0
        %v730 = vsel %vm683, %v669, 0
        %732 = vmatprep.subr.mxu0 0.0
        %733 = vmatpush1.msra.mxu0 %v671
        %734 = vmatprep.subr.mxu0 0.0
        %735 = vmatpush1.msra.mxu0 %v672
        %736 = vmatprep.subr.mxu0 0.0
        %737 = vmatpush1.msra.mxu0 %v673
        %738 = vmatprep.subr.mxu0 0.0
        %739 = vmatpush1.msra.mxu0 %v674
        %740 = vmatprep.subr.mxu0 0.0
        %741 = vmatpush1.msra.mxu0 %v675
        %742 = vmatprep.subr.mxu0 0.0
        %743 = vmatpush1.msra.mxu0 %v676
        %744 = vmatprep.subr.mxu0 0.0
        %745 = vmatpush1.msra.mxu0 %v677
        %746 = vmatprep.subr.mxu0 0.0
        %747 = vmatpush1.msra.mxu0 %v678
        %748 = vmatprep.subr.mxu0 0.0
        %749 = vmatpush1.msra.mxu0 %v679
        %750 = vmatprep.subr.mxu0 0.0
        %751 = vmatpush1.msra.mxu0 %v680
        %752 = vmatprep.subr.mxu0 0.0
        %753 = vmatpush1.msra.mxu0 %v681
        %754 = vmatprep.subr.mxu0 0.0
        %755 = vmatpush1.msra.mxu0 %v682
        %756 = vmatprep.subr.mxu0 0.0
        %757 = vmatpush1.msra.mxu0 0.0
        %758 = vmatprep.subr.mxu0 0.0
        %759 = vmatpush1.msra.mxu0 0.0
        %760 = vmatprep.subr.mxu0 0.0
        %761 = vmatpush1.msra.mxu0 0.0
        %762 = vmatprep.subr.mxu0 0.0
        %763 = vmatpush1.msra.mxu0 0.0
        %764 = vmatprep.subr.mxu0 0.0
        %765 = vmatpush1.msra.mxu0 0.0
        %766 = vmatprep.subr.mxu0 0.0
        %767 = vmatpush1.msra.mxu0 0.0
        %768 = vmatprep.subr.mxu0 0.0
        %769 = vmatpush1.msra.mxu0 0.0
        %770 = vmatprep.subr.mxu0 0.0
        %771 = vmatpush1.msra.mxu0 0.0
        %772 = vmatprep.subr.mxu0 0.0
        %773 = vmatpush1.msra.mxu0 0.0
        %774 = vmatprep.subr.mxu0 0.0
        %775 = vmatpush1.msra.mxu0 0.0
        %776 = vmatprep.subr.mxu0 0.0
        %777 = vmatpush1.msra.mxu0 0.0
        %778 = vmatprep.subr.mxu0 0.0
        %779 = vmatpush1.msra.mxu0 0.0
        %780 = vmatprep.subr.mxu0 0.0
        %781 = vmatpush1.msra.mxu0 0.0
        %782 = vmatprep.subr.mxu0 0.0
        %783 = vmatpush1.msra.mxu0 0.0
        %784 = vmatprep.subr.mxu0 0.0
        %785 = vmatpush1.msra.mxu0 0.0
        %786 = vmatprep.subr.mxu0 0.0
        %787 = vmatpush1.msra.mxu0 0.0
        %788 = vmatprep.subr.mxu0 0.0
        %789 = vmatpush1.msra.mxu0 0.0
        %790 = vmatprep.subr.mxu0 0.0
        %791 = vmatpush1.msra.mxu0 0.0
        %792 = vmatprep.subr.mxu0 0.0
        %793 = vmatpush1.msra.mxu0 0.0
        %794 = vmatprep.subr.mxu0 0.0
        %795 = vmatpush1.msra.mxu0 0.0
        %796 = vmatprep.mubr.f32.mxu0 0.0
        %797 = vmatmul.mubr.f32.gmra.mrb[0].mxu0 %v685
        %v798 = vpop.f32.mrb[0].mxu0
        %v799 = vadd.f32 0.0, %v798
        %v800 = vpop.f32.mrb[0].mxu0
        %801 = vmatprep.mubr.f32.mxu0 0.0
        %802 = vmatmul.mubr.f32.gmra.mrb[0].mxu0 %v688
        %v803 = vpop.f32.mrb[0].mxu0
        %v804 = vadd.f32 0.0, %v803
        %v805 = vpop.f32.mrb[0].mxu0
        %806 = vmatprep.mubr.f32.mxu0 0.0
        %807 = vmatmul.mubr.f32.gmra.mrb[0].mxu0 %v691
        %v808 = vpop.f32.mrb[0].mxu0
        %v809 = vadd.f32 0.0, %v808
        %v810 = vpop.f32.mrb[0].mxu0
        %811 = vmatprep.mubr.f32.mxu0 0.0
        %812 = vmatmul.mubr.f32.gmra.mrb[0].mxu0 %v694
        %v813 = vpop.f32.mrb[0].mxu0
        %v814 = vadd.f32 0.0, %v813
        %v815 = vpop.f32.mrb[0].mxu0
        %816 = vmatprep.mubr.f32.mxu0 0.0
        %817 = vmatmul.mubr.f32.gmra.mrb[0].mxu0 %v697
        %v818 = vpop.f32.mrb[0].mxu0
        %v819 = vadd.f32 0.0, %v818
        %v820 = vpop.f32.mrb[0].mxu0
        %821 = vmatprep.mubr.f32.mxu0 0.0
        %822 = vmatmul.mubr.f32.gmra.mrb[0].mxu0 %v700
        %v823 = vpop.f32.mrb[0].mxu0
        %v824 = vadd.f32 0.0, %v823
        %v825 = vpop.f32.mrb[0].mxu0
        %826 = vmatprep.mubr.f32.mxu0 0.0
        %827 = vmatmul.mubr.f32.gmra.mrb[0].mxu0 %v703
        %v828 = vpop.f32.mrb[0].mxu0
        %v829 = vadd.f32 0.0, %v828
        %v830 = vpop.f32.mrb[0].mxu0
        %831 = vmatprep.mubr.f32.mxu0 0.0
        %832 = vmatmul.mubr.f32.gmra.mrb[0].mxu0 %v706
        %v833 = vpop.f32.mrb[0].mxu0
        %v834 = vadd.f32 0.0, %v833
        %v835 = vpop.f32.mrb[0].mxu0
        %836 = vmatprep.mubr.f32.mxu0 0.0
        %837 = vmatmul.mubr.f32.gmra.mrb[0].mxu0 %v709
        %v838 = vpop.f32.mrb[0].mxu0
        %v839 = vadd.f32 0.0, %v838
        %v840 = vpop.f32.mrb[0].mxu0
        %841 = vmatprep.mubr.f32.mxu0 0.0
        %842 = vmatmul.mubr.f32.gmra.mrb[0].mxu0 %v712
        %v843 = vpop.f32.mrb[0].mxu0
        %v844 = vadd.f32 0.0, %v843
        %v845 = vpop.f32.mrb[0].mxu0
        %846 = vmatprep.mubr.f32.mxu0 0.0
        %847 = vmatmul.mubr.f32.gmra.mrb[0].mxu0 %v715
        %v848 = vpop.f32.mrb[0].mxu0
        %v849 = vadd.f32 0.0, %v848
        %v850 = vpop.f32.mrb[0].mxu0
        %851 = vmatprep.mubr.f32.mxu0 0.0
        %852 = vmatmul.mubr.f32.gmra.mrb[0].mxu0 %v718
        %v853 = vpop.f32.mrb[0].mxu0
        %v854 = vadd.f32 0.0, %v853
        %v855 = vpop.f32.mrb[0].mxu0
        %856 = vmatprep.mubr.f32.mxu0 0.0
        %857 = vmatmul.mubr.f32.gmra.mrb[0].mxu0 %v721
        %v858 = vpop.f32.mrb[0].mxu0
        %v859 = vadd.f32 0.0, %v858
        %v860 = vpop.f32.mrb[0].mxu0
        %861 = vmatprep.mubr.f32.mxu0 0.0
        %862 = vmatmul.mubr.f32.gmra.mrb[0].mxu0 %v724
        %v863 = vpop.f32.mrb[0].mxu0
        %v864 = vadd.f32 0.0, %v863
        %v865 = vpop.f32.mrb[0].mxu0
        %866 = vmatprep.mubr.f32.mxu0 0.0
        %867 = vmatmul.mubr.f32.gmra.mrb[0].mxu0 %v727
        %v868 = vpop.f32.mrb[0].mxu0
        %v869 = vadd.f32 0.0, %v868
        %v870 = vpop.f32.mrb[0].mxu0
        %871 = vmatprep.mubr.f32.mxu0 0.0
        %872 = vmatmul.mubr.f32.gmra.mrb[0].mxu0 %v730
        %v873 = vpop.f32.mrb[0].mxu0
        %v874 = vadd.f32 0.0, %v873
        %v875 = vpop.f32.mrb[0].mxu0
        %876 = vdwg.mxu0
        %v878 = vsel %vm683, %v598, 0
        %v881 = vsel %vm683, %v600, 0
        %v884 = vsel %vm683, %v602, 0
        %v887 = vsel %vm683, %v604, 0
        %v890 = vsel %vm683, %v606, 0
        %v893 = vsel %vm683, %v608, 0
        %v896 = vsel %vm683, %v610, 0
        %v899 = vsel %vm683, %v612, 0
        %v902 = vsel %vm683, %v614, 0
        %v905 = vsel %vm683, %v616, 0
        %v908 = vsel %vm683, %v618, 0
        %v911 = vsel %vm683, %v620, 0
        %v914 = vsel %vm683, %v622, 0
        %v917 = vsel %vm683, %v624, 0
        %v920 = vsel %vm683, %v626, 0
        %922 = vmatprep.subr.mxu0 0.0
        %923 = vmatpush1.msra.mxu0 %v627
        %924 = vmatprep.subr.mxu0 0.0
        %925 = vmatpush1.msra.mxu0 %v628
        %926 = vmatprep.subr.mxu0 0.0
        %927 = vmatpush1.msra.mxu0 %v629
        %928 = vmatprep.subr.mxu0 0.0
        %929 = vmatpush1.msra.mxu0 %v630
        %930 = vmatprep.subr.mxu0 0.0
        %931 = vmatpush1.msra.mxu0 %v631
        %932 = vmatprep.subr.mxu0 0.0
        %933 = vmatpush1.msra.mxu0 %v632
        %934 = vmatprep.subr.mxu0 0.0
        %935 = vmatpush1.msra.mxu0 %v633
        %936 = vmatprep.subr.mxu0 0.0
        %937 = vmatpush1.msra.mxu0 %v634
        %938 = vmatprep.subr.mxu0 0.0
        %939 = vmatpush1.msra.mxu0 %v635
        %940 = vmatprep.subr.mxu0 0.0
        %941 = vmatpush1.msra.mxu0 %v636
        %942 = vmatprep.subr.mxu0 0.0
        %943 = vmatpush1.msra.mxu0 %v637
        %944 = vmatprep.subr.mxu0 0.0
        %945 = vmatpush1.msra.mxu0 %v638
        %946 = vmatprep.subr.mxu0 0.0
        %947 = vmatpush1.msra.mxu0 0.0
        %948 = vmatprep.subr.mxu0 0.0
        %949 = vmatpush1.msra.mxu0 0.0
        %950 = vmatprep.subr.mxu0 0.0
        %951 = vmatpush1.msra.mxu0 0.0
        %952 = vmatprep.subr.mxu0 0.0
        %953 = vmatpush1.msra.mxu0 0.0
        %954 = vmatprep.subr.mxu0 0.0
        %955 = vmatpush1.msra.mxu0 0.0
        %956 = vmatprep.subr.mxu0 0.0
        %957 = vmatpush1.msra.mxu0 0.0
        %958 = vmatprep.subr.mxu0 0.0
        %959 = vmatpush1.msra.mxu0 0.0
        %960 = vmatprep.subr.mxu0 0.0
        %961 = vmatpush1.msra.mxu0 0.0
        %962 = vmatprep.subr.mxu0 0.0
        %963 = vmatpush1.msra.mxu0 0.0
        %964 = vmatprep.subr.mxu0 0.0
        %965 = vmatpush1.msra.mxu0 0.0
        %966 = vmatprep.subr.mxu0 0.0
        %967 = vmatpush1.msra.mxu0 0.0
        %968 = vmatprep.subr.mxu0 0.0
        %969 = vmatpush1.msra.mxu0 0.0
        %970 = vmatprep.subr.mxu0 0.0
        %971 = vmatpush1.msra.mxu0 0.0
        %972 = vmatprep.subr.mxu0 0.0
        %973 = vmatpush1.msra.mxu0 0.0
        %974 = vmatprep.subr.mxu0 0.0
        %975 = vmatpush1.msra.mxu0 0.0
        %976 = vmatprep.subr.mxu0 0.0
        %977 = vmatpush1.msra.mxu0 0.0
        %978 = vmatprep.subr.mxu0 0.0
        %979 = vmatpush1.msra.mxu0 0.0
        %980 = vmatprep.subr.mxu0 0.0
        %981 = vmatpush1.msra.mxu0 0.0
        %982 = vmatprep.subr.mxu0 0.0
        %983 = vmatpush1.msra.mxu0 0.0
        %984 = vmatprep.subr.mxu0 0.0
        %985 = vmatpush1.msra.mxu0 0.0
        %986 = vmatprep.mubr.f32.mxu0 0.0
        %987 = vmatmul.mubr.f32.gmra.mrb[0].mxu0 %v878
        %v988 = vpop.f32.mrb[0].mxu0
        %v989 = vadd.f32 %v799, %v988
        %v990 = vpop.f32.mrb[0].mxu0
        %991 = vmatprep.mubr.f32.mxu0 0.0
        %992 = vmatmul.mubr.f32.gmra.mrb[0].mxu0 %v878
        %v993 = vpop.f32.mrb[0].mxu0
        %v994 = vadd.f32 %v804, %v993
        %v995 = vpop.f32.mrb[0].mxu0
        %996 = vmatprep.mubr.f32.mxu0 0.0
        %997 = vmatmul.mubr.f32.gmra.mrb[0].mxu0 %v881
        %v998 = vpop.f32.mrb[0].mxu0
        %v999 = vadd.f32 %v809, %v998
        %v1000 = vpop.f32.mrb[0].mxu0
        %1001 = vmatprep.mubr.f32.mxu0 0.0
        %1002 = vmatmul.mubr.f32.gmra.mrb[0].mxu0 %v884
        %v1003 = vpop.f32.mrb[0].mxu0
        %v1004 = vadd.f32 %v814, %v1003
        %v1005 = vpop.f32.mrb[0].mxu0
        %1006 = vmatprep.mubr.f32.mxu0 0.0
        %1007 = vmatmul.mubr.f32.gmra.mrb[0].mxu0 %v887
        %v1008 = vpop.f32.mrb[0].mxu0
        %v1009 = vadd.f32 %v819, %v1008
        %v1010 = vpop.f32.mrb[0].mxu0
        %1011 = vmatprep.mubr.f32.mxu0 0.0
        %1012 = vmatmul.mubr.f32.gmra.mrb[0].mxu0 %v890
        %v1013 = vpop.f32.mrb[0].mxu0
        %v1014 = vadd.f32 %v824, %v1013
        %v1015 = vpop.f32.mrb[0].mxu0
        %1016 = vmatprep.mubr.f32.mxu0 0.0
        %1017 = vmatmul.mubr.f32.gmra.mrb[0].mxu0 %v893
        %v1018 = vpop.f32.mrb[0].mxu0
        %v1019 = vadd.f32 %v829, %v1018
        %v1020 = vpop.f32.mrb[0].mxu0
        %1021 = vmatprep.mubr.f32.mxu0 0.0
        %1022 = vmatmul.mubr.f32.gmra.mrb[0].mxu0 %v896
        %v1023 = vpop.f32.mrb[0].mxu0
        %v1024 = vadd.f32 %v834, %v1023
        %v1025 = vpop.f32.mrb[0].mxu0
        %1026 = vmatprep.mubr.f32.mxu0 0.0
        %1027 = vmatmul.mubr.f32.gmra.mrb[0].mxu0 %v899
        %v1028 = vpop.f32.mrb[0].mxu0
        %v1029 = vadd.f32 %v839, %v1028
        %v1030 = vpop.f32.mrb[0].mxu0
        %1031 = vmatprep.mubr.f32.mxu0 0.0
        %1032 = vmatmul.mubr.f32.gmra.mrb[0].mxu0 %v902
        %v1033 = vpop.f32.mrb[0].mxu0
        %v1034 = vadd.f32 %v844, %v1033
        %v1035 = vpop.f32.mrb[0].mxu0
        %1036 = vmatprep.mubr.f32.mxu0 0.0
        %1037 = vmatmul.mubr.f32.gmra.mrb[0].mxu0 %v905
        %v1038 = vpop.f32.mrb[0].mxu0
        %v1039 = vadd.f32 %v849, %v1038
        %v1040 = vpop.f32.mrb[0].mxu0
        %1041 = vmatprep.mubr.f32.mxu0 0.0
        %1042 = vmatmul.mubr.f32.gmra.mrb[0].mxu0 %v908
        %v1043 = vpop.f32.mrb[0].mxu0
        %v1044 = vadd.f32 %v854, %v1043
        %v1045 = vpop.f32.mrb[0].mxu0
        %1046 = vmatprep.mubr.f32.mxu0 0.0
        %1047 = vmatmul.mubr.f32.gmra.mrb[0].mxu0 %v911
        %v1048 = vpop.f32.mrb[0].mxu0
        %v1049 = vadd.f32 %v859, %v1048
        %v1050 = vpop.f32.mrb[0].mxu0
        %1051 = vmatprep.mubr.f32.mxu0 0.0
        %1052 = vmatmul.mubr.f32.gmra.mrb[0].mxu0 %v914
        %v1053 = vpop.f32.mrb[0].mxu0
        %v1054 = vadd.f32 %v864, %v1053
        %v1055 = vpop.f32.mrb[0].mxu0
        %1056 = vmatprep.mubr.f32.mxu0 0.0
        %1057 = vmatmul.mubr.f32.gmra.mrb[0].mxu0 %v917
        %v1058 = vpop.f32.mrb[0].mxu0
        %v1059 = vadd.f32 %v869, %v1058
        %v1060 = vpop.f32.mrb[0].mxu0
        %1061 = vmatprep.mubr.f32.mxu0 0.0
        %1062 = vmatmul.mubr.f32.gmra.mrb[0].mxu0 %v920
        %v1063 = vpop.f32.mrb[0].mxu0
        %v1064 = vadd.f32 %v874, %v1063
        %v1065 = vpop.f32.mrb[0].mxu0
        %1066 = vdwg.mxu0
        %s1067 = scalar_lea.vmem %s556, 248 [#allocation2]
        %v1068 = vld [vmem:[%s1067] sm:$0xff]
        %s1069 = scalar_lea.vmem %s1, 192
        %v1070 = vld [vmem:[%s1069] sm:$0xff]
        %v1071 = vld [vmem:[%s1069 + $0x8] sm:$0xff]
        %v1072 = vld [vmem:[%s1069 + $0x10] sm:$0xff]
        %v1073 = vld [vmem:[%s1069 + $0x18] sm:$0xff]
        %v1074 = vld [vmem:[%s1069 + $0x20] sm:$0xff]
        %v1075 = vld [vmem:[%s1069 + $0x28] sm:$0xff]
        %v1076 = vld [vmem:[%s1069 + $0x30] sm:$0xff]
        %v1077 = vld [vmem:[%s1069 + $0x38] sm:$0xff]
        %v1078 = vld [vmem:[%s1069 + $0x40] sm:$0xff]
        %v1079 = vld [vmem:[%s1069 + $0x48] sm:$0xff]
        %v1080 = vld [vmem:[%s1069 + $0x50] sm:$0xff]
        %v1081 = vld [vmem:[%s1069 + $0x58] sm:$0xff]
        %v1083 = vsel %vm683, %v1068, 0
        %1085 = vmatprep.subr.mxu0 0.0
        %1086 = vmatpush1.msra.mxu0 %v1070
        %1087 = vmatprep.subr.mxu0 0.0
        %1088 = vmatpush1.msra.mxu0 %v1071
        %1089 = vmatprep.subr.mxu0 0.0
        %1090 = vmatpush1.msra.mxu0 %v1072
        %1091 = vmatprep.subr.mxu0 0.0
        %1092 = vmatpush1.msra.mxu0 %v1073
        %1093 = vmatprep.subr.mxu0 0.0
        %1094 = vmatpush1.msra.mxu0 %v1074
        %1095 = vmatprep.subr.mxu0 0.0
        %1096 = vmatpush1.msra.mxu0 %v1075
        %1097 = vmatprep.subr.mxu0 0.0
        %1098 = vmatpush1.msra.mxu0 %v1076
        %1099 = vmatprep.subr.mxu0 0.0
        %1100 = vmatpush1.msra.mxu0 %v1077
        %1101 = vmatprep.subr.mxu0 0.0
        %1102 = vmatpush1.msra.mxu0 %v1078
        %1103 = vmatprep.subr.mxu0 0.0
        %1104 = vmatpush1.msra.mxu0 %v1079
        %1105 = vmatprep.subr.mxu0 0.0
        %1106 = vmatpush1.msra.mxu0 %v1080
        %1107 = vmatprep.subr.mxu0 0.0
        %1108 = vmatpush1.msra.mxu0 %v1081
        %1109 = vmatprep.subr.mxu0 0.0
        %1110 = vmatpush1.msra.mxu0 0.0
        %1111 = vmatprep.subr.mxu0 0.0
        %1112 = vmatpush1.msra.mxu0 0.0
        %1113 = vmatprep.subr.mxu0 0.0
        %1114 = vmatpush1.msra.mxu0 0.0
        %1115 = vmatprep.subr.mxu0 0.0
        %1116 = vmatpush1.msra.mxu0 0.0
        %1117 = vmatprep.subr.mxu0 0.0
        %1118 = vmatpush1.msra.mxu0 0.0
        %1119 = vmatprep.subr.mxu0 0.0
        %1120 = vmatpush1.msra.mxu0 0.0
        %1121 = vmatprep.subr.mxu0 0.0
        %1122 = vmatpush1.msra.mxu0 0.0
        %1123 = vmatprep.subr.mxu0 0.0
        %1124 = vmatpush1.msra.mxu0 0.0
        %1125 = vmatprep.subr.mxu0 0.0
        %1126 = vmatpush1.msra.mxu0 0.0
        %1127 = vmatprep.subr.mxu0 0.0
        %1128 = vmatpush1.msra.mxu0 0.0
        %1129 = vmatprep.subr.mxu0 0.0
        %1130 = vmatpush1.msra.mxu0 0.0
        %1131 = vmatprep.subr.mxu0 0.0
        %1132 = vmatpush1.msra.mxu0 0.0
        %1133 = vmatprep.subr.mxu0 0.0
        %1134 = vmatpush1.msra.mxu0 0.0
        %1135 = vmatprep.subr.mxu0 0.0
        %1136 = vmatpush1.msra.mxu0 0.0
        %1137 = vmatprep.subr.mxu0 0.0
        %1138 = vmatpush1.msra.mxu0 0.0
        %1139 = vmatprep.subr.mxu0 0.0
        %1140 = vmatpush1.msra.mxu0 0.0
        %1141 = vmatprep.subr.mxu0 0.0
        %1142 = vmatpush1.msra.mxu0 0.0
        %1143 = vmatprep.subr.mxu0 0.0
        %1144 = vmatpush1.msra.mxu0 0.0
        %1145 = vmatprep.subr.mxu0 0.0
        %1146 = vmatpush1.msra.mxu0 0.0
        %1147 = vmatprep.subr.mxu0 0.0
        %1148 = vmatpush1.msra.mxu0 0.0
        %1149 = vmatprep.mubr.f32.mxu0 0.0
        %1150 = vmatmul.mubr.f32.gmra.mrb[0].mxu0 %v878
        %v1151 = vpop.f32.mrb[0].mxu0
        %v1152 = vadd.f32 0.0, %v1151
        %v1153 = vpop.f32.mrb[0].mxu0
        %1154 = vmatprep.mubr.f32.mxu0 0.0
        %1155 = vmatmul.mubr.f32.gmra.mrb[0].mxu0 %v881
        %v1156 = vpop.f32.mrb[0].mxu0
        %v1157 = vadd.f32 0.0, %v1156
        %v1158 = vpop.f32.mrb[0].mxu0
        %1159 = vmatprep.mubr.f32.mxu0 0.0
        %1160 = vmatmul.mubr.f32.gmra.mrb[0].mxu0 %v884
        %v1161 = vpop.f32.mrb[0].mxu0
        %v1162 = vadd.f32 0.0, %v1161
        %v1163 = vpop.f32.mrb[0].mxu0
        %1164 = vmatprep.mubr.f32.mxu0 0.0
        %1165 = vmatmul.mubr.f32.gmra.mrb[0].mxu0 %v887
        %v1166 = vpop.f32.mrb[0].mxu0
        %v1167 = vadd.f32 0.0, %v1166
        %v1168 = vpop.f32.mrb[0].mxu0
        %1169 = vmatprep.mubr.f32.mxu0 0.0
        %1170 = vmatmul.mubr.f32.gmra.mrb[0].mxu0 %v890
        %v1171 = vpop.f32.mrb[0].mxu0
        %v1172 = vadd.f32 0.0, %v1171
        %v1173 = vpop.f32.mrb[0].mxu0
        %1174 = vmatprep.mubr.f32.mxu0 0.0
        %1175 = vmatmul.mubr.f32.gmra.mrb[0].mxu0 %v893
        %v1176 = vpop.f32.mrb[0].mxu0
        %v1177 = vadd.f32 0.0, %v1176
        %v1178 = vpop.f32.mrb[0].mxu0
        %1179 = vmatprep.mubr.f32.mxu0 0.0
        %1180 = vmatmul.mubr.f32.gmra.mrb[0].mxu0 %v896
        %v1181 = vpop.f32.mrb[0].mxu0
        %v1182 = vadd.f32 0.0, %v1181
        %v1183 = vpop.f32.mrb[0].mxu0
        %1184 = vmatprep.mubr.f32.mxu0 0.0
        %1185 = vmatmul.mubr.f32.gmra.mrb[0].mxu0 %v899
        %v1186 = vpop.f32.mrb[0].mxu0
        %v1187 = vadd.f32 0.0, %v1186
        %v1188 = vpop.f32.mrb[0].mxu0
        %1189 = vmatprep.mubr.f32.mxu0 0.0
        %1190 = vmatmul.mubr.f32.gmra.mrb[0].mxu0 %v902
        %v1191 = vpop.f32.mrb[0].mxu0
        %v1192 = vadd.f32 0.0, %v1191
        %v1193 = vpop.f32.mrb[0].mxu0
        %1194 = vmatprep.mubr.f32.mxu0 0.0
        %1195 = vmatmul.mubr.f32.gmra.mrb[0].mxu0 %v905
        %v1196 = vpop.f32.mrb[0].mxu0
        %v1197 = vadd.f32 0.0, %v1196
        %v1198 = vpop.f32.mrb[0].mxu0
        %1199 = vmatprep.mubr.f32.mxu0 0.0
        %1200 = vmatmul.mubr.f32.gmra.mrb[0].mxu0 %v908
        %v1201 = vpop.f32.mrb[0].mxu0
        %v1202 = vadd.f32 0.0, %v1201
        %v1203 = vpop.f32.mrb[0].mxu0
        %1204 = vmatprep.mubr.f32.mxu0 0.0
        %1205 = vmatmul.mubr.f32.gmra.mrb[0].mxu0 %v911
        %v1206 = vpop.f32.mrb[0].mxu0
        %v1207 = vadd.f32 0.0, %v1206
        %v1208 = vpop.f32.mrb[0].mxu0
        %1209 = vmatprep.mubr.f32.mxu0 0.0
        %1210 = vmatmul.mubr.f32.gmra.mrb[0].mxu0 %v914
        %v1211 = vpop.f32.mrb[0].mxu0
        %v1212 = vadd.f32 0.0, %v1211
        %v1213 = vpop.f32.mrb[0].mxu0
        %1214 = vmatprep.mubr.f32.mxu0 0.0
        %1215 = vmatmul.mubr.f32.gmra.mrb[0].mxu0 %v917
        %v1216 = vpop.f32.mrb[0].mxu0
        %v1217 = vadd.f32 0.0, %v1216
        %v1218 = vpop.f32.mrb[0].mxu0
        %1219 = vmatprep.mubr.f32.mxu0 0.0
        %1220 = vmatmul.mubr.f32.gmra.mrb[0].mxu0 %v920
        %v1221 = vpop.f32.mrb[0].mxu0
        %v1222 = vadd.f32 0.0, %v1221
        %v1223 = vpop.f32.mrb[0].mxu0
        %1224 = vmatprep.mubr.f32.mxu0 0.0
        %1225 = vmatmul.mubr.f32.gmra.mrb[0].mxu0 %v1083
        %v1226 = vpop.f32.mrb[0].mxu0
        %v1227 = vadd.f32 0.0, %v1226
        %v1228 = vpop.f32.mrb[0].mxu0
        %1229 = vdwg.mxu0
        %v1230 = vadd.f32 %v989, %v1152
        %v1231 = vadd.f32 %v994, %v1157
        %v1232 = vadd.f32 %v999, %v1162
        %v1233 = vadd.f32 %v1004, %v1167
        %v1234 = vadd.f32 %v1009, %v1172
        %v1235 = vadd.f32 %v1014, %v1177
        %v1236 = vadd.f32 %v1019, %v1182
        %v1237 = vadd.f32 %v1024, %v1187
        %v1238 = vadd.f32 %v1029, %v1192
        %v1239 = vadd.f32 %v1034, %v1197
        %v1240 = vadd.f32 %v1039, %v1202
        %v1241 = vadd.f32 %v1044, %v1207
        %v1242 = vadd.f32 %v1049, %v1212
        %v1243 = vadd.f32 %v1054, %v1217
        %v1244 = vadd.f32 %v1059, %v1222
        %v1245 = vadd.f32 %v1064, %v1227
        %s1246 = scalar_lea.vmem %s1, 288
        %v1247 = vld [vmem:[%s1246] sm:$0xff]
        %v1248 = vld [vmem:[%s1246 + $0x8] sm:$0xff]
        %v1249 = vld [vmem:[%s1246 + $0x10] sm:$0xff]
        %v1250 = vld [vmem:[%s1246 + $0x18] sm:$0xff]
        %v1251 = vld [vmem:[%s1246 + $0x20] sm:$0xff]
        %v1252 = vld [vmem:[%s1246 + $0x28] sm:$0xff]
        %v1253 = vld [vmem:[%s1246 + $0x30] sm:$0xff]
        %v1254 = vld [vmem:[%s1246 + $0x38] sm:$0xff]
        %v1255 = vld [vmem:[%s1246 + $0x40] sm:$0xff]
        %v1256 = vld [vmem:[%s1246 + $0x48] sm:$0xff]
        %v1257 = vld [vmem:[%s1246 + $0x50] sm:$0xff]
        %v1258 = vld [vmem:[%s1246 + $0x58] sm:$0xff]
        %1259 = vmatprep.subr.mxu0 0.0
        %1260 = vmatpush1.msra.mxu0 %v1247
        %1261 = vmatprep.subr.mxu0 0.0
        %1262 = vmatpush1.msra.mxu0 %v1248
        %1263 = vmatprep.subr.mxu0 0.0
        %1264 = vmatpush1.msra.mxu0 %v1249
        %1265 = vmatprep.subr.mxu0 0.0
        %1266 = vmatpush1.msra.mxu0 %v1250
        %1267 = vmatprep.subr.mxu0 0.0
        %1268 = vmatpush1.msra.mxu0 %v1251
        %1269 = vmatprep.subr.mxu0 0.0
        %1270 = vmatpush1.msra.mxu0 %v1252
        %1271 = vmatprep.subr.mxu0 0.0
        %1272 = vmatpush1.msra.mxu0 %v1253
        %1273 = vmatprep.subr.mxu0 0.0
        %1274 = vmatpush1.msra.mxu0 %v1254
        %1275 = vmatprep.subr.mxu0 0.0
        %1276 = vmatpush1.msra.mxu0 %v1255
        %1277 = vmatprep.subr.mxu0 0.0
        %1278 = vmatpush1.msra.mxu0 %v1256
        %1279 = vmatprep.subr.mxu0 0.0
        %1280 = vmatpush1.msra.mxu0 %v1257
        %1281 = vmatprep.subr.mxu0 0.0
        %1282 = vmatpush1.msra.mxu0 %v1258
        %1283 = vmatprep.subr.mxu0 0.0
        %1284 = vmatpush1.msra.mxu0 0.0
        %1285 = vmatprep.subr.mxu0 0.0
        %1286 = vmatpush1.msra.mxu0 0.0
        %1287 = vmatprep.subr.mxu0 0.0
        %1288 = vmatpush1.msra.mxu0 0.0
        %1289 = vmatprep.subr.mxu0 0.0
        %1290 = vmatpush1.msra.mxu0 0.0
        %1291 = vmatprep.subr.mxu0 0.0
        %1292 = vmatpush1.msra.mxu0 0.0
        %1293 = vmatprep.subr.mxu0 0.0
        %1294 = vmatpush1.msra.mxu0 0.0
        %1295 = vmatprep.subr.mxu0 0.0
        %1296 = vmatpush1.msra.mxu0 0.0
        %1297 = vmatprep.subr.mxu0 0.0
        %1298 = vmatpush1.msra.mxu0 0.0
        %1299 = vmatprep.subr.mxu0 0.0
        %1300 = vmatpush1.msra.mxu0 0.0
        %1301 = vmatprep.subr.mxu0 0.0
        %1302 = vmatpush1.msra.mxu0 0.0
        %1303 = vmatprep.subr.mxu0 0.0
        %1304 = vmatpush1.msra.mxu0 0.0
        %1305 = vmatprep.subr.mxu0 0.0
        %1306 = vmatpush1.msra.mxu0 0.0
        %1307 = vmatprep.subr.mxu0 0.0
        %1308 = vmatpush1.msra.mxu0 0.0
        %1309 = vmatprep.subr.mxu0 0.0
        %1310 = vmatpush1.msra.mxu0 0.0
        %1311 = vmatprep.subr.mxu0 0.0
        %1312 = vmatpush1.msra.mxu0 0.0
        %1313 = vmatprep.subr.mxu0 0.0
        %1314 = vmatpush1.msra.mxu0 0.0
        %1315 = vmatprep.subr.mxu0 0.0
        %1316 = vmatpush1.msra.mxu0 0.0
        %1317 = vmatprep.subr.mxu0 0.0
        %1318 = vmatpush1.msra.mxu0 0.0
        %1319 = vmatprep.subr.mxu0 0.0
        %1320 = vmatpush1.msra.mxu0 0.0
        %1321 = vmatprep.subr.mxu0 0.0
        %1322 = vmatpush1.msra.mxu0 0.0
        %1323 = vmatprep.mubr.f32.mxu0 0.0
        %1324 = vmatmul.mubr.f32.gmra.mrb[0].mxu0 %v688
        %v1325 = vpop.f32.mrb[0].mxu0
        %v1326 = vadd.f32 0.0, %v1325
        %v1327 = vpop.f32.mrb[0].mxu0
        %1328 = vmatprep.mubr.f32.mxu0 0.0
        %1329 = vmatmul.mubr.f32.gmra.mrb[0].mxu0 %v691
        %v1330 = vpop.f32.mrb[0].mxu0
        %v1331 = vadd.f32 0.0, %v1330
        %v1332 = vpop.f32.mrb[0].mxu0
        %1333 = vmatprep.mubr.f32.mxu0 0.0
        %1334 = vmatmul.mubr.f32.gmra.mrb[0].mxu0 %v694
        %v1335 = vpop.f32.mrb[0].mxu0
        %v1336 = vadd.f32 0.0, %v1335
        %v1337 = vpop.f32.mrb[0].mxu0
        %1338 = vmatprep.mubr.f32.mxu0 0.0
        %1339 = vmatmul.mubr.f32.gmra.mrb[0].mxu0 %v697
        %v1340 = vpop.f32.mrb[0].mxu0
        %v1341 = vadd.f32 0.0, %v1340
        %v1342 = vpop.f32.mrb[0].mxu0
        %1343 = vmatprep.mubr.f32.mxu0 0.0
        %1344 = vmatmul.mubr.f32.gmra.mrb[0].mxu0 %v700
        %v1345 = vpop.f32.mrb[0].mxu0
        %v1346 = vadd.f32 0.0, %v1345
        %v1347 = vpop.f32.mrb[0].mxu0
        %1348 = vmatprep.mubr.f32.mxu0 0.0
        %1349 = vmatmul.mubr.f32.gmra.mrb[0].mxu0 %v703
        %v1350 = vpop.f32.mrb[0].mxu0
        %v1351 = vadd.f32 0.0, %v1350
        %v1352 = vpop.f32.mrb[0].mxu0
        %1353 = vmatprep.mubr.f32.mxu0 0.0
        %1354 = vmatmul.mubr.f32.gmra.mrb[0].mxu0 %v706
        %v1355 = vpop.f32.mrb[0].mxu0
        %v1356 = vadd.f32 0.0, %v1355
        %v1357 = vpop.f32.mrb[0].mxu0
        %1358 = vmatprep.mubr.f32.mxu0 0.0
        %1359 = vmatmul.mubr.f32.gmra.mrb[0].mxu0 %v709
        %v1360 = vpop.f32.mrb[0].mxu0
        %v1361 = vadd.f32 0.0, %v1360
        %v1362 = vpop.f32.mrb[0].mxu0
        %1363 = vmatprep.mubr.f32.mxu0 0.0
        %1364 = vmatmul.mubr.f32.gmra.mrb[0].mxu0 %v712
        %v1365 = vpop.f32.mrb[0].mxu0
        %v1366 = vadd.f32 0.0, %v1365
        %v1367 = vpop.f32.mrb[0].mxu0
        %1368 = vmatprep.mubr.f32.mxu0 0.0
        %1369 = vmatmul.mubr.f32.gmra.mrb[0].mxu0 %v715
        %v1370 = vpop.f32.mrb[0].mxu0
        %v1371 = vadd.f32 0.0, %v1370
        %v1372 = vpop.f32.mrb[0].mxu0
        %1373 = vmatprep.mubr.f32.mxu0 0.0
        %1374 = vmatmul.mubr.f32.gmra.mrb[0].mxu0 %v718
        %v1375 = vpop.f32.mrb[0].mxu0
        %v1376 = vadd.f32 0.0, %v1375
        %v1377 = vpop.f32.mrb[0].mxu0
        %1378 = vmatprep.mubr.f32.mxu0 0.0
        %1379 = vmatmul.mubr.f32.gmra.mrb[0].mxu0 %v721
        %v1380 = vpop.f32.mrb[0].mxu0
        %v1381 = vadd.f32 0.0, %v1380
        %v1382 = vpop.f32.mrb[0].mxu0
        %1383 = vmatprep.mubr.f32.mxu0 0.0
        %1384 = vmatmul.mubr.f32.gmra.mrb[0].mxu0 %v724
        %v1385 = vpop.f32.mrb[0].mxu0
        %v1386 = vadd.f32 0.0, %v1385
        %v1387 = vpop.f32.mrb[0].mxu0
        %1388 = vmatprep.mubr.f32.mxu0 0.0
        %1389 = vmatmul.mubr.f32.gmra.mrb[0].mxu0 %v727
        %v1390 = vpop.f32.mrb[0].mxu0
        %v1391 = vadd.f32 0.0, %v1390
        %v1392 = vpop.f32.mrb[0].mxu0
        %1393 = vmatprep.mubr.f32.mxu0 0.0
        %1394 = vmatmul.mubr.f32.gmra.mrb[0].mxu0 %v730
        %v1395 = vpop.f32.mrb[0].mxu0
        %v1396 = vadd.f32 0.0, %v1395
        %v1397 = vpop.f32.mrb[0].mxu0
        %1398 = vmatprep.mubr.f32.mxu0 0.0
        %1399 = vmatmul.mubr.f32.gmra.mrb[0].mxu0 %v730
        %v1400 = vpop.f32.mrb[0].mxu0
        %v1401 = vadd.f32 0.0, %v1400
        %v1402 = vpop.f32.mrb[0].mxu0
        %1403 = vdwg.mxu0
        %v1404 = vadd.f32 %v1230, %v1326
        %v1405 = vadd.f32 %v1231, %v1331
        %v1406 = vadd.f32 %v1232, %v1336
        %v1407 = vadd.f32 %v1233, %v1341
        %v1408 = vadd.f32 %v1234, %v1346
        %v1409 = vadd.f32 %v1235, %v1351
        %v1410 = vadd.f32 %v1236, %v1356
        %v1411 = vadd.f32 %v1237, %v1361
        %v1412 = vadd.f32 %v1238, %v1366
        %v1413 = vadd.f32 %v1239, %v1371
        %v1414 = vadd.f32 %v1240, %v1376
        %v1415 = vadd.f32 %v1241, %v1381
        %v1416 = vadd.f32 %v1242, %v1386
        %v1417 = vadd.f32 %v1243, %v1391
        %v1418 = vadd.f32 %v1244, %v1396
        %v1419 = vadd.f32 %v1245, %v1401
        %v1420 = vld [vmem:[%s2] sm:$0x1]
        %v1422 = vlaneseq
        %v1423 = vshrl.u32 %v1422, 7
        %v1424 = vsub.s32 0, %v1423
        %v1425 = vrot.slane %v1420, %v1424
        %v1427 = vadd.f32 %v1404, %v1425
        %v1428 = vadd.f32 %v1405, %v1425
        %v1429 = vadd.f32 %v1406, %v1425
        %v1430 = vadd.f32 %v1407, %v1425
        %v1431 = vadd.f32 %v1408, %v1425
        %v1432 = vadd.f32 %v1409, %v1425
        %v1433 = vadd.f32 %v1410, %v1425
        %v1434 = vadd.f32 %v1411, %v1425
        %v1435 = vadd.f32 %v1412, %v1425
        %v1436 = vadd.f32 %v1413, %v1425
        %v1437 = vadd.f32 %v1414, %v1425
        %v1438 = vadd.f32 %v1415, %v1425
        %v1439 = vadd.f32 %v1416, %v1425
        %v1440 = vadd.f32 %v1417, %v1425
        %v1441 = vadd.f32 %v1418, %v1425
        %v1442 = vadd.f32 %v1419, %v1425
        %v1443 = vmul.f32 %v1427, 0.2
        %v1444 = vmul.f32 %v1428, 0.2
        %v1445 = vmul.f32 %v1429, 0.2
        %v1446 = vmul.f32 %v1430, 0.2
        %v1447 = vmul.f32 %v1431, 0.2
        %v1448 = vmul.f32 %v1432, 0.2
        %v1449 = vmul.f32 %v1433, 0.2
        %v1450 = vmul.f32 %v1434, 0.2
        %v1451 = vmul.f32 %v1435, 0.2
        %v1452 = vmul.f32 %v1436, 0.2
        %v1453 = vmul.f32 %v1437, 0.2
        %v1454 = vmul.f32 %v1438, 0.2
        %v1455 = vmul.f32 %v1439, 0.2
        %v1456 = vmul.f32 %v1440, 0.2
        %v1457 = vmul.f32 %v1441, 0.2
        %v1458 = vmul.f32 %v1442, 0.2
        %v1459 = vmax.f32 %v1427, %v1443
        %v1460 = vmax.f32 %v1428, %v1444
        %v1461 = vmax.f32 %v1429, %v1445
        %v1462 = vmax.f32 %v1430, %v1446
        %v1463 = vmax.f32 %v1431, %v1447
        %v1464 = vmax.f32 %v1432, %v1448
        %v1465 = vmax.f32 %v1433, %v1449
        %v1466 = vmax.f32 %v1434, %v1450
        %v1467 = vmax.f32 %v1435, %v1451
        %v1468 = vmax.f32 %v1436, %v1452
        %v1469 = vmax.f32 %v1437, %v1453
        %v1470 = vmax.f32 %v1438, %v1454
        %v1471 = vmax.f32 %v1439, %v1455
        %v1472 = vmax.f32 %v1440, %v1456
        %v1473 = vmax.f32 %v1441, %v1457
        %v1474 = vmax.f32 %v1442, %v1458
        %v1475 = vld [vmem:[%s3] sm:$0xff]
        %v1476 = vld [vmem:[%s3 + $0x8] sm:$0xff]
        %v1477 = vld [vmem:[%s3 + $0x10] sm:$0xff]
        %v1478 = vld [vmem:[%s3 + $0x18] sm:$0xff]
        %v1479 = vld [vmem:[%s3 + $0x20] sm:$0xff]
        %v1480 = vld [vmem:[%s3 + $0x28] sm:$0xff]
        %v1481 = vld [vmem:[%s3 + $0x30] sm:$0xff]
        %v1482 = vld [vmem:[%s3 + $0x38] sm:$0xff]
        %v1483 = vld [vmem:[%s3 + $0x40] sm:$0xff]
        %v1484 = vld [vmem:[%s3 + $0x48] sm:$0xff]
        %v1485 = vld [vmem:[%s3 + $0x50] sm:$0xff]
        %v1486 = vld [vmem:[%s3 + $0x58] sm:$0xff]
        %v1487 = vld [vmem:[%s3 + $0x60] sm:$0xff]
        %v1488 = vld [vmem:[%s3 + $0x68] sm:$0xff]
        %v1489 = vld [vmem:[%s3 + $0x70] sm:$0xff]
        %v1490 = vld [vmem:[%s3 + $0x78] sm:$0xff]
        %s1491 = scalar_lea.vmem %s3, 128
        %v1492 = vld [vmem:[%s1491] sm:$0xff]
        %v1493 = vld [vmem:[%s1491 + $0x8] sm:$0xff]
        %v1494 = vld [vmem:[%s1491 + $0x10] sm:$0xff]
        %v1495 = vld [vmem:[%s1491 + $0x18] sm:$0xff]
        %v1496 = vld [vmem:[%s1491 + $0x20] sm:$0xff]
        %v1497 = vld [vmem:[%s1491 + $0x28] sm:$0xff]
        %v1498 = vld [vmem:[%s1491 + $0x30] sm:$0xff]
        %v1499 = vld [vmem:[%s1491 + $0x38] sm:$0xff]
        %v1500 = vld [vmem:[%s1491 + $0x40] sm:$0xff]
        %v1501 = vld [vmem:[%s1491 + $0x48] sm:$0xff]
        %v1502 = vld [vmem:[%s1491 + $0x50] sm:$0xff]
        %v1503 = vld [vmem:[%s1491 + $0x58] sm:$0xff]
        %v1504 = vld [vmem:[%s1491 + $0x60] sm:$0xff]
        %v1505 = vld [vmem:[%s1491 + $0x68] sm:$0xff]
        %v1506 = vld [vmem:[%s1491 + $0x70] sm:$0xff]
        %v1507 = vld [vmem:[%s1491 + $0x78] sm:$0xff]
        %1508 = vmatprep.subr.mxu0 0.0
        %1509 = vmatpush1.msra.mxu0 %v1492
        %1510 = vmatprep.subr.mxu0 0.0
        %1511 = vmatpush1.msra.mxu0 %v1493
        %1512 = vmatprep.subr.mxu0 0.0
        %1513 = vmatpush1.msra.mxu0 %v1494
        %1514 = vmatprep.subr.mxu0 0.0
        %1515 = vmatpush1.msra.mxu0 %v1495
        %1516 = vmatprep.subr.mxu0 0.0
        %1517 = vmatpush1.msra.mxu0 %v1496
        %1518 = vmatprep.subr.mxu0 0.0
        %1519 = vmatpush1.msra.mxu0 %v1497
        %1520 = vmatprep.subr.mxu0 0.0
        %1521 = vmatpush1.msra.mxu0 %v1498
        %1522 = vmatprep.subr.mxu0 0.0
        %1523 = vmatpush1.msra.mxu0 %v1499
        %1524 = vmatprep.subr.mxu0 0.0
        %1525 = vmatpush1.msra.mxu0 %v1500
        %1526 = vmatprep.subr.mxu0 0.0
        %1527 = vmatpush1.msra.mxu0 %v1501
        %1528 = vmatprep.subr.mxu0 0.0
        %1529 = vmatpush1.msra.mxu0 %v1502
        %1530 = vmatprep.subr.mxu0 0.0
        %1531 = vmatpush1.msra.mxu0 %v1503
        %1532 = vmatprep.subr.mxu0 0.0
        %1533 = vmatpush1.msra.mxu0 %v1504
        %1534 = vmatprep.subr.mxu0 0.0
        %1535 = vmatpush1.msra.mxu0 %v1505
        %1536 = vmatprep.subr.mxu0 0.0
        %1537 = vmatpush1.msra.mxu0 %v1506
        %1538 = vmatprep.subr.mxu0 0.0
        %1539 = vmatpush1.msra.mxu0 %v1507
        %1540 = vmatprep.subr.mxu0 0.0
        %1541 = vmatpush1.msra.mxu0 0.0
        %1542 = vmatprep.subr.mxu0 0.0
        %1543 = vmatpush1.msra.mxu0 0.0
        %1544 = vmatprep.subr.mxu0 0.0
        %1545 = vmatpush1.msra.mxu0 0.0
        %1546 = vmatprep.subr.mxu0 0.0
        %1547 = vmatpush1.msra.mxu0 0.0
        %1548 = vmatprep.subr.mxu0 0.0
        %1549 = vmatpush1.msra.mxu0 0.0
        %1550 = vmatprep.subr.mxu0 0.0
        %1551 = vmatpush1.msra.mxu0 0.0
        %1552 = vmatprep.subr.mxu0 0.0
        %1553 = vmatpush1.msra.mxu0 0.0
        %1554 = vmatprep.subr.mxu0 0.0
        %1555 = vmatpush1.msra.mxu0 0.0
        %1556 = vmatprep.subr.mxu0 0.0
        %1557 = vmatpush1.msra.mxu0 0.0
        %1558 = vmatprep.subr.mxu0 0.0
        %1559 = vmatpush1.msra.mxu0 0.0
        %1560 = vmatprep.subr.mxu0 0.0
        %1561 = vmatpush1.msra.mxu0 0.0
        %1562 = vmatprep.subr.mxu0 0.0
        %1563 = vmatpush1.msra.mxu0 0.0
        %1564 = vmatprep.subr.mxu0 0.0
        %1565 = vmatpush1.msra.mxu0 0.0
        %1566 = vmatprep.subr.mxu0 0.0
        %1567 = vmatpush1.msra.mxu0 0.0
        %1568 = vmatprep.subr.mxu0 0.0
        %1569 = vmatpush1.msra.mxu0 0.0
        %1570 = vmatprep.subr.mxu0 0.0
        %1571 = vmatpush1.msra.mxu0 0.0
        %1572 = vmatprep.mubr.f32.mxu0 0.0
        %1573 = vmatmul.mubr.f32.gmra.mrb[0].mxu0 %v1459
        %v1574 = vpop.f32.mrb[0].mxu0
        %v1575 = vadd.f32 0.0, %v1574
        %v1576 = vpop.f32.mrb[0].mxu0
        %1577 = vmatprep.mubr.f32.mxu0 0.0
        %1578 = vmatmul.mubr.f32.gmra.mrb[0].mxu0 %v1461
        %v1579 = vpop.f32.mrb[0].mxu0
        %v1580 = vadd.f32 0.0, %v1579
        %v1581 = vpop.f32.mrb[0].mxu0
        %1582 = vmatprep.mubr.f32.mxu0 0.0
        %1583 = vmatmul.mubr.f32.gmra.mrb[0].mxu0 %v1463
        %v1584 = vpop.f32.mrb[0].mxu0
        %v1585 = vadd.f32 0.0, %v1584
        %v1586 = vpop.f32.mrb[0].mxu0
        %1587 = vmatprep.mubr.f32.mxu0 0.0
        %1588 = vmatmul.mubr.f32.gmra.mrb[0].mxu0 %v1465
        %v1589 = vpop.f32.mrb[0].mxu0
        %v1590 = vadd.f32 0.0, %v1589
        %v1591 = vpop.f32.mrb[0].mxu0
        %1592 = vmatprep.mubr.f32.mxu0 0.0
        %1593 = vmatmul.mubr.f32.gmra.mrb[0].mxu0 %v1467
        %v1594 = vpop.f32.mrb[0].mxu0
        %v1595 = vadd.f32 0.0, %v1594
        %v1596 = vpop.f32.mrb[0].mxu0
        %1597 = vmatprep.mubr.f32.mxu0 0.0
        %1598 = vmatmul.mubr.f32.gmra.mrb[0].mxu0 %v1469
        %v1599 = vpop.f32.mrb[0].mxu0
        %v1600 = vadd.f32 0.0, %v1599
        %v1601 = vpop.f32.mrb[0].mxu0
        %1602 = vmatprep.mubr.f32.mxu0 0.0
        %1603 = vmatmul.mubr.f32.gmra.mrb[0].mxu0 %v1471
        %v1604 = vpop.f32.mrb[0].mxu0
        %v1605 = vadd.f32 0.0, %v1604
        %v1606 = vpop.f32.mrb[0].mxu0
        %1607 = vmatprep.mubr.f32.mxu0 0.0
        %1608 = vmatmul.mubr.f32.gmra.mrb[0].mxu0 %v1473
        %v1609 = vpop.f32.mrb[0].mxu0
        %v1610 = vadd.f32 0.0, %v1609
        %v1611 = vpop.f32.mrb[0].mxu0
        %1612 = vdwg.mxu0
        %1613 = vmatprep.subr.mxu0 0.0
        %1614 = vmatpush1.msra.mxu0 %v1475
        %1615 = vmatprep.subr.mxu0 0.0
        %1616 = vmatpush1.msra.mxu0 %v1476
        %1617 = vmatprep.subr.mxu0 0.0
        %1618 = vmatpush1.msra.mxu0 %v1477
        %1619 = vmatprep.subr.mxu0 0.0
        %1620 = vmatpush1.msra.mxu0 %v1478
        %1621 = vmatprep.subr.mxu0 0.0
        %1622 = vmatpush1.msra.mxu0 %v1479
        %1623 = vmatprep.subr.mxu0 0.0
        %1624 = vmatpush1.msra.mxu0 %v1480
        %1625 = vmatprep.subr.mxu0 0.0
        %1626 = vmatpush1.msra.mxu0 %v1481
        %1627 = vmatprep.subr.mxu0 0.0
        %1628 = vmatpush1.msra.mxu0 %v1482
        %1629 = vmatprep.subr.mxu0 0.0
        %1630 = vmatpush1.msra.mxu0 %v1483
        %1631 = vmatprep.subr.mxu0 0.0
        %1632 = vmatpush1.msra.mxu0 %v1484
        %1633 = vmatprep.subr.mxu0 0.0
        %1634 = vmatpush1.msra.mxu0 %v1485
        %1635 = vmatprep.subr.mxu0 0.0
        %1636 = vmatpush1.msra.mxu0 %v1486
        %1637 = vmatprep.subr.mxu0 0.0
        %1638 = vmatpush1.msra.mxu0 %v1487
        %1639 = vmatprep.subr.mxu0 0.0
        %1640 = vmatpush1.msra.mxu0 %v1488
        %1641 = vmatprep.subr.mxu0 0.0
        %1642 = vmatpush1.msra.mxu0 %v1489
        %1643 = vmatprep.subr.mxu0 0.0
        %1644 = vmatpush1.msra.mxu0 %v1490
        %1645 = vmatprep.subr.mxu0 0.0
        %1646 = vmatpush1.msra.mxu0 0.0
        %1647 = vmatprep.subr.mxu0 0.0
        %1648 = vmatpush1.msra.mxu0 0.0
        %1649 = vmatprep.subr.mxu0 0.0
        %1650 = vmatpush1.msra.mxu0 0.0
        %1651 = vmatprep.subr.mxu0 0.0
        %1652 = vmatpush1.msra.mxu0 0.0
        %1653 = vmatprep.subr.mxu0 0.0
        %1654 = vmatpush1.msra.mxu0 0.0
        %1655 = vmatprep.subr.mxu0 0.0
        %1656 = vmatpush1.msra.mxu0 0.0
        %1657 = vmatprep.subr.mxu0 0.0
        %1658 = vmatpush1.msra.mxu0 0.0
        %1659 = vmatprep.subr.mxu0 0.0
        %1660 = vmatpush1.msra.mxu0 0.0
        %1661 = vmatprep.subr.mxu0 0.0
        %1662 = vmatpush1.msra.mxu0 0.0
        %1663 = vmatprep.subr.mxu0 0.0
        %1664 = vmatpush1.msra.mxu0 0.0
        %1665 = vmatprep.subr.mxu0 0.0
        %1666 = vmatpush1.msra.mxu0 0.0
        %1667 = vmatprep.subr.mxu0 0.0
        %1668 = vmatpush1.msra.mxu0 0.0
        %1669 = vmatprep.subr.mxu0 0.0
        %1670 = vmatpush1.msra.mxu0 0.0
        %1671 = vmatprep.subr.mxu0 0.0
        %1672 = vmatpush1.msra.mxu0 0.0
        %1673 = vmatprep.subr.mxu0 0.0
        %1674 = vmatpush1.msra.mxu0 0.0
        %1675 = vmatprep.subr.mxu0 0.0
        %1676 = vmatpush1.msra.mxu0 0.0
        %1677 = vmatprep.mubr.f32.mxu0 0.0
        %1678 = vmatmul.mubr.f32.gmra.mrb[0].mxu0 %v1460
        %v1679 = vpop.f32.mrb[0].mxu0
        %v1680 = vadd.f32 %v1575, %v1679
        %v1681 = vpop.f32.mrb[0].mxu0
        %1682 = vmatprep.mubr.f32.mxu0 0.0
        %1683 = vmatmul.mubr.f32.gmra.mrb[0].mxu0 %v1460
        %v1684 = vpop.f32.mrb[0].mxu0
        %v1685 = vadd.f32 %v1580, %v1684
        %v1686 = vpop.f32.mrb[0].mxu0
        %1687 = vmatprep.mubr.f32.mxu0 0.0
        %1688 = vmatmul.mubr.f32.gmra.mrb[0].mxu0 %v1462
        %v1689 = vpop.f32.mrb[0].mxu0
        %v1690 = vadd.f32 %v1585, %v1689
        %v1691 = vpop.f32.mrb[0].mxu0
        %1692 = vmatprep.mubr.f32.mxu0 0.0
        %1693 = vmatmul.mubr.f32.gmra.mrb[0].mxu0 %v1464
        %v1694 = vpop.f32.mrb[0].mxu0
        %v1695 = vadd.f32 %v1590, %v1694
        %v1696 = vpop.f32.mrb[0].mxu0
        %1697 = vmatprep.mubr.f32.mxu0 0.0
        %1698 = vmatmul.mubr.f32.gmra.mrb[0].mxu0 %v1466
        %v1699 = vpop.f32.mrb[0].mxu0
        %v1700 = vadd.f32 %v1595, %v1699
        %v1701 = vpop.f32.mrb[0].mxu0
        %1702 = vmatprep.mubr.f32.mxu0 0.0
        %1703 = vmatmul.mubr.f32.gmra.mrb[0].mxu0 %v1468
        %v1704 = vpop.f32.mrb[0].mxu0
        %v1705 = vadd.f32 %v1600, %v1704
        %v1706 = vpop.f32.mrb[0].mxu0
        %1707 = vmatprep.mubr.f32.mxu0 0.0
        %1708 = vmatmul.mubr.f32.gmra.mrb[0].mxu0 %v1470
        %v1709 = vpop.f32.mrb[0].mxu0
        %v1710 = vadd.f32 %v1605, %v1709
        %v1711 = vpop.f32.mrb[0].mxu0
        %1712 = vmatprep.mubr.f32.mxu0 0.0
        %1713 = vmatmul.mubr.f32.gmra.mrb[0].mxu0 %v1472
        %v1714 = vpop.f32.mrb[0].mxu0
        %v1715 = vadd.f32 %v1610, %v1714
        %v1716 = vpop.f32.mrb[0].mxu0
        %1717 = vdwg.mxu0
        %s1718 = scalar_lea.vmem %s3, 256
        %v1719 = vld [vmem:[%s1718] sm:$0xff]
        %v1720 = vld [vmem:[%s1718 + $0x8] sm:$0xff]
        %v1721 = vld [vmem:[%s1718 + $0x10] sm:$0xff]
        %v1722 = vld [vmem:[%s1718 + $0x18] sm:$0xff]
        %v1723 = vld [vmem:[%s1718 + $0x20] sm:$0xff]
        %v1724 = vld [vmem:[%s1718 + $0x28] sm:$0xff]
        %v1725 = vld [vmem:[%s1718 + $0x30] sm:$0xff]
        %v1726 = vld [vmem:[%s1718 + $0x38] sm:$0xff]
        %v1727 = vld [vmem:[%s1718 + $0x40] sm:$0xff]
        %v1728 = vld [vmem:[%s1718 + $0x48] sm:$0xff]
        %v1729 = vld [vmem:[%s1718 + $0x50] sm:$0xff]
        %v1730 = vld [vmem:[%s1718 + $0x58] sm:$0xff]
        %v1731 = vld [vmem:[%s1718 + $0x60] sm:$0xff]
        %v1732 = vld [vmem:[%s1718 + $0x68] sm:$0xff]
        %v1733 = vld [vmem:[%s1718 + $0x70] sm:$0xff]
        %v1734 = vld [vmem:[%s1718 + $0x78] sm:$0xff]
        %1735 = vmatprep.subr.mxu0 0.0
        %1736 = vmatpush1.msra.mxu0 %v1719
        %1737 = vmatprep.subr.mxu0 0.0
        %1738 = vmatpush1.msra.mxu0 %v1720
        %1739 = vmatprep.subr.mxu0 0.0
        %1740 = vmatpush1.msra.mxu0 %v1721
        %1741 = vmatprep.subr.mxu0 0.0
        %1742 = vmatpush1.msra.mxu0 %v1722
        %1743 = vmatprep.subr.mxu0 0.0
        %1744 = vmatpush1.msra.mxu0 %v1723
        %1745 = vmatprep.subr.mxu0 0.0
        %1746 = vmatpush1.msra.mxu0 %v1724
        %1747 = vmatprep.subr.mxu0 0.0
        %1748 = vmatpush1.msra.mxu0 %v1725
        %1749 = vmatprep.subr.mxu0 0.0
        %1750 = vmatpush1.msra.mxu0 %v1726
        %1751 = vmatprep.subr.mxu0 0.0
        %1752 = vmatpush1.msra.mxu0 %v1727
        %1753 = vmatprep.subr.mxu0 0.0
        %1754 = vmatpush1.msra.mxu0 %v1728
        %1755 = vmatprep.subr.mxu0 0.0
        %1756 = vmatpush1.msra.mxu0 %v1729
        %1757 = vmatprep.subr.mxu0 0.0
        %1758 = vmatpush1.msra.mxu0 %v1730
        %1759 = vmatprep.subr.mxu0 0.0
        %1760 = vmatpush1.msra.mxu0 %v1731
        %1761 = vmatprep.subr.mxu0 0.0
        %1762 = vmatpush1.msra.mxu0 %v1732
        %1763 = vmatprep.subr.mxu0 0.0
        %1764 = vmatpush1.msra.mxu0 %v1733
        %1765 = vmatprep.subr.mxu0 0.0
        %1766 = vmatpush1.msra.mxu0 %v1734
        %1767 = vmatprep.subr.mxu0 0.0
        %1768 = vmatpush1.msra.mxu0 0.0
        %1769 = vmatprep.subr.mxu0 0.0
        %1770 = vmatpush1.msra.mxu0 0.0
        %1771 = vmatprep.subr.mxu0 0.0
        %1772 = vmatpush1.msra.mxu0 0.0
        %1773 = vmatprep.subr.mxu0 0.0
        %1774 = vmatpush1.msra.mxu0 0.0
        %1775 = vmatprep.subr.mxu0 0.0
        %1776 = vmatpush1.msra.mxu0 0.0
        %1777 = vmatprep.subr.mxu0 0.0
        %1778 = vmatpush1.msra.mxu0 0.0
        %1779 = vmatprep.subr.mxu0 0.0
        %1780 = vmatpush1.msra.mxu0 0.0
        %1781 = vmatprep.subr.mxu0 0.0
        %1782 = vmatpush1.msra.mxu0 0.0
        %1783 = vmatprep.subr.mxu0 0.0
        %1784 = vmatpush1.msra.mxu0 0.0
        %1785 = vmatprep.subr.mxu0 0.0
        %1786 = vmatpush1.msra.mxu0 0.0
        %1787 = vmatprep.subr.mxu0 0.0
        %1788 = vmatpush1.msra.mxu0 0.0
        %1789 = vmatprep.subr.mxu0 0.0
        %1790 = vmatpush1.msra.mxu0 0.0
        %1791 = vmatprep.subr.mxu0 0.0
        %1792 = vmatpush1.msra.mxu0 0.0
        %1793 = vmatprep.subr.mxu0 0.0
        %1794 = vmatpush1.msra.mxu0 0.0
        %1795 = vmatprep.subr.mxu0 0.0
        %1796 = vmatpush1.msra.mxu0 0.0
        %1797 = vmatprep.subr.mxu0 0.0
        %1798 = vmatpush1.msra.mxu0 0.0
        %1799 = vmatprep.mubr.f32.mxu0 0.0
        %1800 = vmatmul.mubr.f32.gmra.mrb[0].mxu0 %v1460
        %v1801 = vpop.f32.mrb[0].mxu0
        %v1802 = vadd.f32 0.0, %v1801
        %v1803 = vpop.f32.mrb[0].mxu0
        %1804 = vmatprep.mubr.f32.mxu0 0.0
        %1805 = vmatmul.mubr.f32.gmra.mrb[0].mxu0 %v1462
        %v1806 = vpop.f32.mrb[0].mxu0
        %v1807 = vadd.f32 0.0, %v1806
        %v1808 = vpop.f32.mrb[0].mxu0
        %1809 = vmatprep.mubr.f32.mxu0 0.0
        %1810 = vmatmul.mubr.f32.gmra.mrb[0].mxu0 %v1464
        %v1811 = vpop.f32.mrb[0].mxu0
        %v1812 = vadd.f32 0.0, %v1811
        %v1813 = vpop.f32.mrb[0].mxu0
        %1814 = vmatprep.mubr.f32.mxu0 0.0
        %1815 = vmatmul.mubr.f32.gmra.mrb[0].mxu0 %v1466
        %v1816 = vpop.f32.mrb[0].mxu0
        %v1817 = vadd.f32 0.0, %v1816
        %v1818 = vpop.f32.mrb[0].mxu0
        %1819 = vmatprep.mubr.f32.mxu0 0.0
        %1820 = vmatmul.mubr.f32.gmra.mrb[0].mxu0 %v1468
        %v1821 = vpop.f32.mrb[0].mxu0
        %v1822 = vadd.f32 0.0, %v1821
        %v1823 = vpop.f32.mrb[0].mxu0
        %1824 = vmatprep.mubr.f32.mxu0 0.0
        %1825 = vmatmul.mubr.f32.gmra.mrb[0].mxu0 %v1470
        %v1826 = vpop.f32.mrb[0].mxu0
        %v1827 = vadd.f32 0.0, %v1826
        %v1828 = vpop.f32.mrb[0].mxu0
        %1829 = vmatprep.mubr.f32.mxu0 0.0
        %1830 = vmatmul.mubr.f32.gmra.mrb[0].mxu0 %v1472
        %v1831 = vpop.f32.mrb[0].mxu0
        %v1832 = vadd.f32 0.0, %v1831
        %v1833 = vpop.f32.mrb[0].mxu0
        %1834 = vmatprep.mubr.f32.mxu0 0.0
        %1835 = vmatmul.mubr.f32.gmra.mrb[0].mxu0 %v1474
        %v1836 = vpop.f32.mrb[0].mxu0
        %v1837 = vadd.f32 0.0, %v1836
        %v1838 = vpop.f32.mrb[0].mxu0
        %1839 = vdwg.mxu0
        %v1840 = vadd.f32 %v1680, %v1802
        %v1841 = vadd.f32 %v1685, %v1807
        %v1842 = vadd.f32 %v1690, %v1812
        %v1843 = vadd.f32 %v1695, %v1817
        %v1844 = vadd.f32 %v1700, %v1822
        %v1845 = vadd.f32 %v1705, %v1827
        %v1846 = vadd.f32 %v1710, %v1832
        %v1847 = vadd.f32 %v1715, %v1837
        %s1848 = scalar_lea.vmem %s3, 384
        %v1849 = vld [vmem:[%s1848] sm:$0xff]
        %v1850 = vld [vmem:[%s1848 + $0x8] sm:$0xff]
        %v1851 = vld [vmem:[%s1848 + $0x10] sm:$0xff]
        %v1852 = vld [vmem:[%s1848 + $0x18] sm:$0xff]
        %v1853 = vld [vmem:[%s1848 + $0x20] sm:$0xff]
        %v1854 = vld [vmem:[%s1848 + $0x28] sm:$0xff]
        %v1855 = vld [vmem:[%s1848 + $0x30] sm:$0xff]
        %v1856 = vld [vmem:[%s1848 + $0x38] sm:$0xff]
        %v1857 = vld [vmem:[%s1848 + $0x40] sm:$0xff]
        %v1858 = vld [vmem:[%s1848 + $0x48] sm:$0xff]
        %v1859 = vld [vmem:[%s1848 + $0x50] sm:$0xff]
        %v1860 = vld [vmem:[%s1848 + $0x58] sm:$0xff]
        %v1861 = vld [vmem:[%s1848 + $0x60] sm:$0xff]
        %v1862 = vld [vmem:[%s1848 + $0x68] sm:$0xff]
        %v1863 = vld [vmem:[%s1848 + $0x70] sm:$0xff]
        %v1864 = vld [vmem:[%s1848 + $0x78] sm:$0xff]
        %1865 = vmatprep.subr.mxu0 0.0
        %1866 = vmatpush1.msra.mxu0 %v1849
        %1867 = vmatprep.subr.mxu0 0.0
        %1868 = vmatpush1.msra.mxu0 %v1850
        %1869 = vmatprep.subr.mxu0 0.0
        %1870 = vmatpush1.msra.mxu0 %v1851
        %1871 = vmatprep.subr.mxu0 0.0
        %1872 = vmatpush1.msra.mxu0 %v1852
        %1873 = vmatprep.subr.mxu0 0.0
        %1874 = vmatpush1.msra.mxu0 %v1853
        %1875 = vmatprep.subr.mxu0 0.0
        %1876 = vmatpush1.msra.mxu0 %v1854
        %1877 = vmatprep.subr.mxu0 0.0
        %1878 = vmatpush1.msra.mxu0 %v1855
        %1879 = vmatprep.subr.mxu0 0.0
        %1880 = vmatpush1.msra.mxu0 %v1856
        %1881 = vmatprep.subr.mxu0 0.0
        %1882 = vmatpush1.msra.mxu0 %v1857
        %1883 = vmatprep.subr.mxu0 0.0
        %1884 = vmatpush1.msra.mxu0 %v1858
        %1885 = vmatprep.subr.mxu0 0.0
        %1886 = vmatpush1.msra.mxu0 %v1859
        %1887 = vmatprep.subr.mxu0 0.0
        %1888 = vmatpush1.msra.mxu0 %v1860
        %1889 = vmatprep.subr.mxu0 0.0
        %1890 = vmatpush1.msra.mxu0 %v1861
        %1891 = vmatprep.subr.mxu0 0.0
        %1892 = vmatpush1.msra.mxu0 %v1862
        %1893 = vmatprep.subr.mxu0 0.0
        %1894 = vmatpush1.msra.mxu0 %v1863
        %1895 = vmatprep.subr.mxu0 0.0
        %1896 = vmatpush1.msra.mxu0 %v1864
        %1897 = vmatprep.subr.mxu0 0.0
        %1898 = vmatpush1.msra.mxu0 0.0
        %1899 = vmatprep.subr.mxu0 0.0
        %1900 = vmatpush1.msra.mxu0 0.0
        %1901 = vmatprep.subr.mxu0 0.0
        %1902 = vmatpush1.msra.mxu0 0.0
        %1903 = vmatprep.subr.mxu0 0.0
        %1904 = vmatpush1.msra.mxu0 0.0
        %1905 = vmatprep.subr.mxu0 0.0
        %1906 = vmatpush1.msra.mxu0 0.0
        %1907 = vmatprep.subr.mxu0 0.0
        %1908 = vmatpush1.msra.mxu0 0.0
        %1909 = vmatprep.subr.mxu0 0.0
        %1910 = vmatpush1.msra.mxu0 0.0
        %1911 = vmatprep.subr.mxu0 0.0
        %1912 = vmatpush1.msra.mxu0 0.0
        %1913 = vmatprep.subr.mxu0 0.0
        %1914 = vmatpush1.msra.mxu0 0.0
        %1915 = vmatprep.subr.mxu0 0.0
        %1916 = vmatpush1.msra.mxu0 0.0
        %1917 = vmatprep.subr.mxu0 0.0
        %1918 = vmatpush1.msra.mxu0 0.0
        %1919 = vmatprep.subr.mxu0 0.0
        %1920 = vmatpush1.msra.mxu0 0.0
        %1921 = vmatprep.subr.mxu0 0.0
        %1922 = vmatpush1.msra.mxu0 0.0
        %1923 = vmatprep.subr.mxu0 0.0
        %1924 = vmatpush1.msra.mxu0 0.0
        %1925 = vmatprep.subr.mxu0 0.0
        %1926 = vmatpush1.msra.mxu0 0.0
        %1927 = vmatprep.subr.mxu0 0.0
        %1928 = vmatpush1.msra.mxu0 0.0
        %1929 = vmatprep.mubr.f32.mxu0 0.0
        %1930 = vmatmul.mubr.f32.gmra.mrb[0].mxu0 %v1461
        %v1931 = vpop.f32.mrb[0].mxu0
        %v1932 = vadd.f32 0.0, %v1931
        %v1933 = vpop.f32.mrb[0].mxu0
        %1934 = vmatprep.mubr.f32.mxu0 0.0
        %1935 = vmatmul.mubr.f32.gmra.mrb[0].mxu0 %v1463
        %v1936 = vpop.f32.mrb[0].mxu0
        %v1937 = vadd.f32 0.0, %v1936
        %v1938 = vpop.f32.mrb[0].mxu0
        %1939 = vmatprep.mubr.f32.mxu0 0.0
        %1940 = vmatmul.mubr.f32.gmra.mrb[0].mxu0 %v1465
        %v1941 = vpop.f32.mrb[0].mxu0
        %v1942 = vadd.f32 0.0, %v1941
        %v1943 = vpop.f32.mrb[0].mxu0
        %1944 = vmatprep.mubr.f32.mxu0 0.0
        %1945 = vmatmul.mubr.f32.gmra.mrb[0].mxu0 %v1467
        %v1946 = vpop.f32.mrb[0].mxu0
        %v1947 = vadd.f32 0.0, %v1946
        %v1948 = vpop.f32.mrb[0].mxu0
        %1949 = vmatprep.mubr.f32.mxu0 0.0
        %1950 = vmatmul.mubr.f32.gmra.mrb[0].mxu0 %v1469
        %v1951 = vpop.f32.mrb[0].mxu0
        %v1952 = vadd.f32 0.0, %v1951
        %v1953 = vpop.f32.mrb[0].mxu0
        %1954 = vmatprep.mubr.f32.mxu0 0.0
        %1955 = vmatmul.mubr.f32.gmra.mrb[0].mxu0 %v1471
        %v1956 = vpop.f32.mrb[0].mxu0
        %v1957 = vadd.f32 0.0, %v1956
        %v1958 = vpop.f32.mrb[0].mxu0
        %1959 = vmatprep.mubr.f32.mxu0 0.0
        %1960 = vmatmul.mubr.f32.gmra.mrb[0].mxu0 %v1473
        %v1961 = vpop.f32.mrb[0].mxu0
        %v1962 = vadd.f32 0.0, %v1961
        %v1963 = vpop.f32.mrb[0].mxu0
        %1964 = vmatprep.mubr.f32.mxu0 0.0
        %1965 = vmatmul.mubr.f32.gmra.mrb[0].mxu0 %v1473
        %v1966 = vpop.f32.mrb[0].mxu0
        %v1967 = vadd.f32 0.0, %v1966
        %v1968 = vpop.f32.mrb[0].mxu0
        %1969 = vdwg.mxu0
        %v1970 = vadd.f32 %v1840, %v1932
        %v1971 = vadd.f32 %v1841, %v1937
        %v1972 = vadd.f32 %v1842, %v1942
        %v1973 = vadd.f32 %v1843, %v1947
        %v1974 = vadd.f32 %v1844, %v1952
        %v1975 = vadd.f32 %v1845, %v1957
        %v1976 = vadd.f32 %v1846, %v1962
        %v1977 = vadd.f32 %v1847, %v1967
        %v1978 = vld [vmem:[%s4] sm:$0x1]
        %v1980 = vlaneseq
        %v1981 = vshrl.u32 %v1980, 7
        %v1982 = vsub.s32 0, %v1981
        %v1983 = vrot.slane %v1978, %v1982
        %v1985 = vadd.f32 %v1970, %v1983
        %v1986 = vadd.f32 %v1971, %v1983
        %v1987 = vadd.f32 %v1972, %v1983
        %v1988 = vadd.f32 %v1973, %v1983
        %v1989 = vadd.f32 %v1974, %v1983
        %v1990 = vadd.f32 %v1975, %v1983
        %v1991 = vadd.f32 %v1976, %v1983
        %v1992 = vadd.f32 %v1977, %v1983
        %v1993 = vmul.f32 %v1985, 0.2
        %v1994 = vmul.f32 %v1986, 0.2
        %v1995 = vmul.f32 %v1987, 0.2
        %v1996 = vmul.f32 %v1988, 0.2
        %v1997 = vmul.f32 %v1989, 0.2
        %v1998 = vmul.f32 %v1990, 0.2
        %v1999 = vmul.f32 %v1991, 0.2
        %v2000 = vmul.f32 %v1992, 0.2
        %v2001 = vmax.f32 %v1985, %v1993
        %v2002 = vmax.f32 %v1986, %v1994
        %v2003 = vmax.f32 %v1987, %v1995
        %v2004 = vmax.f32 %v1988, %v1996
        %v2005 = vmax.f32 %v1989, %v1997
        %v2006 = vmax.f32 %v1990, %v1998
        %v2007 = vmax.f32 %v1991, %v1999
        %v2008 = vmax.f32 %v1992, %v2000
        %v2009 = vld [vmem:[%s5] sm:$0xff]
        %v2010 = vld [vmem:[%s5 + $0x8] sm:$0xff]
        %v2011 = vld [vmem:[%s5 + $0x10] sm:$0xff]
        %v2012 = vld [vmem:[%s5 + $0x18] sm:$0xff]
        %v2013 = vld [vmem:[%s5 + $0x20] sm:$0xff]
        %v2014 = vld [vmem:[%s5 + $0x28] sm:$0xff]
        %v2015 = vld [vmem:[%s5 + $0x30] sm:$0xff]
        %v2016 = vld [vmem:[%s5 + $0x38] sm:$0xff]
        %v2017 = vld [vmem:[%s5 + $0x40] sm:$0xff]
        %v2018 = vld [vmem:[%s5 + $0x48] sm:$0xff]
        %v2019 = vld [vmem:[%s5 + $0x50] sm:$0xff]
        %v2020 = vld [vmem:[%s5 + $0x58] sm:$0xff]
        %v2021 = vld [vmem:[%s5 + $0x60] sm:$0xff]
        %v2022 = vld [vmem:[%s5 + $0x68] sm:$0xff]
        %v2023 = vld [vmem:[%s5 + $0x70] sm:$0xff]
        %v2024 = vld [vmem:[%s5 + $0x78] sm:$0xff]
        %s2025 = scalar_lea.vmem %s5, 128
        %v2026 = vld [vmem:[%s2025] sm:$0xff]
        %v2027 = vld [vmem:[%s2025 + $0x8] sm:$0xff]
        %v2028 = vld [vmem:[%s2025 + $0x10] sm:$0xff]
        %v2029 = vld [vmem:[%s2025 + $0x18] sm:$0xff]
        %v2030 = vld [vmem:[%s2025 + $0x20] sm:$0xff]
        %v2031 = vld [vmem:[%s2025 + $0x28] sm:$0xff]
        %v2032 = vld [vmem:[%s2025 + $0x30] sm:$0xff]
        %v2033 = vld [vmem:[%s2025 + $0x38] sm:$0xff]
        %v2034 = vld [vmem:[%s2025 + $0x40] sm:$0xff]
        %v2035 = vld [vmem:[%s2025 + $0x48] sm:$0xff]
        %v2036 = vld [vmem:[%s2025 + $0x50] sm:$0xff]
        %v2037 = vld [vmem:[%s2025 + $0x58] sm:$0xff]
        %v2038 = vld [vmem:[%s2025 + $0x60] sm:$0xff]
        %v2039 = vld [vmem:[%s2025 + $0x68] sm:$0xff]
        %v2040 = vld [vmem:[%s2025 + $0x70] sm:$0xff]
        %v2041 = vld [vmem:[%s2025 + $0x78] sm:$0xff]
        %2042 = vmatprep.subr.mxu0 0.0
        %2043 = vmatpush1.msra.mxu0 %v2026
        %2044 = vmatprep.subr.mxu0 0.0
        %2045 = vmatpush1.msra.mxu0 %v2027
        %2046 = vmatprep.subr.mxu0 0.0
        %2047 = vmatpush1.msra.mxu0 %v2028
        %2048 = vmatprep.subr.mxu0 0.0
        %2049 = vmatpush1.msra.mxu0 %v2029
        %2050 = vmatprep.subr.mxu0 0.0
        %2051 = vmatpush1.msra.mxu0 %v2030
        %2052 = vmatprep.subr.mxu0 0.0
        %2053 = vmatpush1.msra.mxu0 %v2031
        %2054 = vmatprep.subr.mxu0 0.0
        %2055 = vmatpush1.msra.mxu0 %v2032
        %2056 = vmatprep.subr.mxu0 0.0
        %2057 = vmatpush1.msra.mxu0 %v2033
        %2058 = vmatprep.subr.mxu0 0.0
        %2059 = vmatpush1.msra.mxu0 %v2034
        %2060 = vmatprep.subr.mxu0 0.0
        %2061 = vmatpush1.msra.mxu0 %v2035
        %2062 = vmatprep.subr.mxu0 0.0
        %2063 = vmatpush1.msra.mxu0 %v2036
        %2064 = vmatprep.subr.mxu0 0.0
        %2065 = vmatpush1.msra.mxu0 %v2037
        %2066 = vmatprep.subr.mxu0 0.0
        %2067 = vmatpush1.msra.mxu0 %v2038
        %2068 = vmatprep.subr.mxu0 0.0
        %2069 = vmatpush1.msra.mxu0 %v2039
        %2070 = vmatprep.subr.mxu0 0.0
        %2071 = vmatpush1.msra.mxu0 %v2040
        %2072 = vmatprep.subr.mxu0 0.0
        %2073 = vmatpush1.msra.mxu0 %v2041
        %2074 = vmatprep.subr.mxu0 0.0
        %2075 = vmatpush1.msra.mxu0 0.0
        %2076 = vmatprep.subr.mxu0 0.0
        %2077 = vmatpush1.msra.mxu0 0.0
        %2078 = vmatprep.subr.mxu0 0.0
        %2079 = vmatpush1.msra.mxu0 0.0
        %2080 = vmatprep.subr.mxu0 0.0
        %2081 = vmatpush1.msra.mxu0 0.0
        %2082 = vmatprep.subr.mxu0 0.0
        %2083 = vmatpush1.msra.mxu0 0.0
        %2084 = vmatprep.subr.mxu0 0.0
        %2085 = vmatpush1.msra.mxu0 0.0
        %2086 = vmatprep.subr.mxu0 0.0
        %2087 = vmatpush1.msra.mxu0 0.0
        %2088 = vmatprep.subr.mxu0 0.0
        %2089 = vmatpush1.msra.mxu0 0.0
        %2090 = vmatprep.subr.mxu0 0.0
        %2091 = vmatpush1.msra.mxu0 0.0
        %2092 = vmatprep.subr.mxu0 0.0
        %2093 = vmatpush1.msra.mxu0 0.0
        %2094 = vmatprep.subr.mxu0 0.0
        %2095 = vmatpush1.msra.mxu0 0.0
        %2096 = vmatprep.subr.mxu0 0.0
        %2097 = vmatpush1.msra.mxu0 0.0
        %2098 = vmatprep.subr.mxu0 0.0
        %2099 = vmatpush1.msra.mxu0 0.0
        %2100 = vmatprep.subr.mxu0 0.0
        %2101 = vmatpush1.msra.mxu0 0.0
        %2102 = vmatprep.subr.mxu0 0.0
        %2103 = vmatpush1.msra.mxu0 0.0
        %2104 = vmatprep.subr.mxu0 0.0
        %2105 = vmatpush1.msra.mxu0 0.0
        %2106 = vmatprep.mubr.f32.mxu0 0.0
        %2107 = vmatmul.mubr.f32.gmra.mrb[0].mxu0 %v2001
        %v2108 = vpop.f32.mrb[0].mxu0
        %v2109 = vadd.f32 0.0, %v2108
        %v2110 = vpop.f32.mrb[0].mxu0
        %2111 = vmatprep.mubr.f32.mxu0 0.0
        %2112 = vmatmul.mubr.f32.gmra.mrb[0].mxu0 %v2003
        %v2113 = vpop.f32.mrb[0].mxu0
        %v2114 = vadd.f32 0.0, %v2113
        %v2115 = vpop.f32.mrb[0].mxu0
        %2116 = vmatprep.mubr.f32.mxu0 0.0
        %2117 = vmatmul.mubr.f32.gmra.mrb[0].mxu0 %v2005
        %v2118 = vpop.f32.mrb[0].mxu0
        %v2119 = vadd.f32 0.0, %v2118
        %v2120 = vpop.f32.mrb[0].mxu0
        %2121 = vmatprep.mubr.f32.mxu0 0.0
        %2122 = vmatmul.mubr.f32.gmra.mrb[0].mxu0 %v2007
        %v2123 = vpop.f32.mrb[0].mxu0
        %v2124 = vadd.f32 0.0, %v2123
        %v2125 = vpop.f32.mrb[0].mxu0
        %2126 = vdwg.mxu0
        %2127 = vmatprep.subr.mxu0 0.0
        %2128 = vmatpush1.msra.mxu0 %v2009
        %2129 = vmatprep.subr.mxu0 0.0
        %2130 = vmatpush1.msra.mxu0 %v2010
        %2131 = vmatprep.subr.mxu0 0.0
        %2132 = vmatpush1.msra.mxu0 %v2011
        %2133 = vmatprep.subr.mxu0 0.0
        %2134 = vmatpush1.msra.mxu0 %v2012
        %2135 = vmatprep.subr.mxu0 0.0
        %2136 = vmatpush1.msra.mxu0 %v2013
        %2137 = vmatprep.subr.mxu0 0.0
        %2138 = vmatpush1.msra.mxu0 %v2014
        %2139 = vmatprep.subr.mxu0 0.0
        %2140 = vmatpush1.msra.mxu0 %v2015
        %2141 = vmatprep.subr.mxu0 0.0
        %2142 = vmatpush1.msra.mxu0 %v2016
        %2143 = vmatprep.subr.mxu0 0.0
        %2144 = vmatpush1.msra.mxu0 %v2017
        %2145 = vmatprep.subr.mxu0 0.0
        %2146 = vmatpush1.msra.mxu0 %v2018
        %2147 = vmatprep.subr.mxu0 0.0
        %2148 = vmatpush1.msra.mxu0 %v2019
        %2149 = vmatprep.subr.mxu0 0.0
        %2150 = vmatpush1.msra.mxu0 %v2020
        %2151 = vmatprep.subr.mxu0 0.0
        %2152 = vmatpush1.msra.mxu0 %v2021
        %2153 = vmatprep.subr.mxu0 0.0
        %2154 = vmatpush1.msra.mxu0 %v2022
        %2155 = vmatprep.subr.mxu0 0.0
        %2156 = vmatpush1.msra.mxu0 %v2023
        %2157 = vmatprep.subr.mxu0 0.0
        %2158 = vmatpush1.msra.mxu0 %v2024
        %2159 = vmatprep.subr.mxu0 0.0
        %2160 = vmatpush1.msra.mxu0 0.0
        %2161 = vmatprep.subr.mxu0 0.0
        %2162 = vmatpush1.msra.mxu0 0.0
        %2163 = vmatprep.subr.mxu0 0.0
        %2164 = vmatpush1.msra.mxu0 0.0
        %2165 = vmatprep.subr.mxu0 0.0
        %2166 = vmatpush1.msra.mxu0 0.0
        %2167 = vmatprep.subr.mxu0 0.0
        %2168 = vmatpush1.msra.mxu0 0.0
        %2169 = vmatprep.subr.mxu0 0.0
        %2170 = vmatpush1.msra.mxu0 0.0
        %2171 = vmatprep.subr.mxu0 0.0
        %2172 = vmatpush1.msra.mxu0 0.0
        %2173 = vmatprep.subr.mxu0 0.0
        %2174 = vmatpush1.msra.mxu0 0.0
        %2175 = vmatprep.subr.mxu0 0.0
        %2176 = vmatpush1.msra.mxu0 0.0
        %2177 = vmatprep.subr.mxu0 0.0
        %2178 = vmatpush1.msra.mxu0 0.0
        %2179 = vmatprep.subr.mxu0 0.0
        %2180 = vmatpush1.msra.mxu0 0.0
        %2181 = vmatprep.subr.mxu0 0.0
        %2182 = vmatpush1.msra.mxu0 0.0
        %2183 = vmatprep.subr.mxu0 0.0
        %2184 = vmatpush1.msra.mxu0 0.0
        %2185 = vmatprep.subr.mxu0 0.0
        %2186 = vmatpush1.msra.mxu0 0.0
        %2187 = vmatprep.subr.mxu0 0.0
        %2188 = vmatpush1.msra.mxu0 0.0
        %2189 = vmatprep.subr.mxu0 0.0
        %2190 = vmatpush1.msra.mxu0 0.0
        %2191 = vmatprep.mubr.f32.mxu0 0.0
        %2192 = vmatmul.mubr.f32.gmra.mrb[0].mxu0 %v2002
        %v2193 = vpop.f32.mrb[0].mxu0
        %v2194 = vadd.f32 %v2109, %v2193
        %v2195 = vpop.f32.mrb[0].mxu0
        %2196 = vmatprep.mubr.f32.mxu0 0.0
        %2197 = vmatmul.mubr.f32.gmra.mrb[0].mxu0 %v2002
        %v2198 = vpop.f32.mrb[0].mxu0
        %v2199 = vadd.f32 %v2114, %v2198
        %v2200 = vpop.f32.mrb[0].mxu0
        %2201 = vmatprep.mubr.f32.mxu0 0.0
        %2202 = vmatmul.mubr.f32.gmra.mrb[0].mxu0 %v2004
        %v2203 = vpop.f32.mrb[0].mxu0
        %v2204 = vadd.f32 %v2119, %v2203
        %v2205 = vpop.f32.mrb[0].mxu0
        %2206 = vmatprep.mubr.f32.mxu0 0.0
        %2207 = vmatmul.mubr.f32.gmra.mrb[0].mxu0 %v2006
        %v2208 = vpop.f32.mrb[0].mxu0
        %v2209 = vadd.f32 %v2124, %v2208
        %v2210 = vpop.f32.mrb[0].mxu0
        %2211 = vdwg.mxu0
        %s2212 = scalar_lea.vmem %s5, 256
        %v2213 = vld [vmem:[%s2212] sm:$0xff]
        %v2214 = vld [vmem:[%s2212 + $0x8] sm:$0xff]
        %v2215 = vld [vmem:[%s2212 + $0x10] sm:$0xff]
        %v2216 = vld [vmem:[%s2212 + $0x18] sm:$0xff]
        %v2217 = vld [vmem:[%s2212 + $0x20] sm:$0xff]
        %v2218 = vld [vmem:[%s2212 + $0x28] sm:$0xff]
        %v2219 = vld [vmem:[%s2212 + $0x30] sm:$0xff]
        %v2220 = vld [vmem:[%s2212 + $0x38] sm:$0xff]
        %v2221 = vld [vmem:[%s2212 + $0x40] sm:$0xff]
        %v2222 = vld [vmem:[%s2212 + $0x48] sm:$0xff]
        %v2223 = vld [vmem:[%s2212 + $0x50] sm:$0xff]
        %v2224 = vld [vmem:[%s2212 + $0x58] sm:$0xff]
        %v2225 = vld [vmem:[%s2212 + $0x60] sm:$0xff]
        %v2226 = vld [vmem:[%s2212 + $0x68] sm:$0xff]
        %v2227 = vld [vmem:[%s2212 + $0x70] sm:$0xff]
        %v2228 = vld [vmem:[%s2212 + $0x78] sm:$0xff]
        %2229 = vmatprep.subr.mxu0 0.0
        %2230 = vmatpush1.msra.mxu0 %v2213
        %2231 = vmatprep.subr.mxu0 0.0
        %2232 = vmatpush1.msra.mxu0 %v2214
        %2233 = vmatprep.subr.mxu0 0.0
        %2234 = vmatpush1.msra.mxu0 %v2215
        %2235 = vmatprep.subr.mxu0 0.0
        %2236 = vmatpush1.msra.mxu0 %v2216
        %2237 = vmatprep.subr.mxu0 0.0
        %2238 = vmatpush1.msra.mxu0 %v2217
        %2239 = vmatprep.subr.mxu0 0.0
        %2240 = vmatpush1.msra.mxu0 %v2218
        %2241 = vmatprep.subr.mxu0 0.0
        %2242 = vmatpush1.msra.mxu0 %v2219
        %2243 = vmatprep.subr.mxu0 0.0
        %2244 = vmatpush1.msra.mxu0 %v2220
        %2245 = vmatprep.subr.mxu0 0.0
        %2246 = vmatpush1.msra.mxu0 %v2221
        %2247 = vmatprep.subr.mxu0 0.0
        %2248 = vmatpush1.msra.mxu0 %v2222
        %2249 = vmatprep.subr.mxu0 0.0
        %2250 = vmatpush1.msra.mxu0 %v2223
        %2251 = vmatprep.subr.mxu0 0.0
        %2252 = vmatpush1.msra.mxu0 %v2224
        %2253 = vmatprep.subr.mxu0 0.0
        %2254 = vmatpush1.msra.mxu0 %v2225
        %2255 = vmatprep.subr.mxu0 0.0
        %2256 = vmatpush1.msra.mxu0 %v2226
        %2257 = vmatprep.subr.mxu0 0.0
        %2258 = vmatpush1.msra.mxu0 %v2227
        %2259 = vmatprep.subr.mxu0 0.0
        %2260 = vmatpush1.msra.mxu0 %v2228
        %2261 = vmatprep.subr.mxu0 0.0
        %2262 = vmatpush1.msra.mxu0 0.0
        %2263 = vmatprep.subr.mxu0 0.0
        %2264 = vmatpush1.msra.mxu0 0.0
        %2265 = vmatprep.subr.mxu0 0.0
        %2266 = vmatpush1.msra.mxu0 0.0
        %2267 = vmatprep.subr.mxu0 0.0
        %2268 = vmatpush1.msra.mxu0 0.0
        %2269 = vmatprep.subr.mxu0 0.0
        %2270 = vmatpush1.msra.mxu0 0.0
        %2271 = vmatprep.subr.mxu0 0.0
        %2272 = vmatpush1.msra.mxu0 0.0
        %2273 = vmatprep.subr.mxu0 0.0
        %2274 = vmatpush1.msra.mxu0 0.0
        %2275 = vmatprep.subr.mxu0 0.0
        %2276 = vmatpush1.msra.mxu0 0.0
        %2277 = vmatprep.subr.mxu0 0.0
        %2278 = vmatpush1.msra.mxu0 0.0
        %2279 = vmatprep.subr.mxu0 0.0
        %2280 = vmatpush1.msra.mxu0 0.0
        %2281 = vmatprep.subr.mxu0 0.0
        %2282 = vmatpush1.msra.mxu0 0.0
        %2283 = vmatprep.subr.mxu0 0.0
        %2284 = vmatpush1.msra.mxu0 0.0
        %2285 = vmatprep.subr.mxu0 0.0
        %2286 = vmatpush1.msra.mxu0 0.0
        %2287 = vmatprep.subr.mxu0 0.0
        %2288 = vmatpush1.msra.mxu0 0.0
        %2289 = vmatprep.subr.mxu0 0.0
        %2290 = vmatpush1.msra.mxu0 0.0
        %2291 = vmatprep.subr.mxu0 0.0
        %2292 = vmatpush1.msra.mxu0 0.0
        %2293 = vmatprep.mubr.f32.mxu0 0.0
        %2294 = vmatmul.mubr.f32.gmra.mrb[0].mxu0 %v2002
        %v2295 = vpop.f32.mrb[0].mxu0
        %v2296 = vadd.f32 0.0, %v2295
        %v2297 = vpop.f32.mrb[0].mxu0
        %2298 = vmatprep.mubr.f32.mxu0 0.0
        %2299 = vmatmul.mubr.f32.gmra.mrb[0].mxu0 %v2004
        %v2300 = vpop.f32.mrb[0].mxu0
        %v2301 = vadd.f32 0.0, %v2300
        %v2302 = vpop.f32.mrb[0].mxu0
        %2303 = vmatprep.mubr.f32.mxu0 0.0
        %2304 = vmatmul.mubr.f32.gmra.mrb[0].mxu0 %v2006
        %v2305 = vpop.f32.mrb[0].mxu0
        %v2306 = vadd.f32 0.0, %v2305
        %v2307 = vpop.f32.mrb[0].mxu0
        %2308 = vmatprep.mubr.f32.mxu0 0.0
        %2309 = vmatmul.mubr.f32.gmra.mrb[0].mxu0 %v2008
        %v2310 = vpop.f32.mrb[0].mxu0
        %v2311 = vadd.f32 0.0, %v2310
        %v2312 = vpop.f32.mrb[0].mxu0
        %2313 = vdwg.mxu0
        %v2314 = vadd.f32 %v2194, %v2296
        %v2315 = vadd.f32 %v2199, %v2301
        %v2316 = vadd.f32 %v2204, %v2306
        %v2317 = vadd.f32 %v2209, %v2311
        %s2318 = scalar_lea.vmem %s5, 384
        %v2319 = vld [vmem:[%s2318] sm:$0xff]
        %v2320 = vld [vmem:[%s2318 + $0x8] sm:$0xff]
        %v2321 = vld [vmem:[%s2318 + $0x10] sm:$0xff]
        %v2322 = vld [vmem:[%s2318 + $0x18] sm:$0xff]
        %v2323 = vld [vmem:[%s2318 + $0x20] sm:$0xff]
        %v2324 = vld [vmem:[%s2318 + $0x28] sm:$0xff]
        %v2325 = vld [vmem:[%s2318 + $0x30] sm:$0xff]
        %v2326 = vld [vmem:[%s2318 + $0x38] sm:$0xff]
        %v2327 = vld [vmem:[%s2318 + $0x40] sm:$0xff]
        %v2328 = vld [vmem:[%s2318 + $0x48] sm:$0xff]
        %v2329 = vld [vmem:[%s2318 + $0x50] sm:$0xff]
        %v2330 = vld [vmem:[%s2318 + $0x58] sm:$0xff]
        %v2331 = vld [vmem:[%s2318 + $0x60] sm:$0xff]
        %v2332 = vld [vmem:[%s2318 + $0x68] sm:$0xff]
        %v2333 = vld [vmem:[%s2318 + $0x70] sm:$0xff]
        %v2334 = vld [vmem:[%s2318 + $0x78] sm:$0xff]
        %2335 = vmatprep.subr.mxu0 0.0
        %2336 = vmatpush1.msra.mxu0 %v2319
        %2337 = vmatprep.subr.mxu0 0.0
        %2338 = vmatpush1.msra.mxu0 %v2320
        %2339 = vmatprep.subr.mxu0 0.0
        %2340 = vmatpush1.msra.mxu0 %v2321
        %2341 = vmatprep.subr.mxu0 0.0
        %2342 = vmatpush1.msra.mxu0 %v2322
        %2343 = vmatprep.subr.mxu0 0.0
        %2344 = vmatpush1.msra.mxu0 %v2323
        %2345 = vmatprep.subr.mxu0 0.0
        %2346 = vmatpush1.msra.mxu0 %v2324
        %2347 = vmatprep.subr.mxu0 0.0
        %2348 = vmatpush1.msra.mxu0 %v2325
        %2349 = vmatprep.subr.mxu0 0.0
        %2350 = vmatpush1.msra.mxu0 %v2326
        %2351 = vmatprep.subr.mxu0 0.0
        %2352 = vmatpush1.msra.mxu0 %v2327
        %2353 = vmatprep.subr.mxu0 0.0
        %2354 = vmatpush1.msra.mxu0 %v2328
        %2355 = vmatprep.subr.mxu0 0.0
        %2356 = vmatpush1.msra.mxu0 %v2329
        %2357 = vmatprep.subr.mxu0 0.0
        %2358 = vmatpush1.msra.mxu0 %v2330
        %2359 = vmatprep.subr.mxu0 0.0
        %2360 = vmatpush1.msra.mxu0 %v2331
        %2361 = vmatprep.subr.mxu0 0.0
        %2362 = vmatpush1.msra.mxu0 %v2332
        %2363 = vmatprep.subr.mxu0 0.0
        %2364 = vmatpush1.msra.mxu0 %v2333
        %2365 = vmatprep.subr.mxu0 0.0
        %2366 = vmatpush1.msra.mxu0 %v2334
        %2367 = vmatprep.subr.mxu0 0.0
        %2368 = vmatpush1.msra.mxu0 0.0
        %2369 = vmatprep.subr.mxu0 0.0
        %2370 = vmatpush1.msra.mxu0 0.0
        %2371 = vmatprep.subr.mxu0 0.0
        %2372 = vmatpush1.msra.mxu0 0.0
        %2373 = vmatprep.subr.mxu0 0.0
        %2374 = vmatpush1.msra.mxu0 0.0
        %2375 = vmatprep.subr.mxu0 0.0
        %2376 = vmatpush1.msra.mxu0 0.0
        %2377 = vmatprep.subr.mxu0 0.0
        %2378 = vmatpush1.msra.mxu0 0.0
        %2379 = vmatprep.subr.mxu0 0.0
        %2380 = vmatpush1.msra.mxu0 0.0
        %2381 = vmatprep.subr.mxu0 0.0
        %2382 = vmatpush1.msra.mxu0 0.0
        %2383 = vmatprep.subr.mxu0 0.0
        %2384 = vmatpush1.msra.mxu0 0.0
        %2385 = vmatprep.subr.mxu0 0.0
        %2386 = vmatpush1.msra.mxu0 0.0
        %2387 = vmatprep.subr.mxu0 0.0
        %2388 = vmatpush1.msra.mxu0 0.0
        %2389 = vmatprep.subr.mxu0 0.0
        %2390 = vmatpush1.msra.mxu0 0.0
        %2391 = vmatprep.subr.mxu0 0.0
        %2392 = vmatpush1.msra.mxu0 0.0
        %2393 = vmatprep.subr.mxu0 0.0
        %2394 = vmatpush1.msra.mxu0 0.0
        %2395 = vmatprep.subr.mxu0 0.0
        %2396 = vmatpush1.msra.mxu0 0.0
        %2397 = vmatprep.subr.mxu0 0.0
        %2398 = vmatpush1.msra.mxu0 0.0
        %2399 = vmatprep.mubr.f32.mxu0 0.0
        %2400 = vmatmul.mubr.f32.gmra.mrb[0].mxu0 %v2003
        %v2401 = vpop.f32.mrb[0].mxu0
        %v2402 = vadd.f32 0.0, %v2401
        %v2403 = vpop.f32.mrb[0].mxu0
        %2404 = vmatprep.mubr.f32.mxu0 0.0
        %2405 = vmatmul.mubr.f32.gmra.mrb[0].mxu0 %v2005
        %v2406 = vpop.f32.mrb[0].mxu0
        %v2407 = vadd.f32 0.0, %v2406
        %v2408 = vpop.f32.mrb[0].mxu0
        %2409 = vmatprep.mubr.f32.mxu0 0.0
        %2410 = vmatmul.mubr.f32.gmra.mrb[0].mxu0 %v2007
        %v2411 = vpop.f32.mrb[0].mxu0
        %v2412 = vadd.f32 0.0, %v2411
        %v2413 = vpop.f32.mrb[0].mxu0
        %2414 = vmatprep.mubr.f32.mxu0 0.0
        %2415 = vmatmul.mubr.f32.gmra.mrb[0].mxu0 %v2007
        %v2416 = vpop.f32.mrb[0].mxu0
        %v2417 = vadd.f32 0.0, %v2416
        %v2418 = vpop.f32.mrb[0].mxu0
        %2419 = vdwg.mxu0
        %v2420 = vadd.f32 %v2314, %v2402
        %v2421 = vadd.f32 %v2315, %v2407
        %v2422 = vadd.f32 %v2316, %v2412
        %v2423 = vadd.f32 %v2317, %v2417
        %v2424 = vld [vmem:[%s6] sm:$0x1]
        %v2426 = vlaneseq
        %v2427 = vshrl.u32 %v2426, 7
        %v2428 = vsub.s32 0, %v2427
        %v2429 = vrot.slane %v2424, %v2428
        %v2431 = vadd.f32 %v2420, %v2429
        %v2432 = vadd.f32 %v2421, %v2429
        %v2433 = vadd.f32 %v2422, %v2429
        %v2434 = vadd.f32 %v2423, %v2429
        %v2435 = vmul.f32 %v2431, 0.2
        %v2436 = vmul.f32 %v2432, 0.2
        %v2437 = vmul.f32 %v2433, 0.2
        %v2438 = vmul.f32 %v2434, 0.2
        %v2439 = vmax.f32 %v2431, %v2435
        %v2440 = vmax.f32 %v2432, %v2436
        %v2441 = vmax.f32 %v2433, %v2437
        %v2442 = vmax.f32 %v2434, %v2438
        %v2443 = vld [vmem:[%s7] sm:$0xff]
        %v2444 = vld [vmem:[%s7 + $0x8] sm:$0xff]
        %v2445 = vld [vmem:[%s7 + $0x10] sm:$0xff]
        %v2446 = vld [vmem:[%s7 + $0x18] sm:$0xff]
        %v2447 = vld [vmem:[%s7 + $0x20] sm:$0xff]
        %v2448 = vld [vmem:[%s7 + $0x28] sm:$0xff]
        %v2449 = vld [vmem:[%s7 + $0x30] sm:$0xff]
        %v2450 = vld [vmem:[%s7 + $0x38] sm:$0xff]
        %v2451 = vld [vmem:[%s7 + $0x40] sm:$0xff]
        %v2452 = vld [vmem:[%s7 + $0x48] sm:$0xff]
        %v2453 = vld [vmem:[%s7 + $0x50] sm:$0xff]
        %v2454 = vld [vmem:[%s7 + $0x58] sm:$0xff]
        %v2455 = vld [vmem:[%s7 + $0x60] sm:$0xff]
        %v2456 = vld [vmem:[%s7 + $0x68] sm:$0xff]
        %v2457 = vld [vmem:[%s7 + $0x70] sm:$0xff]
        %v2458 = vld [vmem:[%s7 + $0x78] sm:$0xff]
        %s2459 = scalar_lea.vmem %s7, 128
        %v2460 = vld [vmem:[%s2459] sm:$0xff]
        %v2461 = vld [vmem:[%s2459 + $0x8] sm:$0xff]
        %v2462 = vld [vmem:[%s2459 + $0x10] sm:$0xff]
        %v2463 = vld [vmem:[%s2459 + $0x18] sm:$0xff]
        %v2464 = vld [vmem:[%s2459 + $0x20] sm:$0xff]
        %v2465 = vld [vmem:[%s2459 + $0x28] sm:$0xff]
        %v2466 = vld [vmem:[%s2459 + $0x30] sm:$0xff]
        %v2467 = vld [vmem:[%s2459 + $0x38] sm:$0xff]
        %v2468 = vld [vmem:[%s2459 + $0x40] sm:$0xff]
        %v2469 = vld [vmem:[%s2459 + $0x48] sm:$0xff]
        %v2470 = vld [vmem:[%s2459 + $0x50] sm:$0xff]
        %v2471 = vld [vmem:[%s2459 + $0x58] sm:$0xff]
        %v2472 = vld [vmem:[%s2459 + $0x60] sm:$0xff]
        %v2473 = vld [vmem:[%s2459 + $0x68] sm:$0xff]
        %v2474 = vld [vmem:[%s2459 + $0x70] sm:$0xff]
        %v2475 = vld [vmem:[%s2459 + $0x78] sm:$0xff]
        %2476 = vmatprep.subr.mxu0 0.0
        %2477 = vmatpush1.msra.mxu0 %v2460
        %2478 = vmatprep.subr.mxu0 0.0
        %2479 = vmatpush1.msra.mxu0 %v2461
        %2480 = vmatprep.subr.mxu0 0.0
        %2481 = vmatpush1.msra.mxu0 %v2462
        %2482 = vmatprep.subr.mxu0 0.0
        %2483 = vmatpush1.msra.mxu0 %v2463
        %2484 = vmatprep.subr.mxu0 0.0
        %2485 = vmatpush1.msra.mxu0 %v2464
        %2486 = vmatprep.subr.mxu0 0.0
        %2487 = vmatpush1.msra.mxu0 %v2465
        %2488 = vmatprep.subr.mxu0 0.0
        %2489 = vmatpush1.msra.mxu0 %v2466
        %2490 = vmatprep.subr.mxu0 0.0
        %2491 = vmatpush1.msra.mxu0 %v2467
        %2492 = vmatprep.subr.mxu0 0.0
        %2493 = vmatpush1.msra.mxu0 %v2468
        %2494 = vmatprep.subr.mxu0 0.0
        %2495 = vmatpush1.msra.mxu0 %v2469
        %2496 = vmatprep.subr.mxu0 0.0
        %2497 = vmatpush1.msra.mxu0 %v2470
        %2498 = vmatprep.subr.mxu0 0.0
        %2499 = vmatpush1.msra.mxu0 %v2471
        %2500 = vmatprep.subr.mxu0 0.0
        %2501 = vmatpush1.msra.mxu0 %v2472
        %2502 = vmatprep.subr.mxu0 0.0
        %2503 = vmatpush1.msra.mxu0 %v2473
        %2504 = vmatprep.subr.mxu0 0.0
        %2505 = vmatpush1.msra.mxu0 %v2474
        %2506 = vmatprep.subr.mxu0 0.0
        %2507 = vmatpush1.msra.mxu0 %v2475
        %2508 = vmatprep.subr.mxu0 0.0
        %2509 = vmatpush1.msra.mxu0 0.0
        %2510 = vmatprep.subr.mxu0 0.0
        %2511 = vmatpush1.msra.mxu0 0.0
        %2512 = vmatprep.subr.mxu0 0.0
        %2513 = vmatpush1.msra.mxu0 0.0
        %2514 = vmatprep.subr.mxu0 0.0
        %2515 = vmatpush1.msra.mxu0 0.0
        %2516 = vmatprep.subr.mxu0 0.0
        %2517 = vmatpush1.msra.mxu0 0.0
        %2518 = vmatprep.subr.mxu0 0.0
        %2519 = vmatpush1.msra.mxu0 0.0
        %2520 = vmatprep.subr.mxu0 0.0
        %2521 = vmatpush1.msra.mxu0 0.0
        %2522 = vmatprep.subr.mxu0 0.0
        %2523 = vmatpush1.msra.mxu0 0.0
        %2524 = vmatprep.subr.mxu0 0.0
        %2525 = vmatpush1.msra.mxu0 0.0
        %2526 = vmatprep.subr.mxu0 0.0
        %2527 = vmatpush1.msra.mxu0 0.0
        %2528 = vmatprep.subr.mxu0 0.0
        %2529 = vmatpush1.msra.mxu0 0.0
        %2530 = vmatprep.subr.mxu0 0.0
        %2531 = vmatpush1.msra.mxu0 0.0
        %2532 = vmatprep.subr.mxu0 0.0
        %2533 = vmatpush1.msra.mxu0 0.0
        %2534 = vmatprep.subr.mxu0 0.0
        %2535 = vmatpush1.msra.mxu0 0.0
        %2536 = vmatprep.subr.mxu0 0.0
        %2537 = vmatpush1.msra.mxu0 0.0
        %2538 = vmatprep.subr.mxu0 0.0
        %2539 = vmatpush1.msra.mxu0 0.0
        %2540 = vmatprep.mubr.f32.mxu0 0.0
        %2541 = vmatmul.mubr.f32.gmra.mrb[0].mxu0 %v2439
        %v2542 = vpop.f32.mrb[0].mxu0
        %v2543 = vadd.f32 0.0, %v2542
        %v2544 = vpop.f32.mrb[0].mxu0
        %2545 = vmatprep.mubr.f32.mxu0 0.0
        %2546 = vmatmul.mubr.f32.gmra.mrb[0].mxu0 %v2441
        %v2547 = vpop.f32.mrb[0].mxu0
        %v2548 = vadd.f32 0.0, %v2547
        %v2549 = vpop.f32.mrb[0].mxu0
        %2550 = vdwg.mxu0
        %2551 = vmatprep.subr.mxu0 0.0
        %2552 = vmatpush1.msra.mxu0 %v2443
        %2553 = vmatprep.subr.mxu0 0.0
        %2554 = vmatpush1.msra.mxu0 %v2444
        %2555 = vmatprep.subr.mxu0 0.0
        %2556 = vmatpush1.msra.mxu0 %v2445
        %2557 = vmatprep.subr.mxu0 0.0
        %2558 = vmatpush1.msra.mxu0 %v2446
        %2559 = vmatprep.subr.mxu0 0.0
        %2560 = vmatpush1.msra.mxu0 %v2447
        %2561 = vmatprep.subr.mxu0 0.0
        %2562 = vmatpush1.msra.mxu0 %v2448
        %2563 = vmatprep.subr.mxu0 0.0
        %2564 = vmatpush1.msra.mxu0 %v2449
        %2565 = vmatprep.subr.mxu0 0.0
        %2566 = vmatpush1.msra.mxu0 %v2450
        %2567 = vmatprep.subr.mxu0 0.0
        %2568 = vmatpush1.msra.mxu0 %v2451
        %2569 = vmatprep.subr.mxu0 0.0
        %2570 = vmatpush1.msra.mxu0 %v2452
        %2571 = vmatprep.subr.mxu0 0.0
        %2572 = vmatpush1.msra.mxu0 %v2453
        %2573 = vmatprep.subr.mxu0 0.0
        %2574 = vmatpush1.msra.mxu0 %v2454
        %2575 = vmatprep.subr.mxu0 0.0
        %2576 = vmatpush1.msra.mxu0 %v2455
        %2577 = vmatprep.subr.mxu0 0.0
        %2578 = vmatpush1.msra.mxu0 %v2456
        %2579 = vmatprep.subr.mxu0 0.0
        %2580 = vmatpush1.msra.mxu0 %v2457
        %2581 = vmatprep.subr.mxu0 0.0
        %2582 = vmatpush1.msra.mxu0 %v2458
        %2583 = vmatprep.subr.mxu0 0.0
        %2584 = vmatpush1.msra.mxu0 0.0
        %2585 = vmatprep.subr.mxu0 0.0
        %2586 = vmatpush1.msra.mxu0 0.0
        %2587 = vmatprep.subr.mxu0 0.0
        %2588 = vmatpush1.msra.mxu0 0.0
        %2589 = vmatprep.subr.mxu0 0.0
        %2590 = vmatpush1.msra.mxu0 0.0
        %2591 = vmatprep.subr.mxu0 0.0
        %2592 = vmatpush1.msra.mxu0 0.0
        %2593 = vmatprep.subr.mxu0 0.0
        %2594 = vmatpush1.msra.mxu0 0.0
        %2595 = vmatprep.subr.mxu0 0.0
        %2596 = vmatpush1.msra.mxu0 0.0
        %2597 = vmatprep.subr.mxu0 0.0
        %2598 = vmatpush1.msra.mxu0 0.0
        %2599 = vmatprep.subr.mxu0 0.0
        %2600 = vmatpush1.msra.mxu0 0.0
        %2601 = vmatprep.subr.mxu0 0.0
        %2602 = vmatpush1.msra.mxu0 0.0
        %2603 = vmatprep.subr.mxu0 0.0
        %2604 = vmatpush1.msra.mxu0 0.0
        %2605 = vmatprep.subr.mxu0 0.0
        %2606 = vmatpush1.msra.mxu0 0.0
        %2607 = vmatprep.subr.mxu0 0.0
        %2608 = vmatpush1.msra.mxu0 0.0
        %2609 = vmatprep.subr.mxu0 0.0
        %2610 = vmatpush1.msra.mxu0 0.0
        %2611 = vmatprep.subr.mxu0 0.0
        %2612 = vmatpush1.msra.mxu0 0.0
        %2613 = vmatprep.subr.mxu0 0.0
        %2614 = vmatpush1.msra.mxu0 0.0
        %2615 = vmatprep.mubr.f32.mxu0 0.0
        %2616 = vmatmul.mubr.f32.gmra.mrb[0].mxu0 %v2440
        %v2617 = vpop.f32.mrb[0].mxu0
        %v2618 = vadd.f32 %v2543, %v2617
        %v2619 = vpop.f32.mrb[0].mxu0
        %2620 = vmatprep.mubr.f32.mxu0 0.0
        %2621 = vmatmul.mubr.f32.gmra.mrb[0].mxu0 %v2440
        %v2622 = vpop.f32.mrb[0].mxu0
        %v2623 = vadd.f32 %v2548, %v2622
        %v2624 = vpop.f32.mrb[0].mxu0
        %2625 = vdwg.mxu0
        %s2626 = scalar_lea.vmem %s7, 256
        %v2627 = vld [vmem:[%s2626] sm:$0xff]
        %v2628 = vld [vmem:[%s2626 + $0x8] sm:$0xff]
        %v2629 = vld [vmem:[%s2626 + $0x10] sm:$0xff]
        %v2630 = vld [vmem:[%s2626 + $0x18] sm:$0xff]
        %v2631 = vld [vmem:[%s2626 + $0x20] sm:$0xff]
        %v2632 = vld [vmem:[%s2626 + $0x28] sm:$0xff]
        %v2633 = vld [vmem:[%s2626 + $0x30] sm:$0xff]
        %v2634 = vld [vmem:[%s2626 + $0x38] sm:$0xff]
        %v2635 = vld [vmem:[%s2626 + $0x40] sm:$0xff]
        %v2636 = vld [vmem:[%s2626 + $0x48] sm:$0xff]
        %v2637 = vld [vmem:[%s2626 + $0x50] sm:$0xff]
        %v2638 = vld [vmem:[%s2626 + $0x58] sm:$0xff]
        %v2639 = vld [vmem:[%s2626 + $0x60] sm:$0xff]
        %v2640 = vld [vmem:[%s2626 + $0x68] sm:$0xff]
        %v2641 = vld [vmem:[%s2626 + $0x70] sm:$0xff]
        %v2642 = vld [vmem:[%s2626 + $0x78] sm:$0xff]
        %2643 = vmatprep.subr.mxu0 0.0
        %2644 = vmatpush1.msra.mxu0 %v2627
        %2645 = vmatprep.subr.mxu0 0.0
        %2646 = vmatpush1.msra.mxu0 %v2628
        %2647 = vmatprep.subr.mxu0 0.0
        %2648 = vmatpush1.msra.mxu0 %v2629
        %2649 = vmatprep.subr.mxu0 0.0
        %2650 = vmatpush1.msra.mxu0 %v2630
        %2651 = vmatprep.subr.mxu0 0.0
        %2652 = vmatpush1.msra.mxu0 %v2631
        %2653 = vmatprep.subr.mxu0 0.0
        %2654 = vmatpush1.msra.mxu0 %v2632
        %2655 = vmatprep.subr.mxu0 0.0
        %2656 = vmatpush1.msra.mxu0 %v2633
        %2657 = vmatprep.subr.mxu0 0.0
        %2658 = vmatpush1.msra.mxu0 %v2634
        %2659 = vmatprep.subr.mxu0 0.0
        %2660 = vmatpush1.msra.mxu0 %v2635
        %2661 = vmatprep.subr.mxu0 0.0
        %2662 = vmatpush1.msra.mxu0 %v2636
        %2663 = vmatprep.subr.mxu0 0.0
        %2664 = vmatpush1.msra.mxu0 %v2637
        %2665 = vmatprep.subr.mxu0 0.0
        %2666 = vmatpush1.msra.mxu0 %v2638
        %2667 = vmatprep.subr.mxu0 0.0
        %2668 = vmatpush1.msra.mxu0 %v2639
        %2669 = vmatprep.subr.mxu0 0.0
        %2670 = vmatpush1.msra.mxu0 %v2640
        %2671 = vmatprep.subr.mxu0 0.0
        %2672 = vmatpush1.msra.mxu0 %v2641
        %2673 = vmatprep.subr.mxu0 0.0
        %2674 = vmatpush1.msra.mxu0 %v2642
        %2675 = vmatprep.subr.mxu0 0.0
        %2676 = vmatpush1.msra.mxu0 0.0
        %2677 = vmatprep.subr.mxu0 0.0
        %2678 = vmatpush1.msra.mxu0 0.0
        %2679 = vmatprep.subr.mxu0 0.0
        %2680 = vmatpush1.msra.mxu0 0.0
        %2681 = vmatprep.subr.mxu0 0.0
        %2682 = vmatpush1.msra.mxu0 0.0
        %2683 = vmatprep.subr.mxu0 0.0
        %2684 = vmatpush1.msra.mxu0 0.0
        %2685 = vmatprep.subr.mxu0 0.0
        %2686 = vmatpush1.msra.mxu0 0.0
        %2687 = vmatprep.subr.mxu0 0.0
        %2688 = vmatpush1.msra.mxu0 0.0
        %2689 = vmatprep.subr.mxu0 0.0
        %2690 = vmatpush1.msra.mxu0 0.0
        %2691 = vmatprep.subr.mxu0 0.0
        %2692 = vmatpush1.msra.mxu0 0.0
        %2693 = vmatprep.subr.mxu0 0.0
        %2694 = vmatpush1.msra.mxu0 0.0
        %2695 = vmatprep.subr.mxu0 0.0
        %2696 = vmatpush1.msra.mxu0 0.0
        %2697 = vmatprep.subr.mxu0 0.0
        %2698 = vmatpush1.msra.mxu0 0.0
        %2699 = vmatprep.subr.mxu0 0.0
        %2700 = vmatpush1.msra.mxu0 0.0
        %2701 = vmatprep.subr.mxu0 0.0
        %2702 = vmatpush1.msra.mxu0 0.0
        %2703 = vmatprep.subr.mxu0 0.0
        %2704 = vmatpush1.msra.mxu0 0.0
        %2705 = vmatprep.subr.mxu0 0.0
        %2706 = vmatpush1.msra.mxu0 0.0
        %2707 = vmatprep.mubr.f32.mxu0 0.0
        %2708 = vmatmul.mubr.f32.gmra.mrb[0].mxu0 %v2440
        %v2709 = vpop.f32.mrb[0].mxu0
        %v2710 = vadd.f32 0.0, %v2709
        %v2711 = vpop.f32.mrb[0].mxu0
        %2712 = vmatprep.mubr.f32.mxu0 0.0
        %2713 = vmatmul.mubr.f32.gmra.mrb[0].mxu0 %v2442
        %v2714 = vpop.f32.mrb[0].mxu0
        %v2715 = vadd.f32 0.0, %v2714
        %v2716 = vpop.f32.mrb[0].mxu0
        %2717 = vdwg.mxu0
        %v2718 = vadd.f32 %v2618, %v2710
        %v2719 = vadd.f32 %v2623, %v2715
        %s2720 = scalar_lea.vmem %s7, 384
        %v2721 = vld [vmem:[%s2720] sm:$0xff]
        %v2722 = vld [vmem:[%s2720 + $0x8] sm:$0xff]
        %v2723 = vld [vmem:[%s2720 + $0x10] sm:$0xff]
        %v2724 = vld [vmem:[%s2720 + $0x18] sm:$0xff]
        %v2725 = vld [vmem:[%s2720 + $0x20] sm:$0xff]
        %v2726 = vld [vmem:[%s2720 + $0x28] sm:$0xff]
        %v2727 = vld [vmem:[%s2720 + $0x30] sm:$0xff]
        %v2728 = vld [vmem:[%s2720 + $0x38] sm:$0xff]
        %v2729 = vld [vmem:[%s2720 + $0x40] sm:$0xff]
        %v2730 = vld [vmem:[%s2720 + $0x48] sm:$0xff]
        %v2731 = vld [vmem:[%s2720 + $0x50] sm:$0xff]
        %v2732 = vld [vmem:[%s2720 + $0x58] sm:$0xff]
        %v2733 = vld [vmem:[%s2720 + $0x60] sm:$0xff]
        %v2734 = vld [vmem:[%s2720 + $0x68] sm:$0xff]
        %v2735 = vld [vmem:[%s2720 + $0x70] sm:$0xff]
        %v2736 = vld [vmem:[%s2720 + $0x78] sm:$0xff]
        %2737 = vmatprep.subr.mxu0 0.0
        %2738 = vmatpush1.msra.mxu0 %v2721
        %2739 = vmatprep.subr.mxu0 0.0
        %2740 = vmatpush1.msra.mxu0 %v2722
        %2741 = vmatprep.subr.mxu0 0.0
        %2742 = vmatpush1.msra.mxu0 %v2723
        %2743 = vmatprep.subr.mxu0 0.0
        %2744 = vmatpush1.msra.mxu0 %v2724
        %2745 = vmatprep.subr.mxu0 0.0
        %2746 = vmatpush1.msra.mxu0 %v2725
        %2747 = vmatprep.subr.mxu0 0.0
        %2748 = vmatpush1.msra.mxu0 %v2726
        %2749 = vmatprep.subr.mxu0 0.0
        %2750 = vmatpush1.msra.mxu0 %v2727
        %2751 = vmatprep.subr.mxu0 0.0
        %2752 = vmatpush1.msra.mxu0 %v2728
        %2753 = vmatprep.subr.mxu0 0.0
        %2754 = vmatpush1.msra.mxu0 %v2729
        %2755 = vmatprep.subr.mxu0 0.0
        %2756 = vmatpush1.msra.mxu0 %v2730
        %2757 = vmatprep.subr.mxu0 0.0
        %2758 = vmatpush1.msra.mxu0 %v2731
        %2759 = vmatprep.subr.mxu0 0.0
        %2760 = vmatpush1.msra.mxu0 %v2732
        %2761 = vmatprep.subr.mxu0 0.0
        %2762 = vmatpush1.msra.mxu0 %v2733
        %2763 = vmatprep.subr.mxu0 0.0
        %2764 = vmatpush1.msra.mxu0 %v2734
        %2765 = vmatprep.subr.mxu0 0.0
        %2766 = vmatpush1.msra.mxu0 %v2735
        %2767 = vmatprep.subr.mxu0 0.0
        %2768 = vmatpush1.msra.mxu0 %v2736
        %2769 = vmatprep.subr.mxu0 0.0
        %2770 = vmatpush1.msra.mxu0 0.0
        %2771 = vmatprep.subr.mxu0 0.0
        %2772 = vmatpush1.msra.mxu0 0.0
        %2773 = vmatprep.subr.mxu0 0.0
        %2774 = vmatpush1.msra.mxu0 0.0
        %2775 = vmatprep.subr.mxu0 0.0
        %2776 = vmatpush1.msra.mxu0 0.0
        %2777 = vmatprep.subr.mxu0 0.0
        %2778 = vmatpush1.msra.mxu0 0.0
        %2779 = vmatprep.subr.mxu0 0.0
        %2780 = vmatpush1.msra.mxu0 0.0
        %2781 = vmatprep.subr.mxu0 0.0
        %2782 = vmatpush1.msra.mxu0 0.0
        %2783 = vmatprep.subr.mxu0 0.0
        %2784 = vmatpush1.msra.mxu0 0.0
        %2785 = vmatprep.subr.mxu0 0.0
        %2786 = vmatpush1.msra.mxu0 0.0
        %2787 = vmatprep.subr.mxu0 0.0
        %2788 = vmatpush1.msra.mxu0 0.0
        %2789 = vmatprep.subr.mxu0 0.0
        %2790 = vmatpush1.msra.mxu0 0.0
        %2791 = vmatprep.subr.mxu0 0.0
        %2792 = vmatpush1.msra.mxu0 0.0
        %2793 = vmatprep.subr.mxu0 0.0
        %2794 = vmatpush1.msra.mxu0 0.0
        %2795 = vmatprep.subr.mxu0 0.0
        %2796 = vmatpush1.msra.mxu0 0.0
        %2797 = vmatprep.subr.mxu0 0.0
        %2798 = vmatpush1.msra.mxu0 0.0
        %2799 = vmatprep.subr.mxu0 0.0
        %2800 = vmatpush1.msra.mxu0 0.0
        %2801 = vmatprep.mubr.f32.mxu0 0.0
        %2802 = vmatmul.mubr.f32.gmra.mrb[0].mxu0 %v2441
        %v2803 = vpop.f32.mrb[0].mxu0
        %v2804 = vadd.f32 0.0, %v2803
        %v2805 = vpop.f32.mrb[0].mxu0
        %2806 = vmatprep.mubr.f32.mxu0 0.0
        %2807 = vmatmul.mubr.f32.gmra.mrb[0].mxu0 %v2441
        %v2808 = vpop.f32.mrb[0].mxu0
        %v2809 = vadd.f32 0.0, %v2808
        %v2810 = vpop.f32.mrb[0].mxu0
        %2811 = vdwg.mxu0
        %v2812 = vadd.f32 %v2718, %v2804
        %v2813 = vadd.f32 %v2719, %v2809
        %v2814 = vld [vmem:[%s8] sm:$0x1]
        %v2816 = vlaneseq
        %v2817 = vshrl.u32 %v2816, 7
        %v2818 = vsub.s32 0, %v2817
        %v2819 = vrot.slane %v2814, %v2818
        %v2821 = vadd.f32 %v2812, %v2819
        %v2822 = vadd.f32 %v2813, %v2819
        %v2823 = vmul.f32 %v2821, 0.2
        %v2824 = vmul.f32 %v2822, 0.2
        %v2825 = vmax.f32 %v2821, %v2823
        %v2826 = vmax.f32 %v2822, %v2824
        %v2827 = vld [vmem:[%s9] sm:$0xff]
        %v2828 = vld [vmem:[%s9 + $0x8] sm:$0xff]
        %v2829 = vld [vmem:[%s9 + $0x10] sm:$0xff]
        %v2830 = vld [vmem:[%s9 + $0x18] sm:$0xff]
        %v2831 = vld [vmem:[%s9 + $0x20] sm:$0xff]
        %v2832 = vld [vmem:[%s9 + $0x28] sm:$0xff]
        %v2833 = vld [vmem:[%s9 + $0x30] sm:$0xff]
        %v2834 = vld [vmem:[%s9 + $0x38] sm:$0xff]
        %v2835 = vld [vmem:[%s9 + $0x40] sm:$0xff]
        %v2836 = vld [vmem:[%s9 + $0x48] sm:$0xff]
        %v2837 = vld [vmem:[%s9 + $0x50] sm:$0xff]
        %v2838 = vld [vmem:[%s9 + $0x58] sm:$0xff]
        %v2839 = vld [vmem:[%s9 + $0x60] sm:$0xff]
        %v2840 = vld [vmem:[%s9 + $0x68] sm:$0xff]
        %v2841 = vld [vmem:[%s9 + $0x70] sm:$0xff]
        %v2842 = vld [vmem:[%s9 + $0x78] sm:$0xff]
        %s2843 = scalar_lea.vmem %s9, 128
        %v2844 = vld [vmem:[%s2843] sm:$0xff]
        %v2845 = vld [vmem:[%s2843 + $0x8] sm:$0xff]
        %v2846 = vld [vmem:[%s2843 + $0x10] sm:$0xff]
        %v2847 = vld [vmem:[%s2843 + $0x18] sm:$0xff]
        %v2848 = vld [vmem:[%s2843 + $0x20] sm:$0xff]
        %v2849 = vld [vmem:[%s2843 + $0x28] sm:$0xff]
        %v2850 = vld [vmem:[%s2843 + $0x30] sm:$0xff]
        %v2851 = vld [vmem:[%s2843 + $0x38] sm:$0xff]
        %v2852 = vld [vmem:[%s2843 + $0x40] sm:$0xff]
        %v2853 = vld [vmem:[%s2843 + $0x48] sm:$0xff]
        %v2854 = vld [vmem:[%s2843 + $0x50] sm:$0xff]
        %v2855 = vld [vmem:[%s2843 + $0x58] sm:$0xff]
        %v2856 = vld [vmem:[%s2843 + $0x60] sm:$0xff]
        %v2857 = vld [vmem:[%s2843 + $0x68] sm:$0xff]
        %v2858 = vld [vmem:[%s2843 + $0x70] sm:$0xff]
        %v2859 = vld [vmem:[%s2843 + $0x78] sm:$0xff]
        %2860 = vmatprep.subr.mxu0 0.0
        %2861 = vmatpush1.msra.mxu0 %v2844
        %2862 = vmatprep.subr.mxu0 0.0
        %2863 = vmatpush1.msra.mxu0 %v2845
        %2864 = vmatprep.subr.mxu0 0.0
        %2865 = vmatpush1.msra.mxu0 %v2846
        %2866 = vmatprep.subr.mxu0 0.0
        %2867 = vmatpush1.msra.mxu0 %v2847
        %2868 = vmatprep.subr.mxu0 0.0
        %2869 = vmatpush1.msra.mxu0 %v2848
        %2870 = vmatprep.subr.mxu0 0.0
        %2871 = vmatpush1.msra.mxu0 %v2849
        %2872 = vmatprep.subr.mxu0 0.0
        %2873 = vmatpush1.msra.mxu0 %v2850
        %2874 = vmatprep.subr.mxu0 0.0
        %2875 = vmatpush1.msra.mxu0 %v2851
        %2876 = vmatprep.subr.mxu0 0.0
        %2877 = vmatpush1.msra.mxu0 %v2852
        %2878 = vmatprep.subr.mxu0 0.0
        %2879 = vmatpush1.msra.mxu0 %v2853
        %2880 = vmatprep.subr.mxu0 0.0
        %2881 = vmatpush1.msra.mxu0 %v2854
        %2882 = vmatprep.subr.mxu0 0.0
        %2883 = vmatpush1.msra.mxu0 %v2855
        %2884 = vmatprep.subr.mxu0 0.0
        %2885 = vmatpush1.msra.mxu0 %v2856
        %2886 = vmatprep.subr.mxu0 0.0
        %2887 = vmatpush1.msra.mxu0 %v2857
        %2888 = vmatprep.subr.mxu0 0.0
        %2889 = vmatpush1.msra.mxu0 %v2858
        %2890 = vmatprep.subr.mxu0 0.0
        %2891 = vmatpush1.msra.mxu0 %v2859
        %2892 = vmatprep.subr.mxu0 0.0
        %2893 = vmatpush1.msra.mxu0 0.0
        %2894 = vmatprep.subr.mxu0 0.0
        %2895 = vmatpush1.msra.mxu0 0.0
        %2896 = vmatprep.subr.mxu0 0.0
        %2897 = vmatpush1.msra.mxu0 0.0
        %2898 = vmatprep.subr.mxu0 0.0
        %2899 = vmatpush1.msra.mxu0 0.0
        %2900 = vmatprep.subr.mxu0 0.0
        %2901 = vmatpush1.msra.mxu0 0.0
        %2902 = vmatprep.subr.mxu0 0.0
        %2903 = vmatpush1.msra.mxu0 0.0
        %2904 = vmatprep.subr.mxu0 0.0
        %2905 = vmatpush1.msra.mxu0 0.0
        %2906 = vmatprep.subr.mxu0 0.0
        %2907 = vmatpush1.msra.mxu0 0.0
        %2908 = vmatprep.subr.mxu0 0.0
        %2909 = vmatpush1.msra.mxu0 0.0
        %2910 = vmatprep.subr.mxu0 0.0
        %2911 = vmatpush1.msra.mxu0 0.0
        %2912 = vmatprep.subr.mxu0 0.0
        %2913 = vmatpush1.msra.mxu0 0.0
        %2914 = vmatprep.subr.mxu0 0.0
        %2915 = vmatpush1.msra.mxu0 0.0
        %2916 = vmatprep.subr.mxu0 0.0
        %2917 = vmatpush1.msra.mxu0 0.0
        %2918 = vmatprep.subr.mxu0 0.0
        %2919 = vmatpush1.msra.mxu0 0.0
        %2920 = vmatprep.subr.mxu0 0.0
        %2921 = vmatpush1.msra.mxu0 0.0
        %2922 = vmatprep.subr.mxu0 0.0
        %2923 = vmatpush1.msra.mxu0 0.0
        %2924 = vmatprep.mubr.f32.mxu0 0.0
        %2925 = vmatmul.mubr.f32.gmra.mrb[0].mxu0 %v2826
        %v2926 = vpop.f32.mrb[0].mxu0
        %v2927 = vadd.f32 0.0, %v2926
        %v2928 = vpop.f32.mrb[0].mxu0
        %2929 = vdwg.mxu0
        %2930 = vmatprep.subr.mxu0 0.0
        %2931 = vmatpush1.msra.mxu0 %v2827
        %2932 = vmatprep.subr.mxu0 0.0
        %2933 = vmatpush1.msra.mxu0 %v2828
        %2934 = vmatprep.subr.mxu0 0.0
        %2935 = vmatpush1.msra.mxu0 %v2829
        %2936 = vmatprep.subr.mxu0 0.0
        %2937 = vmatpush1.msra.mxu0 %v2830
        %2938 = vmatprep.subr.mxu0 0.0
        %2939 = vmatpush1.msra.mxu0 %v2831
        %2940 = vmatprep.subr.mxu0 0.0
        %2941 = vmatpush1.msra.mxu0 %v2832
        %2942 = vmatprep.subr.mxu0 0.0
        %2943 = vmatpush1.msra.mxu0 %v2833
        %2944 = vmatprep.subr.mxu0 0.0
        %2945 = vmatpush1.msra.mxu0 %v2834
        %2946 = vmatprep.subr.mxu0 0.0
        %2947 = vmatpush1.msra.mxu0 %v2835
        %2948 = vmatprep.subr.mxu0 0.0
        %2949 = vmatpush1.msra.mxu0 %v2836
        %2950 = vmatprep.subr.mxu0 0.0
        %2951 = vmatpush1.msra.mxu0 %v2837
        %2952 = vmatprep.subr.mxu0 0.0
        %2953 = vmatpush1.msra.mxu0 %v2838
        %2954 = vmatprep.subr.mxu0 0.0
        %2955 = vmatpush1.msra.mxu0 %v2839
        %2956 = vmatprep.subr.mxu0 0.0
        %2957 = vmatpush1.msra.mxu0 %v2840
        %2958 = vmatprep.subr.mxu0 0.0
        %2959 = vmatpush1.msra.mxu0 %v2841
        %2960 = vmatprep.subr.mxu0 0.0
        %2961 = vmatpush1.msra.mxu0 %v2842
        %2962 = vmatprep.subr.mxu0 0.0
        %2963 = vmatpush1.msra.mxu0 0.0
        %2964 = vmatprep.subr.mxu0 0.0
        %2965 = vmatpush1.msra.mxu0 0.0
        %2966 = vmatprep.subr.mxu0 0.0
        %2967 = vmatpush1.msra.mxu0 0.0
        %2968 = vmatprep.subr.mxu0 0.0
        %2969 = vmatpush1.msra.mxu0 0.0
        %2970 = vmatprep.subr.mxu0 0.0
        %2971 = vmatpush1.msra.mxu0 0.0
        %2972 = vmatprep.subr.mxu0 0.0
        %2973 = vmatpush1.msra.mxu0 0.0
        %2974 = vmatprep.subr.mxu0 0.0
        %2975 = vmatpush1.msra.mxu0 0.0
        %2976 = vmatprep.subr.mxu0 0.0
        %2977 = vmatpush1.msra.mxu0 0.0
        %2978 = vmatprep.subr.mxu0 0.0
        %2979 = vmatpush1.msra.mxu0 0.0
        %2980 = vmatprep.subr.mxu0 0.0
        %2981 = vmatpush1.msra.mxu0 0.0
        %2982 = vmatprep.subr.mxu0 0.0
        %2983 = vmatpush1.msra.mxu0 0.0
        %2984 = vmatprep.subr.mxu0 0.0
        %2985 = vmatpush1.msra.mxu0 0.0
        %2986 = vmatprep.subr.mxu0 0.0
        %2987 = vmatpush1.msra.mxu0 0.0
        %2988 = vmatprep.subr.mxu0 0.0
        %2989 = vmatpush1.msra.mxu0 0.0
        %2990 = vmatprep.subr.mxu0 0.0
        %2991 = vmatpush1.msra.mxu0 0.0
        %2992 = vmatprep.subr.mxu0 0.0
        %2993 = vmatpush1.msra.mxu0 0.0
        %2994 = vmatprep.mubr.f32.mxu0 0.0
        %2995 = vmatmul.mubr.f32.gmra.mrb[0].mxu0 %v2825
        %v2996 = vpop.f32.mrb[0].mxu0
        %v2997 = vadd.f32 %v2927, %v2996
        %v2998 = vpop.f32.mrb[0].mxu0
        %2999 = vdwg.mxu0
        %v3000 = vld [vmem:[%s10] sm:$0x1]
        %v3002 = vlaneseq
        %v3003 = vshrl.u32 %v3002, 7
        %v3004 = vsub.s32 0, %v3003
        %v3005 = vrot.slane %v3000, %v3004
        %v3007 = vadd.f32 %v2997, %v3005
        %v3008 = vmul.f32 %v3007, 0.2
        %v3009 = vmax.f32 %v3007, %v3008
        %v3010 = vld [vmem:[%s11] sm:$0xff]
        %v3011 = vld [vmem:[%s11 + $0x8] sm:$0xff]
        %v3012 = vld [vmem:[%s11 + $0x10] sm:$0xff]
        %v3013 = vld [vmem:[%s11 + $0x18] sm:$0xff]
        %v3014 = vld [vmem:[%s11 + $0x20] sm:$0xff]
        %v3015 = vld [vmem:[%s11 + $0x28] sm:$0xff]
        %v3016 = vld [vmem:[%s11 + $0x30] sm:$0xff]
        %v3017 = vld [vmem:[%s11 + $0x38] sm:$0xff]
        %v3018 = vld [vmem:[%s11 + $0x40] sm:$0xff]
        %v3019 = vld [vmem:[%s11 + $0x48] sm:$0xff]
        %v3020 = vld [vmem:[%s11 + $0x50] sm:$0xff]
        %v3021 = vld [vmem:[%s11 + $0x58] sm:$0xff]
        %v3022 = vld [vmem:[%s11 + $0x60] sm:$0xff]
        %v3023 = vld [vmem:[%s11 + $0x68] sm:$0xff]
        %v3024 = vld [vmem:[%s11 + $0x70] sm:$0xff]
        %v3025 = vld [vmem:[%s11 + $0x78] sm:$0xff]
        %v3026 = vld [vmem:[%s12] sm:$0x1]
        %v3028 = vlaneseq
        %v3029 = vshrl.u32 %v3028, 7
        %v3030 = vsub.s32 0, %v3029
        %v3031 = vrot.slane %v3026, %v3030
        %3033 = vmatprep.subr.mxu0 0.0
        %3034 = vmatpush1.msra.mxu0 %v3010
        %3035 = vmatprep.subr.mxu0 0.0
        %3036 = vmatpush1.msra.mxu0 %v3011
        %3037 = vmatprep.subr.mxu0 0.0
        %3038 = vmatpush1.msra.mxu0 %v3012
        %3039 = vmatprep.subr.mxu0 0.0
        %3040 = vmatpush1.msra.mxu0 %v3013
        %3041 = vmatprep.subr.mxu0 0.0
        %3042 = vmatpush1.msra.mxu0 %v3014
        %3043 = vmatprep.subr.mxu0 0.0
        %3044 = vmatpush1.msra.mxu0 %v3015
        %3045 = vmatprep.subr.mxu0 0.0
        %3046 = vmatpush1.msra.mxu0 %v3016
        %3047 = vmatprep.subr.mxu0 0.0
        %3048 = vmatpush1.msra.mxu0 %v3017
        %3049 = vmatprep.subr.mxu0 0.0
        %3050 = vmatpush1.msra.mxu0 %v3018
        %3051 = vmatprep.subr.mxu0 0.0
        %3052 = vmatpush1.msra.mxu0 %v3019
        %3053 = vmatprep.subr.mxu0 0.0
        %3054 = vmatpush1.msra.mxu0 %v3020
        %3055 = vmatprep.subr.mxu0 0.0
        %3056 = vmatpush1.msra.mxu0 %v3021
        %3057 = vmatprep.subr.mxu0 0.0
        %3058 = vmatpush1.msra.mxu0 %v3022
        %3059 = vmatprep.subr.mxu0 0.0
        %3060 = vmatpush1.msra.mxu0 %v3023
        %3061 = vmatprep.subr.mxu0 0.0
        %3062 = vmatpush1.msra.mxu0 %v3024
        %3063 = vmatprep.subr.mxu0 0.0
        %3064 = vmatpush1.msra.mxu0 %v3025
        %3065 = vmatprep.subr.mxu0 0.0
        %3066 = vmatpush1.msra.mxu0 0.0
        %3067 = vmatprep.subr.mxu0 0.0
        %3068 = vmatpush1.msra.mxu0 0.0
        %3069 = vmatprep.subr.mxu0 0.0
        %3070 = vmatpush1.msra.mxu0 0.0
        %3071 = vmatprep.subr.mxu0 0.0
        %3072 = vmatpush1.msra.mxu0 0.0
        %3073 = vmatprep.subr.mxu0 0.0
        %3074 = vmatpush1.msra.mxu0 0.0
        %3075 = vmatprep.subr.mxu0 0.0
        %3076 = vmatpush1.msra.mxu0 0.0
        %3077 = vmatprep.subr.mxu0 0.0
        %3078 = vmatpush1.msra.mxu0 0.0
        %3079 = vmatprep.subr.mxu0 0.0
        %3080 = vmatpush1.msra.mxu0 0.0
        %3081 = vmatprep.subr.mxu0 0.0
        %3082 = vmatpush1.msra.mxu0 0.0
        %3083 = vmatprep.subr.mxu0 0.0
        %3084 = vmatpush1.msra.mxu0 0.0
        %3085 = vmatprep.subr.mxu0 0.0
        %3086 = vmatpush1.msra.mxu0 0.0
        %3087 = vmatprep.subr.mxu0 0.0
        %3088 = vmatpush1.msra.mxu0 0.0
        %3089 = vmatprep.subr.mxu0 0.0
        %3090 = vmatpush1.msra.mxu0 0.0
        %3091 = vmatprep.subr.mxu0 0.0
        %3092 = vmatpush1.msra.mxu0 0.0
        %3093 = vmatprep.subr.mxu0 0.0
        %3094 = vmatpush1.msra.mxu0 0.0
        %3095 = vmatprep.subr.mxu0 0.0
        %3096 = vmatpush1.msra.mxu0 0.0
        %3097 = vmatprep.mubr.f32.mxu0 0.0
        %3098 = vmatmul.mubr.f32.gmra.mrb[0].mxu0 %v3009
        %v3099 = vpop.f32.mrb[0].mxu0
        %v3100 = vadd.f32 %v3031, %v3099
        %v3101 = vpop.f32.mrb[0].mxu0
        %3102 = vdwg.mxu0
        %3103 = vst [vmem:[%s596] sm:$0xff] %v3100
        %s3104 = sand.u32 %s313, 1
        %s3105 = scalar_lea.sflag [#allocation4], %s3104
        %s3106 = sand.u32 %s313, 1
        %s3107 = smul.addr %s3106, 8
        %s3108 = scalar_lea.vmem [#allocation3], %s3107
        // Predicated region
        $region111: #{_lambda_.1} parent=105 // pred_check
          %p3109 = pneg %p323
        $region112: #{_lambda_.1} parent=105 // pred_check_branch
          %3111 = sbr.rel (%p3109) target = $region114
        $region113: #{_lambda_.1} parent=105 // pred_region
          %s3113 = ssub.s32 128, 128
          %3114 = vsyncadd %s3105, %s3113
          %s3115 = smul.addr %s27, 128
          %s3116 = scalar_lea.hbm %s13, %s3115
          %s3118 = sshll.u32 %s3108, 4
          %s3119 = int_to_ptr.vmem [resolvable:$true] %s3118
          %3121 = dma.vmem_to_hbm [thread:$0]  %s3119, 128, %s3116, %s3105
        $region114: #{_lambda_.1} parent=105 // pred_fallthru
          _
      $region106: #{_lambda_.1} parent=5 // pred_fallthru
        _
      %p3122 = scmp.le.s32.totalorder 2, %s22
      // Predicated region
      $region115: #{_lambda_.1} parent=5 // pred_check
        %p3123 = pneg %p3122
      $region116: #{_lambda_.1} parent=5 // pred_check_branch
        %3125 = sbr.rel (%p3123) target = $region118
      $region117: #{_lambda_.1} parent=5 // pred_region
        %s3126 = ssub.s32 %s22, 2
        // Predicated region
        $region119: #{_lambda_.1} parent=117 // pred_check
          %p3127 = pneg %p329
        $region120: #{_lambda_.1} parent=117 // pred_check_branch
          %3129 = sbr.rel (%p3127) target = $region122
        $region121: #{_lambda_.1} parent=117 // pred_region
          %s3130 = sand.u32 %s314, 1
          %s3131 = scalar_lea.sflag [#allocation4], %s3130
          %s3132 = sand.u32 %s314, 1
          %s3133 = smul.addr %s3132, 8
          %s3134 = scalar_lea.vmem [#allocation3], %s3133
          %3135 = dma.done %s3131, 128
        $region122: #{_lambda_.1} parent=117 // pred_fallthru
          _
      $region118: #{_lambda_.1} parent=5 // pred_fallthru
        _
    $region6: #{_lambda_.1} parent=1 // loop_footer
      %s26 = sadd.s32 1, %s22
    $region7: #{_lambda_.1} parent=1 // loop_footer_branch
      %21 = sbr.rel target = $region3
    $region8: #{_lambda_.1} parent=1 // loop_exit
      _
    %3136 = vsyncpa [#allocation4], 1
    %s3137 = scalar_lea.sflag [#allocation4], 1
    %3138 = vsyncpa %s3137, 1

</llo_original>
